<compile_context>
chip_gen: v5e
topology: v5e:2x2
jax: 0.10.0
libtpu: 0.0.40
codegen_flags: <defaults>
</compile_context>

<pallas_src>
import functools

import numpy as np

import jax
import jax.numpy as jnp
from jax.experimental import pallas as pl
from jax.experimental.pallas import tpu as pltpu

KERNEL_SIZE = 5
STRIDE = 2
HIDDEN_1 = 16
HIDDEN_2 = 32
HIDDEN_3 = 32
BN_EPS = 1e-5
NOUT_PAD = 128  # lane-dense padding of the tiny head output


# ---------------------------------------------------------------------------
# Fused Pallas kernel (one batch element per grid step).
# ---------------------------------------------------------------------------
def _split_even_odd(a):
    """Split rows of a (Hi, N) value into (even rows, odd rows).

    Built from unit-stride single-row slices + concat (pure data movement --
    no strided loads, no gathers).  Only used for the small intermediate
    activations (<= 18 rows); the big layer-1 split is done on the host.
    """
    hi = a.shape[0]
    even = jnp.concatenate([a[i:i + 1, :] for i in range(0, hi, 2)], axis=0)
    odd = jnp.concatenate([a[i:i + 1, :] for i in range(1, hi, 2)], axis=0)
    return even, odd


def _conv_block(even, odd, m_ref, sc_ref, sh_ref, ho):
    """Conv2d(k=5, stride=2, valid) + eval BatchNorm + ReLU for one image.

    even/odd : even / odd rows of the (Hi, Wi*Ci) NHWC activation with the
               (w, c) pair flattened into lanes.
    m_ref    : (5, Wi*Ci, Wo*Co) banded per-kernel-row weight operands.
    sc_ref   : (1, Wo*Co) BN scale, tiled to the (w, c) column layout.
    sh_ref   : (1, Wo*Co) conv-bias + BN shift, tiled likewise.
    ho       : static number of output rows.
    Returns (Ho, Wo*Co).
    """
    kh = m_ref.shape[0]
    acc = None
    for ki in range(kh):
        half = even if ki % 2 == 0 else odd
        rows = half[ki // 2:ki // 2 + ho, :]        # rows ki, ki+2, ..., exact
        part = jnp.dot(rows, m_ref[ki], preferred_element_type=jnp.float32)
        acc = part if acc is None else acc + part
    return jnp.maximum(acc * sc_ref[...] + sh_ref[...], 0.0)


def _dqn_kernel(x_ref,
                m1, sc1, sh1, m2, sc2, sh2, m3, sc3, sh3,
                hw_ref, hb_ref, o_ref, *, out_heights):
    # x_ref: (2, ceil(H/2), W*C) -- plane 0 = even input rows, plane 1 = odd.
    a = _conv_block(x_ref[0], x_ref[1], m1, sc1, sh1, out_heights[0])
    a = _conv_block(*_split_even_odd(a), m2, sc2, sh2, out_heights[1])
    a = _conv_block(*_split_even_odd(a), m3, sc3, sh3, out_heights[2])
    # Linear head; head weight was pre-permuted to this (h, w*c) layout, so
    # the PyTorch NCHW x.view(N, -1) flatten ordering is already accounted for.
    acc = hb_ref[...]                                   # (1, NOUT_PAD)
    for h in range(hw_ref.shape[0]):
        acc = acc + jnp.dot(a[h:h + 1, :], hw_ref[h],
                            preferred_element_type=jnp.float32)
    o_ref[...] = acc                                    # lane-dense (1, 128)


@functools.partial(jax.jit, static_argnames=("out_heights", "n_outputs"))
def dqn_forward(prepared, x_nchw, *, out_heights, n_outputs):
    """x_nchw: (B, C, H, W) float32 -> (B, n_outputs) float32."""
    B, C, H, W = x_nchw.shape
    # Per-call host glue: NCHW -> (H, W*C) rows per batch element, then split
    # the rows into even/odd planes so the kernel's layer-1 stride-2 row
    # selection becomes plain unit-stride slices.
    x = jnp.transpose(x_nchw, (0, 2, 3, 1)).astype(jnp.float32)
    x = x.reshape(B, H, W * C)
    if H % 2:
        x = jnp.pad(x, ((0, 0), (0, 1), (0, 0)))        # pad row never read
    hp = x.shape[1]
    x = x.reshape(B, hp // 2, 2, W * C).transpose(0, 2, 1, 3)  # (B,2,hp/2,W*C)

    consts = (prepared["m1"], prepared["sc1"], prepared["sh1"],
              prepared["m2"], prepared["sc2"], prepared["sh2"],
              prepared["m3"], prepared["sc3"], prepared["sh3"],
              prepared["hw"], prepared["hb"])
    nout_pad = prepared["hb"].shape[1]

    def const_spec(arr):
        nd = arr.ndim
        return pl.BlockSpec(arr.shape, lambda b, nd=nd: (0,) * nd)

    out = pl.pallas_call(
        functools.partial(_dqn_kernel, out_heights=out_heights),
        out_shape=jax.ShapeDtypeStruct((B, 1, nout_pad), jnp.float32),
        grid=(B,),
        in_specs=[pl.BlockSpec((None, 2, hp // 2, W * C),
                               lambda b: (b, 0, 0, 0))]
        + [const_spec(a) for a in consts],
        out_specs=pl.BlockSpec((None, 1, nout_pad), lambda b: (b, 0, 0)),
        compiler_params=pltpu.CompilerParams(
            dimension_semantics=("parallel",)),
    )(x, *consts)
    return out[:, 0, :n_outputs]


# ---------------------------------------------------------------------------
# One-time host-side constant preparation (hoisted out of the forward path).
# ---------------------------------------------------------------------------
def _build_conv_consts(w_oihw, conv_b, bn_params, hi, wi):
    w = np.asarray(w_oihw, np.float32)          # (Co, Ci, KH, KW)
    b = np.asarray(conv_b, np.float32)
    gamma, beta, mean, var = (np.asarray(t, np.float32) for t in bn_params)
    co, ci, kh, kw = w.shape
    ho = (hi - kh) // STRIDE + 1
    wo = (wi - kw) // STRIDE + 1
    # Banded matmul operand per kernel row ki:
    #   M[ki, col*Ci + c, ow*Co + o] = w[o, c, ki, col - STRIDE*ow]  (else 0)
    wt = np.transpose(w, (2, 3, 1, 0))          # (KH, KW, Ci, Co)
    m = np.zeros((kh, wi * ci, wo * co), np.float32)
    for kj in range(kw):
        for ow in range(wo):
            col = STRIDE * ow + kj
            m[:, col * ci:(col + 1) * ci, ow * co:(ow + 1) * co] = wt[:, kj]
    # Eval-mode BatchNorm (+ conv bias) -> per-channel scale/shift, tiled to
    # the (w, c)-interleaved lane layout used inside the kernel.
    scale = gamma / np.sqrt(var + BN_EPS)
    shift = (b - mean) * scale + beta
    sc_row = np.tile(scale, wo)[None, :].astype(np.float32)
    sh_row = np.tile(shift, wo)[None, :].astype(np.float32)
    return m, sc_row, sh_row, ho, wo, co


def _build_head_consts(w_head, b_head, c_last, h_last, w_last):
    wh = np.asarray(w_head, np.float32)         # (O, C*H*W), torch flatten order
    bh = np.asarray(b_head, np.float32)
    n_out = wh.shape[0]
    nout_pad = max(NOUT_PAD, -(-n_out // 128) * 128)
    hw = wh.reshape(n_out, c_last, h_last, w_last).transpose(2, 3, 1, 0)
    hw = hw.reshape(h_last, w_last * c_last, n_out)
    hw_pad = np.zeros((h_last, w_last * c_last, nout_pad), np.float32)
    hw_pad[:, :, :n_out] = hw
    hb_pad = np.zeros((1, nout_pad), np.float32)
    hb_pad[0, :n_out] = bh
    return hw_pad, hb_pad


def prepare_params(params, h, w):
    """Pack all kernel constants once (weights -> banded operands, BN folding,
    head permutation / lane padding).  Nothing here runs per forward call."""
    prepared = {}
    out_heights = []
    hi, wi = h, w
    ci = int(np.asarray(params["w1"]).shape[1])
    for idx, (wk, bk, bnk) in enumerate(
            (("w1", "b1", "bn1"), ("w2", "b2", "bn2"), ("w3", "b3", "bn3")), 1):
        m, sc, sh, ho, wo, co = _build_conv_consts(
            params[wk], params[bk], params[bnk], hi, wi)
        prepared[f"m{idx}"] = jnp.asarray(m)
        prepared[f"sc{idx}"] = jnp.asarray(sc)
        prepared[f"sh{idx}"] = jnp.asarray(sh)
        out_heights.append(int(ho))
        hi, wi, ci = ho, wo, co
    hw, hb = _build_head_consts(params["w_head"], params["b_head"], ci, hi, wi)
    prepared["hw"] = jnp.asarray(hw)
    prepared["hb"] = jnp.asarray(hb)
    return prepared, tuple(out_heights)


# ---------------------------------------------------------------------------
# Deterministic parameter construction (synthetic, no checkpoint load).
# ---------------------------------------------------------------------------
def make_params(key, nn_inputs, h, w, outputs):
    def conv2d_size_out(size, kernel_size=KERNEL_SIZE, stride=STRIDE):
        return (size - (kernel_size - 1) - 1) // stride + 1

    convw = conv2d_size_out(conv2d_size_out(conv2d_size_out(w)))
    convh = conv2d_size_out(conv2d_size_out(conv2d_size_out(h)))
    linear_input_size = convw * convh * 32

    ks = jax.random.split(key, 16)

    def nrm(k, shape, s=0.05):
        return s * jax.random.normal(k, shape, jnp.float32)

    def bn(k, c):
        k1, k2, k3, k4 = jax.random.split(k, 4)
        gamma = 1.0 + 0.1 * jax.random.normal(k1, (c,), jnp.float32)
        beta = 0.1 * jax.random.normal(k2, (c,), jnp.float32)
        mean = 0.1 * jax.random.normal(k3, (c,), jnp.float32)
        var = 0.5 + jnp.abs(jax.random.normal(k4, (c,), jnp.float32))
        return (gamma, beta, mean, var)

    return {
        "w1": nrm(ks[0], (HIDDEN_1, nn_inputs, KERNEL_SIZE, KERNEL_SIZE)),
        "b1": nrm(ks[1], (HIDDEN_1,)),
        "bn1": bn(ks[2], HIDDEN_1),
        "w2": nrm(ks[3], (HIDDEN_2, HIDDEN_1, KERNEL_SIZE, KERNEL_SIZE)),
        "b2": nrm(ks[4], (HIDDEN_2,)),
        "bn2": bn(ks[5], HIDDEN_2),
        "w3": nrm(ks[6], (HIDDEN_3, HIDDEN_2, KERNEL_SIZE, KERNEL_SIZE)),
        "b3": nrm(ks[7], (HIDDEN_3,)),
        "bn3": bn(ks[8], HIDDEN_3),
        "w_head": nrm(ks[9], (outputs, linear_input_size)),
        "b_head": nrm(ks[10], (outputs,)),
    }


# ---------------------------------------------------------------------------
# Pure-JAX reference (lax.conv) used only for the correctness check.
# ---------------------------------------------------------------------------
def dqn_reference(params, x_nchw):
    def layer(x, w, b, bnp):
        gamma, beta, mean, var = bnp
        y = jax.lax.conv_general_dilated(
            x, w, window_strides=(STRIDE, STRIDE), padding="VALID",
            dimension_numbers=("NCHW", "OIHW", "NCHW"))
        y = y + b[None, :, None, None]
        y = (y - mean[None, :, None, None]) / jnp.sqrt(
            var[None, :, None, None] + BN_EPS)
        y = y * gamma[None, :, None, None] + beta[None, :, None, None]
        return jnp.maximum(y, 0.0)

    x = x_nchw.astype(jnp.float32)
    x = layer(x, params["w1"], params["b1"], params["bn1"])
    x = layer(x, params["w2"], params["b2"], params["bn2"])
    x = layer(x, params["w3"], params["b3"], params["bn3"])
    flat = x.reshape(x.shape[0], -1)            # PyTorch NCHW flatten (C, H, W)
    return flat @ params["w_head"].T + params["b_head"]


if __name__ == "__main__":
    B, C_IN, H, W, OUTPUTS = 2, 3, 40, 40, 2    # small but forward-consistent

    key = jax.random.PRNGKey(0)
    k_param, k_x = jax.random.split(key)
    params = make_params(k_param, C_IN, H, W, OUTPUTS)
    x = jax.random.normal(k_x, (B, C_IN, H, W), jnp.float32)

    prepared, out_heights = prepare_params(params, H, W)

    out = dqn_forward(prepared, x, out_heights=out_heights, n_outputs=OUTPUTS)
    out = jax.block_until_ready(out)
    assert out.shape == (B, OUTPUTS), out.shape

    ref = jax.block_until_ready(dqn_reference(params, x))
    # Tolerance leaves margin for MXU accumulation-order / precision-mode
    # differences vs the XLA conv reference; a layout bug would be O(0.1+).
    assert jnp.allclose(out, ref, rtol=5e-4, atol=5e-4), (out, ref)

    print("KERNEL_OK")
</pallas_src>

<mosaic_0001>
module attributes {stable_mosaic.version = 11 : i64} {
  func.func @_dqn_kernel(%arg0: i32, %arg1: memref<1x2x20x120xf32, #tpu.memory_space<vmem>>, %arg2: memref<5x120x288xf32, #tpu.memory_space<vmem>>, %arg3: memref<1x288xf32, #tpu.memory_space<vmem>>, %arg4: memref<1x288xf32, #tpu.memory_space<vmem>>, %arg5: memref<5x288x224xf32, #tpu.memory_space<vmem>>, %arg6: memref<1x224xf32, #tpu.memory_space<vmem>>, %arg7: memref<1x224xf32, #tpu.memory_space<vmem>>, %arg8: memref<5x224x64xf32, #tpu.memory_space<vmem>>, %arg9: memref<1x64xf32, #tpu.memory_space<vmem>>, %arg10: memref<1x64xf32, #tpu.memory_space<vmem>>, %arg11: memref<2x64x128xf32, #tpu.memory_space<vmem>>, %arg12: memref<1x128xf32, #tpu.memory_space<vmem>>, %arg13: memref<1x1x128xf32, #tpu.memory_space<vmem>>) attributes {dimension_semantics = [#tpu.dimension_semantics<parallel>], iteration_bounds = array<i64: 2>, scalar_prefetch = 0 : i64, scratch_operands = 0 : i64, tpu.core_type = #tpu.core_type<tc>, window_params = [{transform_indices = @transform_0, window_bounds = array<i64: 1, 2, 20, 120>}, {pipeline_mode = #tpu.pipeline_mode<synchronous>, transform_indices = @transform_1, window_bounds = array<i64: 5, 120, 288>}, {pipeline_mode = #tpu.pipeline_mode<synchronous>, transform_indices = @transform_2, window_bounds = array<i64: 1, 288>}, {pipeline_mode = #tpu.pipeline_mode<synchronous>, transform_indices = @transform_3, window_bounds = array<i64: 1, 288>}, {pipeline_mode = #tpu.pipeline_mode<synchronous>, transform_indices = @transform_4, window_bounds = array<i64: 5, 288, 224>}, {pipeline_mode = #tpu.pipeline_mode<synchronous>, transform_indices = @transform_5, window_bounds = array<i64: 1, 224>}, {pipeline_mode = #tpu.pipeline_mode<synchronous>, transform_indices = @transform_6, window_bounds = array<i64: 1, 224>}, {pipeline_mode = #tpu.pipeline_mode<synchronous>, transform_indices = @transform_7, window_bounds = array<i64: 5, 224, 64>}, {pipeline_mode = #tpu.pipeline_mode<synchronous>, transform_indices = @transform_8, window_bounds = array<i64: 1, 64>}, {pipeline_mode = #tpu.pipeline_mode<synchronous>, transform_indices = @transform_9, window_bounds = array<i64: 1, 64>}, {pipeline_mode = #tpu.pipeline_mode<synchronous>, transform_indices = @transform_10, window_bounds = array<i64: 2, 64, 128>}, {pipeline_mode = #tpu.pipeline_mode<synchronous>, transform_indices = @transform_11, window_bounds = array<i64: 1, 128>}, {transform_indices = @transform_12, window_bounds = array<i64: 1, 1, 128>}]} {
    %c0 = arith.constant 0 : index
    %c0_0 = arith.constant 0 : index
    %c0_1 = arith.constant 0 : index
    %c0_2 = arith.constant 0 : index
    %0 = vector.load %arg1[%c0, %c0_0, %c0_1, %c0_2] : memref<1x2x20x120xf32, #tpu.memory_space<vmem>>, vector<1x1x20x120xf32>
    %1 = vector.shape_cast %0 : vector<1x1x20x120xf32> to vector<20x120xf32>
    %c0_3 = arith.constant 0 : index
    %c1 = arith.constant 1 : index
    %c0_4 = arith.constant 0 : index
    %c0_5 = arith.constant 0 : index
    %2 = vector.load %arg1[%c0_3, %c1, %c0_4, %c0_5] : memref<1x2x20x120xf32, #tpu.memory_space<vmem>>, vector<1x1x20x120xf32>
    %3 = vector.shape_cast %2 : vector<1x1x20x120xf32> to vector<20x120xf32>
    %4 = vector.extract_strided_slice %1 {offsets = [0, 0], sizes = [18, 120], strides = [1, 1]} : vector<20x120xf32> to vector<18x120xf32>
    %c0_6 = arith.constant 0 : index
    %c0_7 = arith.constant 0 : index
    %c0_8 = arith.constant 0 : index
    %5 = vector.load %arg2[%c0_6, %c0_7, %c0_8] : memref<5x120x288xf32, #tpu.memory_space<vmem>>, vector<1x120x288xf32>
    %6 = vector.shape_cast %5 : vector<1x120x288xf32> to vector<120x288xf32>
    %cst = arith.constant dense<0.000000e+00> : vector<18x288xf32>
    %7 = tpu.matmul %4, %6, %cst {dimension_numbers = #tpu.dot_dimension_numbers<[1], [0], [0], [1], [0, 0, 1, 1], [], []>} : vector<18x120xf32>, vector<120x288xf32>, vector<18x288xf32> -> vector<18x288xf32>
    %8 = vector.extract_strided_slice %3 {offsets = [0, 0], sizes = [18, 120], strides = [1, 1]} : vector<20x120xf32> to vector<18x120xf32>
    %c1_9 = arith.constant 1 : index
    %c0_10 = arith.constant 0 : index
    %c0_11 = arith.constant 0 : index
    %9 = vector.load %arg2[%c1_9, %c0_10, %c0_11] : memref<5x120x288xf32, #tpu.memory_space<vmem>>, vector<1x120x288xf32>
    %10 = vector.shape_cast %9 : vector<1x120x288xf32> to vector<120x288xf32>
    %cst_12 = arith.constant dense<0.000000e+00> : vector<18x288xf32>
    %11 = tpu.matmul %8, %10, %cst_12 {dimension_numbers = #tpu.dot_dimension_numbers<[1], [0], [0], [1], [0, 0, 1, 1], [], []>} : vector<18x120xf32>, vector<120x288xf32>, vector<18x288xf32> -> vector<18x288xf32>
    %12 = arith.addf %7, %11 : vector<18x288xf32>
    %13 = vector.extract_strided_slice %1 {offsets = [1, 0], sizes = [18, 120], strides = [1, 1]} : vector<20x120xf32> to vector<18x120xf32>
    %c2 = arith.constant 2 : index
    %c0_13 = arith.constant 0 : index
    %c0_14 = arith.constant 0 : index
    %14 = vector.load %arg2[%c2, %c0_13, %c0_14] : memref<5x120x288xf32, #tpu.memory_space<vmem>>, vector<1x120x288xf32>
    %15 = vector.shape_cast %14 : vector<1x120x288xf32> to vector<120x288xf32>
    %cst_15 = arith.constant dense<0.000000e+00> : vector<18x288xf32>
    %16 = tpu.matmul %13, %15, %cst_15 {dimension_numbers = #tpu.dot_dimension_numbers<[1], [0], [0], [1], [0, 0, 1, 1], [], []>} : vector<18x120xf32>, vector<120x288xf32>, vector<18x288xf32> -> vector<18x288xf32>
    %17 = arith.addf %12, %16 : vector<18x288xf32>
    %18 = vector.extract_strided_slice %3 {offsets = [1, 0], sizes = [18, 120], strides = [1, 1]} : vector<20x120xf32> to vector<18x120xf32>
    %c3 = arith.constant 3 : index
    %c0_16 = arith.constant 0 : index
    %c0_17 = arith.constant 0 : index
    %19 = vector.load %arg2[%c3, %c0_16, %c0_17] : memref<5x120x288xf32, #tpu.memory_space<vmem>>, vector<1x120x288xf32>
    %20 = vector.shape_cast %19 : vector<1x120x288xf32> to vector<120x288xf32>
    %cst_18 = arith.constant dense<0.000000e+00> : vector<18x288xf32>
    %21 = tpu.matmul %18, %20, %cst_18 {dimension_numbers = #tpu.dot_dimension_numbers<[1], [0], [0], [1], [0, 0, 1, 1], [], []>} : vector<18x120xf32>, vector<120x288xf32>, vector<18x288xf32> -> vector<18x288xf32>
    %22 = arith.addf %17, %21 : vector<18x288xf32>
    %23 = vector.extract_strided_slice %1 {offsets = [2, 0], sizes = [18, 120], strides = [1, 1]} : vector<20x120xf32> to vector<18x120xf32>
    %c4 = arith.constant 4 : index
    %c0_19 = arith.constant 0 : index
    %c0_20 = arith.constant 0 : index
    %24 = vector.load %arg2[%c4, %c0_19, %c0_20] : memref<5x120x288xf32, #tpu.memory_space<vmem>>, vector<1x120x288xf32>
    %25 = vector.shape_cast %24 : vector<1x120x288xf32> to vector<120x288xf32>
    %cst_21 = arith.constant dense<0.000000e+00> : vector<18x288xf32>
    %26 = tpu.matmul %23, %25, %cst_21 {dimension_numbers = #tpu.dot_dimension_numbers<[1], [0], [0], [1], [0, 0, 1, 1], [], []>} : vector<18x120xf32>, vector<120x288xf32>, vector<18x288xf32> -> vector<18x288xf32>
    %27 = arith.addf %22, %26 : vector<18x288xf32>
    %c0_22 = arith.constant 0 : index
    %c0_23 = arith.constant 0 : index
    %28 = vector.load %arg3[%c0_22, %c0_23] : memref<1x288xf32, #tpu.memory_space<vmem>>, vector<1x288xf32>
    %29 = vector.broadcast %28 : vector<1x288xf32> to vector<18x288xf32>
    %30 = arith.mulf %27, %29 : vector<18x288xf32>
    %c0_24 = arith.constant 0 : index
    %c0_25 = arith.constant 0 : index
    %31 = vector.load %arg4[%c0_24, %c0_25] : memref<1x288xf32, #tpu.memory_space<vmem>>, vector<1x288xf32>
    %32 = vector.broadcast %31 : vector<1x288xf32> to vector<18x288xf32>
    %33 = arith.addf %30, %32 : vector<18x288xf32>
    %cst_26 = arith.constant 0.000000e+00 : f32
    %34 = vector.broadcast %cst_26 : f32 to vector<18x288xf32>
    %35 = arith.maximumf %33, %34 : vector<18x288xf32>
    %36 = vector.extract_strided_slice %35 {offsets = [0, 0], sizes = [1, 288], strides = [1, 1]} : vector<18x288xf32> to vector<1x288xf32>
    %37 = vector.extract_strided_slice %35 {offsets = [2, 0], sizes = [1, 288], strides = [1, 1]} : vector<18x288xf32> to vector<1x288xf32>
    %38 = vector.extract_strided_slice %35 {offsets = [4, 0], sizes = [1, 288], strides = [1, 1]} : vector<18x288xf32> to vector<1x288xf32>
    %39 = vector.extract_strided_slice %35 {offsets = [6, 0], sizes = [1, 288], strides = [1, 1]} : vector<18x288xf32> to vector<1x288xf32>
    %40 = vector.extract_strided_slice %35 {offsets = [8, 0], sizes = [1, 288], strides = [1, 1]} : vector<18x288xf32> to vector<1x288xf32>
    %41 = vector.extract_strided_slice %35 {offsets = [10, 0], sizes = [1, 288], strides = [1, 1]} : vector<18x288xf32> to vector<1x288xf32>
    %42 = vector.extract_strided_slice %35 {offsets = [12, 0], sizes = [1, 288], strides = [1, 1]} : vector<18x288xf32> to vector<1x288xf32>
    %43 = vector.extract_strided_slice %35 {offsets = [14, 0], sizes = [1, 288], strides = [1, 1]} : vector<18x288xf32> to vector<1x288xf32>
    %44 = vector.extract_strided_slice %35 {offsets = [16, 0], sizes = [1, 288], strides = [1, 1]} : vector<18x288xf32> to vector<1x288xf32>
    %45 = tpu.concatenate %36, %37, %38, %39, %40, %41, %42, %43, %44 in 0 : vector<1x288xf32>, vector<1x288xf32>, vector<1x288xf32>, vector<1x288xf32>, vector<1x288xf32>, vector<1x288xf32>, vector<1x288xf32>, vector<1x288xf32>, vector<1x288xf32> -> vector<9x288xf32>
    %46 = vector.extract_strided_slice %35 {offsets = [1, 0], sizes = [1, 288], strides = [1, 1]} : vector<18x288xf32> to vector<1x288xf32>
    %47 = vector.extract_strided_slice %35 {offsets = [3, 0], sizes = [1, 288], strides = [1, 1]} : vector<18x288xf32> to vector<1x288xf32>
    %48 = vector.extract_strided_slice %35 {offsets = [5, 0], sizes = [1, 288], strides = [1, 1]} : vector<18x288xf32> to vector<1x288xf32>
    %49 = vector.extract_strided_slice %35 {offsets = [7, 0], sizes = [1, 288], strides = [1, 1]} : vector<18x288xf32> to vector<1x288xf32>
    %50 = vector.extract_strided_slice %35 {offsets = [9, 0], sizes = [1, 288], strides = [1, 1]} : vector<18x288xf32> to vector<1x288xf32>
    %51 = vector.extract_strided_slice %35 {offsets = [11, 0], sizes = [1, 288], strides = [1, 1]} : vector<18x288xf32> to vector<1x288xf32>
    %52 = vector.extract_strided_slice %35 {offsets = [13, 0], sizes = [1, 288], strides = [1, 1]} : vector<18x288xf32> to vector<1x288xf32>
    %53 = vector.extract_strided_slice %35 {offsets = [15, 0], sizes = [1, 288], strides = [1, 1]} : vector<18x288xf32> to vector<1x288xf32>
    %54 = vector.extract_strided_slice %35 {offsets = [17, 0], sizes = [1, 288], strides = [1, 1]} : vector<18x288xf32> to vector<1x288xf32>
    %55 = tpu.concatenate %46, %47, %48, %49, %50, %51, %52, %53, %54 in 0 : vector<1x288xf32>, vector<1x288xf32>, vector<1x288xf32>, vector<1x288xf32>, vector<1x288xf32>, vector<1x288xf32>, vector<1x288xf32>, vector<1x288xf32>, vector<1x288xf32> -> vector<9x288xf32>
    %56 = vector.extract_strided_slice %45 {offsets = [0, 0], sizes = [7, 288], strides = [1, 1]} : vector<9x288xf32> to vector<7x288xf32>
    %c0_27 = arith.constant 0 : index
    %c0_28 = arith.constant 0 : index
    %c0_29 = arith.constant 0 : index
    %57 = vector.load %arg5[%c0_27, %c0_28, %c0_29] : memref<5x288x224xf32, #tpu.memory_space<vmem>>, vector<1x288x224xf32>
    %58 = vector.shape_cast %57 : vector<1x288x224xf32> to vector<288x224xf32>
    %cst_30 = arith.constant dense<0.000000e+00> : vector<7x224xf32>
    %59 = tpu.matmul %56, %58, %cst_30 {dimension_numbers = #tpu.dot_dimension_numbers<[1], [0], [0], [1], [0, 0, 1, 1], [], []>} : vector<7x288xf32>, vector<288x224xf32>, vector<7x224xf32> -> vector<7x224xf32>
    %60 = vector.extract_strided_slice %55 {offsets = [0, 0], sizes = [7, 288], strides = [1, 1]} : vector<9x288xf32> to vector<7x288xf32>
    %c1_31 = arith.constant 1 : index
    %c0_32 = arith.constant 0 : index
    %c0_33 = arith.constant 0 : index
    %61 = vector.load %arg5[%c1_31, %c0_32, %c0_33] : memref<5x288x224xf32, #tpu.memory_space<vmem>>, vector<1x288x224xf32>
    %62 = vector.shape_cast %61 : vector<1x288x224xf32> to vector<288x224xf32>
    %cst_34 = arith.constant dense<0.000000e+00> : vector<7x224xf32>
    %63 = tpu.matmul %60, %62, %cst_34 {dimension_numbers = #tpu.dot_dimension_numbers<[1], [0], [0], [1], [0, 0, 1, 1], [], []>} : vector<7x288xf32>, vector<288x224xf32>, vector<7x224xf32> -> vector<7x224xf32>
    %64 = arith.addf %59, %63 : vector<7x224xf32>
    %65 = vector.extract_strided_slice %45 {offsets = [1, 0], sizes = [7, 288], strides = [1, 1]} : vector<9x288xf32> to vector<7x288xf32>
    %c2_35 = arith.constant 2 : index
    %c0_36 = arith.constant 0 : index
    %c0_37 = arith.constant 0 : index
    %66 = vector.load %arg5[%c2_35, %c0_36, %c0_37] : memref<5x288x224xf32, #tpu.memory_space<vmem>>, vector<1x288x224xf32>
    %67 = vector.shape_cast %66 : vector<1x288x224xf32> to vector<288x224xf32>
    %cst_38 = arith.constant dense<0.000000e+00> : vector<7x224xf32>
    %68 = tpu.matmul %65, %67, %cst_38 {dimension_numbers = #tpu.dot_dimension_numbers<[1], [0], [0], [1], [0, 0, 1, 1], [], []>} : vector<7x288xf32>, vector<288x224xf32>, vector<7x224xf32> -> vector<7x224xf32>
    %69 = arith.addf %64, %68 : vector<7x224xf32>
    %70 = vector.extract_strided_slice %55 {offsets = [1, 0], sizes = [7, 288], strides = [1, 1]} : vector<9x288xf32> to vector<7x288xf32>
    %c3_39 = arith.constant 3 : index
    %c0_40 = arith.constant 0 : index
    %c0_41 = arith.constant 0 : index
    %71 = vector.load %arg5[%c3_39, %c0_40, %c0_41] : memref<5x288x224xf32, #tpu.memory_space<vmem>>, vector<1x288x224xf32>
    %72 = vector.shape_cast %71 : vector<1x288x224xf32> to vector<288x224xf32>
    %cst_42 = arith.constant dense<0.000000e+00> : vector<7x224xf32>
    %73 = tpu.matmul %70, %72, %cst_42 {dimension_numbers = #tpu.dot_dimension_numbers<[1], [0], [0], [1], [0, 0, 1, 1], [], []>} : vector<7x288xf32>, vector<288x224xf32>, vector<7x224xf32> -> vector<7x224xf32>
    %74 = arith.addf %69, %73 : vector<7x224xf32>
    %75 = vector.extract_strided_slice %45 {offsets = [2, 0], sizes = [7, 288], strides = [1, 1]} : vector<9x288xf32> to vector<7x288xf32>
    %c4_43 = arith.constant 4 : index
    %c0_44 = arith.constant 0 : index
    %c0_45 = arith.constant 0 : index
    %76 = vector.load %arg5[%c4_43, %c0_44, %c0_45] : memref<5x288x224xf32, #tpu.memory_space<vmem>>, vector<1x288x224xf32>
    %77 = vector.shape_cast %76 : vector<1x288x224xf32> to vector<288x224xf32>
    %cst_46 = arith.constant dense<0.000000e+00> : vector<7x224xf32>
    %78 = tpu.matmul %75, %77, %cst_46 {dimension_numbers = #tpu.dot_dimension_numbers<[1], [0], [0], [1], [0, 0, 1, 1], [], []>} : vector<7x288xf32>, vector<288x224xf32>, vector<7x224xf32> -> vector<7x224xf32>
    %79 = arith.addf %74, %78 : vector<7x224xf32>
    %c0_47 = arith.constant 0 : index
    %c0_48 = arith.constant 0 : index
    %80 = vector.load %arg6[%c0_47, %c0_48] : memref<1x224xf32, #tpu.memory_space<vmem>>, vector<1x224xf32>
    %81 = vector.broadcast %80 : vector<1x224xf32> to vector<7x224xf32>
    %82 = arith.mulf %79, %81 : vector<7x224xf32>
    %c0_49 = arith.constant 0 : index
    %c0_50 = arith.constant 0 : index
    %83 = vector.load %arg7[%c0_49, %c0_50] : memref<1x224xf32, #tpu.memory_space<vmem>>, vector<1x224xf32>
    %84 = vector.broadcast %83 : vector<1x224xf32> to vector<7x224xf32>
    %85 = arith.addf %82, %84 : vector<7x224xf32>
    %cst_51 = arith.constant 0.000000e+00 : f32
    %86 = vector.broadcast %cst_51 : f32 to vector<7x224xf32>
    %87 = arith.maximumf %85, %86 : vector<7x224xf32>
    %88 = vector.extract_strided_slice %87 {offsets = [0, 0], sizes = [1, 224], strides = [1, 1]} : vector<7x224xf32> to vector<1x224xf32>
    %89 = vector.extract_strided_slice %87 {offsets = [2, 0], sizes = [1, 224], strides = [1, 1]} : vector<7x224xf32> to vector<1x224xf32>
    %90 = vector.extract_strided_slice %87 {offsets = [4, 0], sizes = [1, 224], strides = [1, 1]} : vector<7x224xf32> to vector<1x224xf32>
    %91 = vector.extract_strided_slice %87 {offsets = [6, 0], sizes = [1, 224], strides = [1, 1]} : vector<7x224xf32> to vector<1x224xf32>
    %92 = tpu.concatenate %88, %89, %90, %91 in 0 : vector<1x224xf32>, vector<1x224xf32>, vector<1x224xf32>, vector<1x224xf32> -> vector<4x224xf32>
    %93 = vector.extract_strided_slice %87 {offsets = [1, 0], sizes = [1, 224], strides = [1, 1]} : vector<7x224xf32> to vector<1x224xf32>
    %94 = vector.extract_strided_slice %87 {offsets = [3, 0], sizes = [1, 224], strides = [1, 1]} : vector<7x224xf32> to vector<1x224xf32>
    %95 = vector.extract_strided_slice %87 {offsets = [5, 0], sizes = [1, 224], strides = [1, 1]} : vector<7x224xf32> to vector<1x224xf32>
    %96 = tpu.concatenate %93, %94, %95 in 0 : vector<1x224xf32>, vector<1x224xf32>, vector<1x224xf32> -> vector<3x224xf32>
    %97 = vector.extract_strided_slice %92 {offsets = [0, 0], sizes = [2, 224], strides = [1, 1]} : vector<4x224xf32> to vector<2x224xf32>
    %c0_52 = arith.constant 0 : index
    %c0_53 = arith.constant 0 : index
    %c0_54 = arith.constant 0 : index
    %98 = vector.load %arg8[%c0_52, %c0_53, %c0_54] : memref<5x224x64xf32, #tpu.memory_space<vmem>>, vector<1x224x64xf32>
    %99 = vector.shape_cast %98 : vector<1x224x64xf32> to vector<224x64xf32>
    %cst_55 = arith.constant dense<0.000000e+00> : vector<2x64xf32>
    %100 = tpu.matmul %97, %99, %cst_55 {dimension_numbers = #tpu.dot_dimension_numbers<[1], [0], [0], [1], [0, 0, 1, 1], [], []>} : vector<2x224xf32>, vector<224x64xf32>, vector<2x64xf32> -> vector<2x64xf32>
    %101 = vector.extract_strided_slice %96 {offsets = [0, 0], sizes = [2, 224], strides = [1, 1]} : vector<3x224xf32> to vector<2x224xf32>
    %c1_56 = arith.constant 1 : index
    %c0_57 = arith.constant 0 : index
    %c0_58 = arith.constant 0 : index
    %102 = vector.load %arg8[%c1_56, %c0_57, %c0_58] : memref<5x224x64xf32, #tpu.memory_space<vmem>>, vector<1x224x64xf32>
    %103 = vector.shape_cast %102 : vector<1x224x64xf32> to vector<224x64xf32>
    %cst_59 = arith.constant dense<0.000000e+00> : vector<2x64xf32>
    %104 = tpu.matmul %101, %103, %cst_59 {dimension_numbers = #tpu.dot_dimension_numbers<[1], [0], [0], [1], [0, 0, 1, 1], [], []>} : vector<2x224xf32>, vector<224x64xf32>, vector<2x64xf32> -> vector<2x64xf32>
    %105 = arith.addf %100, %104 : vector<2x64xf32>
    %106 = vector.extract_strided_slice %92 {offsets = [1, 0], sizes = [2, 224], strides = [1, 1]} : vector<4x224xf32> to vector<2x224xf32>
    %c2_60 = arith.constant 2 : index
    %c0_61 = arith.constant 0 : index
    %c0_62 = arith.constant 0 : index
    %107 = vector.load %arg8[%c2_60, %c0_61, %c0_62] : memref<5x224x64xf32, #tpu.memory_space<vmem>>, vector<1x224x64xf32>
    %108 = vector.shape_cast %107 : vector<1x224x64xf32> to vector<224x64xf32>
    %cst_63 = arith.constant dense<0.000000e+00> : vector<2x64xf32>
    %109 = tpu.matmul %106, %108, %cst_63 {dimension_numbers = #tpu.dot_dimension_numbers<[1], [0], [0], [1], [0, 0, 1, 1], [], []>} : vector<2x224xf32>, vector<224x64xf32>, vector<2x64xf32> -> vector<2x64xf32>
    %110 = arith.addf %105, %109 : vector<2x64xf32>
    %111 = vector.extract_strided_slice %96 {offsets = [1, 0], sizes = [2, 224], strides = [1, 1]} : vector<3x224xf32> to vector<2x224xf32>
    %c3_64 = arith.constant 3 : index
    %c0_65 = arith.constant 0 : index
    %c0_66 = arith.constant 0 : index
    %112 = vector.load %arg8[%c3_64, %c0_65, %c0_66] : memref<5x224x64xf32, #tpu.memory_space<vmem>>, vector<1x224x64xf32>
    %113 = vector.shape_cast %112 : vector<1x224x64xf32> to vector<224x64xf32>
    %cst_67 = arith.constant dense<0.000000e+00> : vector<2x64xf32>
    %114 = tpu.matmul %111, %113, %cst_67 {dimension_numbers = #tpu.dot_dimension_numbers<[1], [0], [0], [1], [0, 0, 1, 1], [], []>} : vector<2x224xf32>, vector<224x64xf32>, vector<2x64xf32> -> vector<2x64xf32>
    %115 = arith.addf %110, %114 : vector<2x64xf32>
    %116 = vector.extract_strided_slice %92 {offsets = [2, 0], sizes = [2, 224], strides = [1, 1]} : vector<4x224xf32> to vector<2x224xf32>
    %c4_68 = arith.constant 4 : index
    %c0_69 = arith.constant 0 : index
    %c0_70 = arith.constant 0 : index
    %117 = vector.load %arg8[%c4_68, %c0_69, %c0_70] : memref<5x224x64xf32, #tpu.memory_space<vmem>>, vector<1x224x64xf32>
    %118 = vector.shape_cast %117 : vector<1x224x64xf32> to vector<224x64xf32>
    %cst_71 = arith.constant dense<0.000000e+00> : vector<2x64xf32>
    %119 = tpu.matmul %116, %118, %cst_71 {dimension_numbers = #tpu.dot_dimension_numbers<[1], [0], [0], [1], [0, 0, 1, 1], [], []>} : vector<2x224xf32>, vector<224x64xf32>, vector<2x64xf32> -> vector<2x64xf32>
    %120 = arith.addf %115, %119 : vector<2x64xf32>
    %c0_72 = arith.constant 0 : index
    %c0_73 = arith.constant 0 : index
    %121 = vector.load %arg9[%c0_72, %c0_73] : memref<1x64xf32, #tpu.memory_space<vmem>>, vector<1x64xf32>
    %122 = vector.broadcast %121 : vector<1x64xf32> to vector<2x64xf32>
    %123 = arith.mulf %120, %122 : vector<2x64xf32>
    %c0_74 = arith.constant 0 : index
    %c0_75 = arith.constant 0 : index
    %124 = vector.load %arg10[%c0_74, %c0_75] : memref<1x64xf32, #tpu.memory_space<vmem>>, vector<1x64xf32>
    %125 = vector.broadcast %124 : vector<1x64xf32> to vector<2x64xf32>
    %126 = arith.addf %123, %125 : vector<2x64xf32>
    %cst_76 = arith.constant 0.000000e+00 : f32
    %127 = vector.broadcast %cst_76 : f32 to vector<2x64xf32>
    %128 = arith.maximumf %126, %127 : vector<2x64xf32>
    %c0_77 = arith.constant 0 : index
    %c0_78 = arith.constant 0 : index
    %129 = vector.load %arg12[%c0_77, %c0_78] : memref<1x128xf32, #tpu.memory_space<vmem>>, vector<1x128xf32>
    %130 = vector.extract_strided_slice %128 {offsets = [0, 0], sizes = [1, 64], strides = [1, 1]} : vector<2x64xf32> to vector<1x64xf32>
    %c0_79 = arith.constant 0 : index
    %c0_80 = arith.constant 0 : index
    %c0_81 = arith.constant 0 : index
    %131 = vector.load %arg11[%c0_79, %c0_80, %c0_81] : memref<2x64x128xf32, #tpu.memory_space<vmem>>, vector<1x64x128xf32>
    %132 = vector.shape_cast %131 : vector<1x64x128xf32> to vector<64x128xf32>
    %cst_82 = arith.constant dense<0.000000e+00> : vector<1x128xf32>
    %133 = tpu.matmul %130, %132, %cst_82 {dimension_numbers = #tpu.dot_dimension_numbers<[1], [0], [0], [1], [0, 0, 1, 1], [], []>} : vector<1x64xf32>, vector<64x128xf32>, vector<1x128xf32> -> vector<1x128xf32>
    %134 = arith.addf %129, %133 : vector<1x128xf32>
    %135 = vector.extract_strided_slice %128 {offsets = [1, 0], sizes = [1, 64], strides = [1, 1]} : vector<2x64xf32> to vector<1x64xf32>
    %c1_83 = arith.constant 1 : index
    %c0_84 = arith.constant 0 : index
    %c0_85 = arith.constant 0 : index
    %136 = vector.load %arg11[%c1_83, %c0_84, %c0_85] : memref<2x64x128xf32, #tpu.memory_space<vmem>>, vector<1x64x128xf32>
    %137 = vector.shape_cast %136 : vector<1x64x128xf32> to vector<64x128xf32>
    %cst_86 = arith.constant dense<0.000000e+00> : vector<1x128xf32>
    %138 = tpu.matmul %135, %137, %cst_86 {dimension_numbers = #tpu.dot_dimension_numbers<[1], [0], [0], [1], [0, 0, 1, 1], [], []>} : vector<1x64xf32>, vector<64x128xf32>, vector<1x128xf32> -> vector<1x128xf32>
    %139 = arith.addf %134, %138 : vector<1x128xf32>
    %c0_87 = arith.constant 0 : index
    %c0_88 = arith.constant 0 : index
    %c0_89 = arith.constant 0 : index
    %140 = vector.load %arg13[%c0_87, %c0_88, %c0_89] : memref<1x1x128xf32, #tpu.memory_space<vmem>>, vector<1x1x128xf32>
    %141 = vector.shape_cast %140 : vector<1x1x128xf32> to vector<1x128xf32>
    %142 = vector.shape_cast %139 : vector<1x128xf32> to vector<1x1x128xf32>
    tpu.vector_store %arg13[%c0_87, %c0_88, %c0_89], %142 {strides = array<i32>} : memref<1x1x128xf32, #tpu.memory_space<vmem>>, vector<1x1x128xf32>,
    return
  }
  func.func @transform_0(%arg0: i32) -> (i32, i32, i32, i32) {
    %c0_i32 = arith.constant 0 : i32
    %c0_i32_0 = arith.constant 0 : i32
    %c0_i32_1 = arith.constant 0 : i32
    %c0_i32_2 = arith.constant 0 : i32
    return %arg0, %c0_i32, %c0_i32_0, %c0_i32_1 : i32, i32, i32, i32
  }
  func.func @transform_1(%arg0: i32) -> (i32, i32, i32) {
    %c0_i32 = arith.constant 0 : i32
    %c0_i32_0 = arith.constant 0 : i32
    %c0_i32_1 = arith.constant 0 : i32
    %c0_i32_2 = arith.constant 0 : i32
    return %c0_i32, %c0_i32_0, %c0_i32_1 : i32, i32, i32
  }
  func.func @transform_2(%arg0: i32) -> (i32, i32) {
    %c0_i32 = arith.constant 0 : i32
    %c0_i32_0 = arith.constant 0 : i32
    %c0_i32_1 = arith.constant 0 : i32
    return %c0_i32, %c0_i32_0 : i32, i32
  }
  func.func @transform_3(%arg0: i32) -> (i32, i32) {
    %c0_i32 = arith.constant 0 : i32
    %c0_i32_0 = arith.constant 0 : i32
    %c0_i32_1 = arith.constant 0 : i32
    return %c0_i32, %c0_i32_0 : i32, i32
  }
  func.func @transform_4(%arg0: i32) -> (i32, i32, i32) {
    %c0_i32 = arith.constant 0 : i32
    %c0_i32_0 = arith.constant 0 : i32
    %c0_i32_1 = arith.constant 0 : i32
    %c0_i32_2 = arith.constant 0 : i32
    return %c0_i32, %c0_i32_0, %c0_i32_1 : i32, i32, i32
  }
  func.func @transform_5(%arg0: i32) -> (i32, i32) {
    %c0_i32 = arith.constant 0 : i32
    %c0_i32_0 = arith.constant 0 : i32
    %c0_i32_1 = arith.constant 0 : i32
    return %c0_i32, %c0_i32_0 : i32, i32
  }
  func.func @transform_6(%arg0: i32) -> (i32, i32) {
    %c0_i32 = arith.constant 0 : i32
    %c0_i32_0 = arith.constant 0 : i32
    %c0_i32_1 = arith.constant 0 : i32
    return %c0_i32, %c0_i32_0 : i32, i32
  }
  func.func @transform_7(%arg0: i32) -> (i32, i32, i32) {
    %c0_i32 = arith.constant 0 : i32
    %c0_i32_0 = arith.constant 0 : i32
    %c0_i32_1 = arith.constant 0 : i32
    %c0_i32_2 = arith.constant 0 : i32
    return %c0_i32, %c0_i32_0, %c0_i32_1 : i32, i32, i32
  }
  func.func @transform_8(%arg0: i32) -> (i32, i32) {
    %c0_i32 = arith.constant 0 : i32
    %c0_i32_0 = arith.constant 0 : i32
    %c0_i32_1 = arith.constant 0 : i32
    return %c0_i32, %c0_i32_0 : i32, i32
  }
  func.func @transform_9(%arg0: i32) -> (i32, i32) {
    %c0_i32 = arith.constant 0 : i32
    %c0_i32_0 = arith.constant 0 : i32
    %c0_i32_1 = arith.constant 0 : i32
    return %c0_i32, %c0_i32_0 : i32, i32
  }
  func.func @transform_10(%arg0: i32) -> (i32, i32, i32) {
    %c0_i32 = arith.constant 0 : i32
    %c0_i32_0 = arith.constant 0 : i32
    %c0_i32_1 = arith.constant 0 : i32
    %c0_i32_2 = arith.constant 0 : i32
    return %c0_i32, %c0_i32_0, %c0_i32_1 : i32, i32, i32
  }
  func.func @transform_11(%arg0: i32) -> (i32, i32) {
    %c0_i32 = arith.constant 0 : i32
    %c0_i32_0 = arith.constant 0 : i32
    %c0_i32_1 = arith.constant 0 : i32
    return %c0_i32, %c0_i32_0 : i32, i32
  }
  func.func @transform_12(%arg0: i32) -> (i32, i32, i32) {
    %c0_i32 = arith.constant 0 : i32
    %c0_i32_0 = arith.constant 0 : i32
    %c0_i32_1 = arith.constant 0 : i32
    return %arg0, %c0_i32, %c0_i32_0 : i32, i32, i32
  }
}

</mosaic_0001>

<llo_original>
// kernel: dqn_forward.1
$region0: #{dqn_forward.1}
  #allocation0 [shape = 'u32[]', space=smem, size = 0x4, offset = 0x4, fixed_abs, tag = 'smem constant byte address 0x4 - core index']
  #allocation1 [shape = 'u32[72,128]{1,0:T(1,128)}', space=vmem, size = 0x9000, scoped, tag = 'internal scratch']
  %s0 = inlined_call_operand.vmem [shape: f32[2,2,20,120], index: 0, kind: input, shape index: {}]
  %s1 = inlined_call_operand.vmem [shape: f32[5,120,288], index: 1, kind: input, shape index: {}]
  %s2 = inlined_call_operand.vmem [shape: f32[1,288], index: 2, kind: input, shape index: {}]
  %s3 = inlined_call_operand.vmem [shape: f32[1,288], index: 3, kind: input, shape index: {}]
  %s4 = inlined_call_operand.vmem [shape: f32[5,288,224], index: 4, kind: input, shape index: {}]
  %s5 = inlined_call_operand.vmem [shape: f32[1,224], index: 5, kind: input, shape index: {}]
  %s6 = inlined_call_operand.vmem [shape: f32[1,224], index: 6, kind: input, shape index: {}]
  %s7 = inlined_call_operand.vmem [shape: f32[5,224,64], index: 7, kind: input, shape index: {}]
  %s8 = inlined_call_operand.vmem [shape: f32[1,64], index: 8, kind: input, shape index: {}]
  %s9 = inlined_call_operand.vmem [shape: f32[1,64], index: 9, kind: input, shape index: {}]
  %s10 = inlined_call_operand.vmem [shape: f32[2,64,128], index: 10, kind: input, shape index: {}]
  %s11 = inlined_call_operand.vmem [shape: f32[1,128], index: 11, kind: input, shape index: {}]
  %s12 = inlined_call_operand.hbm [shape: f32[2,1,128], index: 12, kind: output, shape index: {}]
  %s13 = sld [smem:[#allocation0]]
  $region81: #{dqn_forward.1} parent=0
    _
  %s15 = ssub.s32 1, %s13
  %s16 = scalar_select 0, %s15, %s13
  $region1: #{dqn_forward.1} parent=0
    #allocation2 [shape = 'u8[1024]{0}', space=vmem, size = 0x400, scoped, tag = 'output window, operand 0']
    #allocation3 [shape = 's32[2]{0}', space=sflag, size = 0x8, scoped, tag = 'scoped memory for dqn_forward.1']
    %17 = vsyncpa [#allocation3], 0
    %s18 = scalar_lea.sflag [#allocation3], 1
    %19 = vsyncpa %s18, 0
    loop: start=0, step=1, limit=4
    $region2: #{dqn_forward.1} parent=1 // loop_pre_header
      _
    $region3: #{dqn_forward.1} parent=1 // loop_header
      %s21 = sphi 0, %s25
      %p22 = scmp.ge.s32.totalorder %s21, 4
      %s31 = sphi 0, %s33
      %s34 = sphi 0, %s31
      %s35 = sphi 0, %s34
      %s51 = sphi 0, %s35
      %s55 = sphi 0, %s55
      %s57 = sphi 0, %s55
      %s58 = sphi 0, %s57
      %s72 = sphi 0, %s58
      %s76 = sphi 0, %s76
      %s78 = sphi 0, %s76
      %s79 = sphi 0, %s78
      %s93 = sphi 0, %s79
      %s97 = sphi 0, %s97
      %s99 = sphi 0, %s97
      %s100 = sphi 0, %s99
      %s114 = sphi 0, %s100
      %s118 = sphi 0, %s118
      %s120 = sphi 0, %s118
      %s121 = sphi 0, %s120
      %s135 = sphi 0, %s121
      %s139 = sphi 0, %s139
      %s141 = sphi 0, %s139
      %s142 = sphi 0, %s141
      %s156 = sphi 0, %s142
      %s160 = sphi 0, %s160
      %s162 = sphi 0, %s160
      %s163 = sphi 0, %s162
      %s177 = sphi 0, %s163
      %s181 = sphi 0, %s181
      %s183 = sphi 0, %s181
      %s184 = sphi 0, %s183
      %s198 = sphi 0, %s184
      %s202 = sphi 0, %s202
      %s204 = sphi 0, %s202
      %s205 = sphi 0, %s204
      %s219 = sphi 0, %s205
      %s223 = sphi 0, %s223
      %s225 = sphi 0, %s223
      %s226 = sphi 0, %s225
      %s240 = sphi 0, %s226
      %s244 = sphi 0, %s244
      %s246 = sphi 0, %s244
      %s247 = sphi 0, %s246
      %s261 = sphi 0, %s247
      %s265 = sphi 0, %s265
      %s267 = sphi 0, %s265
      %s268 = sphi 0, %s267
      %s282 = sphi 0, %s268
      %s288 = sphi 0, %s290
      %s291 = sphi 0, %s288
      %s292 = sphi 0, %s291
      %s308 = sphi 0, %s292
    $region4: #{dqn_forward.1} parent=1 // loop_header_branch
      %24 = sbr.rel (%p22) target = $region8
    $region5: #{dqn_forward.1} parent=1 // loop_body
      %s26 = ssub.s32 %s21, 1
      %s27 = ssub.s32 %s21, 2
      %s28 = sadd.s32 %s21, 1
      %s29 = ssub.s32 %s21, %s28
      %p30 = scmp.eq.s32.totalorder %s29, 0
      %s32 = sadd.s32 %s31, 1
      %s33 = scalar_select %p30, %s31, %s32
      %p36 = pneg %p30
      %p37 = scmp.eq.s32.totalorder %s21, 1
      %p38 = por %p36, %p37
      %p39 = scmp.ne.s32.totalorder %s31, %s34
      %p40 = scmp.eq.s32.totalorder %s21, 0
      %p41 = por %p39, %p40
      %p42 = scmp.ne.s32.totalorder %s31, %s34
      %p43 = scmp.eq.s32.totalorder %s26, 1
      %p44 = por %p42, %p43
      %p45 = scmp.ne.s32.totalorder %s34, %s35
      %p46 = scmp.eq.s32.totalorder %s26, 0
      %p47 = por %p45, %p46
      %p48 = scmp.ne.s32.totalorder %s34, %s35
      %p49 = scmp.eq.s32.totalorder %s27, 1
      %p50 = por %p48, %p49
      %p52 = scmp.ne.s32.totalorder %s35, %s51
      %p53 = scmp.eq.s32.totalorder %s27, 0
      %p54 = por %p52, %p53
      %s56 = sadd.s32 %s55, 1
      %p59 = scmp.eq.s32.totalorder %s21, 1
      %p60 = scmp.ne.s32.totalorder %s55, %s57
      %p61 = scmp.eq.s32.totalorder %s21, 0
      %p62 = por %p60, %p61
      %p63 = scmp.ne.s32.totalorder %s55, %s57
      %p64 = scmp.eq.s32.totalorder %s26, 1
      %p65 = por %p63, %p64
      %p66 = scmp.ne.s32.totalorder %s57, %s58
      %p67 = scmp.eq.s32.totalorder %s26, 0
      %p68 = por %p66, %p67
      %p69 = scmp.ne.s32.totalorder %s57, %s58
      %p70 = scmp.eq.s32.totalorder %s27, 1
      %p71 = por %p69, %p70
      %p73 = scmp.ne.s32.totalorder %s58, %s72
      %p74 = scmp.eq.s32.totalorder %s27, 0
      %p75 = por %p73, %p74
      %s77 = sadd.s32 %s76, 1
      %p80 = scmp.eq.s32.totalorder %s21, 1
      %p81 = scmp.ne.s32.totalorder %s76, %s78
      %p82 = scmp.eq.s32.totalorder %s21, 0
      %p83 = por %p81, %p82
      %p84 = scmp.ne.s32.totalorder %s76, %s78
      %p85 = scmp.eq.s32.totalorder %s26, 1
      %p86 = por %p84, %p85
      %p87 = scmp.ne.s32.totalorder %s78, %s79
      %p88 = scmp.eq.s32.totalorder %s26, 0
      %p89 = por %p87, %p88
      %p90 = scmp.ne.s32.totalorder %s78, %s79
      %p91 = scmp.eq.s32.totalorder %s27, 1
      %p92 = por %p90, %p91
      %p94 = scmp.ne.s32.totalorder %s79, %s93
      %p95 = scmp.eq.s32.totalorder %s27, 0
      %p96 = por %p94, %p95
      %s98 = sadd.s32 %s97, 1
      %p101 = scmp.eq.s32.totalorder %s21, 1
      %p102 = scmp.ne.s32.totalorder %s97, %s99
      %p103 = scmp.eq.s32.totalorder %s21, 0
      %p104 = por %p102, %p103
      %p105 = scmp.ne.s32.totalorder %s97, %s99
      %p106 = scmp.eq.s32.totalorder %s26, 1
      %p107 = por %p105, %p106
      %p108 = scmp.ne.s32.totalorder %s99, %s100
      %p109 = scmp.eq.s32.totalorder %s26, 0
      %p110 = por %p108, %p109
      %p111 = scmp.ne.s32.totalorder %s99, %s100
      %p112 = scmp.eq.s32.totalorder %s27, 1
      %p113 = por %p111, %p112
      %p115 = scmp.ne.s32.totalorder %s100, %s114
      %p116 = scmp.eq.s32.totalorder %s27, 0
      %p117 = por %p115, %p116
      %s119 = sadd.s32 %s118, 1
      %p122 = scmp.eq.s32.totalorder %s21, 1
      %p123 = scmp.ne.s32.totalorder %s118, %s120
      %p124 = scmp.eq.s32.totalorder %s21, 0
      %p125 = por %p123, %p124
      %p126 = scmp.ne.s32.totalorder %s118, %s120
      %p127 = scmp.eq.s32.totalorder %s26, 1
      %p128 = por %p126, %p127
      %p129 = scmp.ne.s32.totalorder %s120, %s121
      %p130 = scmp.eq.s32.totalorder %s26, 0
      %p131 = por %p129, %p130
      %p132 = scmp.ne.s32.totalorder %s120, %s121
      %p133 = scmp.eq.s32.totalorder %s27, 1
      %p134 = por %p132, %p133
      %p136 = scmp.ne.s32.totalorder %s121, %s135
      %p137 = scmp.eq.s32.totalorder %s27, 0
      %p138 = por %p136, %p137
      %s140 = sadd.s32 %s139, 1
      %p143 = scmp.eq.s32.totalorder %s21, 1
      %p144 = scmp.ne.s32.totalorder %s139, %s141
      %p145 = scmp.eq.s32.totalorder %s21, 0
      %p146 = por %p144, %p145
      %p147 = scmp.ne.s32.totalorder %s139, %s141
      %p148 = scmp.eq.s32.totalorder %s26, 1
      %p149 = por %p147, %p148
      %p150 = scmp.ne.s32.totalorder %s141, %s142
      %p151 = scmp.eq.s32.totalorder %s26, 0
      %p152 = por %p150, %p151
      %p153 = scmp.ne.s32.totalorder %s141, %s142
      %p154 = scmp.eq.s32.totalorder %s27, 1
      %p155 = por %p153, %p154
      %p157 = scmp.ne.s32.totalorder %s142, %s156
      %p158 = scmp.eq.s32.totalorder %s27, 0
      %p159 = por %p157, %p158
      %s161 = sadd.s32 %s160, 1
      %p164 = scmp.eq.s32.totalorder %s21, 1
      %p165 = scmp.ne.s32.totalorder %s160, %s162
      %p166 = scmp.eq.s32.totalorder %s21, 0
      %p167 = por %p165, %p166
      %p168 = scmp.ne.s32.totalorder %s160, %s162
      %p169 = scmp.eq.s32.totalorder %s26, 1
      %p170 = por %p168, %p169
      %p171 = scmp.ne.s32.totalorder %s162, %s163
      %p172 = scmp.eq.s32.totalorder %s26, 0
      %p173 = por %p171, %p172
      %p174 = scmp.ne.s32.totalorder %s162, %s163
      %p175 = scmp.eq.s32.totalorder %s27, 1
      %p176 = por %p174, %p175
      %p178 = scmp.ne.s32.totalorder %s163, %s177
      %p179 = scmp.eq.s32.totalorder %s27, 0
      %p180 = por %p178, %p179
      %s182 = sadd.s32 %s181, 1
      %p185 = scmp.eq.s32.totalorder %s21, 1
      %p186 = scmp.ne.s32.totalorder %s181, %s183
      %p187 = scmp.eq.s32.totalorder %s21, 0
      %p188 = por %p186, %p187
      %p189 = scmp.ne.s32.totalorder %s181, %s183
      %p190 = scmp.eq.s32.totalorder %s26, 1
      %p191 = por %p189, %p190
      %p192 = scmp.ne.s32.totalorder %s183, %s184
      %p193 = scmp.eq.s32.totalorder %s26, 0
      %p194 = por %p192, %p193
      %p195 = scmp.ne.s32.totalorder %s183, %s184
      %p196 = scmp.eq.s32.totalorder %s27, 1
      %p197 = por %p195, %p196
      %p199 = scmp.ne.s32.totalorder %s184, %s198
      %p200 = scmp.eq.s32.totalorder %s27, 0
      %p201 = por %p199, %p200
      %s203 = sadd.s32 %s202, 1
      %p206 = scmp.eq.s32.totalorder %s21, 1
      %p207 = scmp.ne.s32.totalorder %s202, %s204
      %p208 = scmp.eq.s32.totalorder %s21, 0
      %p209 = por %p207, %p208
      %p210 = scmp.ne.s32.totalorder %s202, %s204
      %p211 = scmp.eq.s32.totalorder %s26, 1
      %p212 = por %p210, %p211
      %p213 = scmp.ne.s32.totalorder %s204, %s205
      %p214 = scmp.eq.s32.totalorder %s26, 0
      %p215 = por %p213, %p214
      %p216 = scmp.ne.s32.totalorder %s204, %s205
      %p217 = scmp.eq.s32.totalorder %s27, 1
      %p218 = por %p216, %p217
      %p220 = scmp.ne.s32.totalorder %s205, %s219
      %p221 = scmp.eq.s32.totalorder %s27, 0
      %p222 = por %p220, %p221
      %s224 = sadd.s32 %s223, 1
      %p227 = scmp.eq.s32.totalorder %s21, 1
      %p228 = scmp.ne.s32.totalorder %s223, %s225
      %p229 = scmp.eq.s32.totalorder %s21, 0
      %p230 = por %p228, %p229
      %p231 = scmp.ne.s32.totalorder %s223, %s225
      %p232 = scmp.eq.s32.totalorder %s26, 1
      %p233 = por %p231, %p232
      %p234 = scmp.ne.s32.totalorder %s225, %s226
      %p235 = scmp.eq.s32.totalorder %s26, 0
      %p236 = por %p234, %p235
      %p237 = scmp.ne.s32.totalorder %s225, %s226
      %p238 = scmp.eq.s32.totalorder %s27, 1
      %p239 = por %p237, %p238
      %p241 = scmp.ne.s32.totalorder %s226, %s240
      %p242 = scmp.eq.s32.totalorder %s27, 0
      %p243 = por %p241, %p242
      %s245 = sadd.s32 %s244, 1
      %p248 = scmp.eq.s32.totalorder %s21, 1
      %p249 = scmp.ne.s32.totalorder %s244, %s246
      %p250 = scmp.eq.s32.totalorder %s21, 0
      %p251 = por %p249, %p250
      %p252 = scmp.ne.s32.totalorder %s244, %s246
      %p253 = scmp.eq.s32.totalorder %s26, 1
      %p254 = por %p252, %p253
      %p255 = scmp.ne.s32.totalorder %s246, %s247
      %p256 = scmp.eq.s32.totalorder %s26, 0
      %p257 = por %p255, %p256
      %p258 = scmp.ne.s32.totalorder %s246, %s247
      %p259 = scmp.eq.s32.totalorder %s27, 1
      %p260 = por %p258, %p259
      %p262 = scmp.ne.s32.totalorder %s247, %s261
      %p263 = scmp.eq.s32.totalorder %s27, 0
      %p264 = por %p262, %p263
      %s266 = sadd.s32 %s265, 1
      %p269 = scmp.eq.s32.totalorder %s21, 1
      %p270 = scmp.ne.s32.totalorder %s265, %s267
      %p271 = scmp.eq.s32.totalorder %s21, 0
      %p272 = por %p270, %p271
      %p273 = scmp.ne.s32.totalorder %s265, %s267
      %p274 = scmp.eq.s32.totalorder %s26, 1
      %p275 = por %p273, %p274
      %p276 = scmp.ne.s32.totalorder %s267, %s268
      %p277 = scmp.eq.s32.totalorder %s26, 0
      %p278 = por %p276, %p277
      %p279 = scmp.ne.s32.totalorder %s267, %s268
      %p280 = scmp.eq.s32.totalorder %s27, 1
      %p281 = por %p279, %p280
      %p283 = scmp.ne.s32.totalorder %s268, %s282
      %p284 = scmp.eq.s32.totalorder %s27, 0
      %p285 = por %p283, %p284
      %s286 = ssub.s32 %s21, %s28
      %p287 = scmp.eq.s32.totalorder %s286, 0
      %s289 = sadd.s32 %s288, 1
      %s290 = scalar_select %p287, %s288, %s289
      %p293 = pneg %p287
      %p294 = scmp.eq.s32.totalorder %s21, 1
      %p295 = por %p293, %p294
      %p296 = scmp.ne.s32.totalorder %s288, %s291
      %p297 = scmp.eq.s32.totalorder %s21, 0
      %p298 = por %p296, %p297
      %p299 = scmp.ne.s32.totalorder %s288, %s291
      %p300 = scmp.eq.s32.totalorder %s26, 1
      %p301 = por %p299, %p300
      %p302 = scmp.ne.s32.totalorder %s291, %s292
      %p303 = scmp.eq.s32.totalorder %s26, 0
      %p304 = por %p302, %p303
      %p305 = scmp.ne.s32.totalorder %s291, %s292
      %p306 = scmp.eq.s32.totalorder %s27, 1
      %p307 = por %p305, %p306
      %p309 = scmp.ne.s32.totalorder %s292, %s308
      %p310 = scmp.eq.s32.totalorder %s27, 0
      %p311 = por %p309, %p310
      %p312 = scmp.le.s32.totalorder 1, %s21
      %p313 = scmp.lt.s32.totalorder %s21, 3
      %p314 = pnand %p312, %p313
      %p315 = pneg %p314
      // Predicated region
      $region9: #{dqn_forward.1} parent=5 // pred_check
        _
      $region10: #{dqn_forward.1} parent=5 // pred_check_branch
        %317 = sbr.rel (%p314) target = $region12
      $region11: #{dqn_forward.1} parent=5 // pred_region
        %s318 = ssub.s32 %s21, 1
        // Predicated region
        $region13: #{dqn_forward.1} parent=11 // pred_check
          %p319 = pneg %p68
        $region14: #{dqn_forward.1} parent=11 // pred_check_branch
          %321 = sbr.rel (%p319) target = $region16
        $region15: #{dqn_forward.1} parent=11 // pred_region
          _
        $region16: #{dqn_forward.1} parent=11 // pred_fallthru
          _
        // Predicated region
        $region17: #{dqn_forward.1} parent=11 // pred_check
          %p322 = pneg %p89
        $region18: #{dqn_forward.1} parent=11 // pred_check_branch
          %324 = sbr.rel (%p322) target = $region20
        $region19: #{dqn_forward.1} parent=11 // pred_region
          _
        $region20: #{dqn_forward.1} parent=11 // pred_fallthru
          _
        // Predicated region
        $region21: #{dqn_forward.1} parent=11 // pred_check
          %p325 = pneg %p110
        $region22: #{dqn_forward.1} parent=11 // pred_check_branch
          %327 = sbr.rel (%p325) target = $region24
        $region23: #{dqn_forward.1} parent=11 // pred_region
          _
        $region24: #{dqn_forward.1} parent=11 // pred_fallthru
          _
        // Predicated region
        $region25: #{dqn_forward.1} parent=11 // pred_check
          %p328 = pneg %p131
        $region26: #{dqn_forward.1} parent=11 // pred_check_branch
          %330 = sbr.rel (%p328) target = $region28
        $region27: #{dqn_forward.1} parent=11 // pred_region
          _
        $region28: #{dqn_forward.1} parent=11 // pred_fallthru
          _
        // Predicated region
        $region29: #{dqn_forward.1} parent=11 // pred_check
          %p331 = pneg %p152
        $region30: #{dqn_forward.1} parent=11 // pred_check_branch
          %333 = sbr.rel (%p331) target = $region32
        $region31: #{dqn_forward.1} parent=11 // pred_region
          _
        $region32: #{dqn_forward.1} parent=11 // pred_fallthru
          _
        // Predicated region
        $region33: #{dqn_forward.1} parent=11 // pred_check
          %p334 = pneg %p173
        $region34: #{dqn_forward.1} parent=11 // pred_check_branch
          %336 = sbr.rel (%p334) target = $region36
        $region35: #{dqn_forward.1} parent=11 // pred_region
          _
        $region36: #{dqn_forward.1} parent=11 // pred_fallthru
          _
        // Predicated region
        $region37: #{dqn_forward.1} parent=11 // pred_check
          %p337 = pneg %p194
        $region38: #{dqn_forward.1} parent=11 // pred_check_branch
          %339 = sbr.rel (%p337) target = $region40
        $region39: #{dqn_forward.1} parent=11 // pred_region
          _
        $region40: #{dqn_forward.1} parent=11 // pred_fallthru
          _
        // Predicated region
        $region41: #{dqn_forward.1} parent=11 // pred_check
          %p340 = pneg %p215
        $region42: #{dqn_forward.1} parent=11 // pred_check_branch
          %342 = sbr.rel (%p340) target = $region44
        $region43: #{dqn_forward.1} parent=11 // pred_region
          _
        $region44: #{dqn_forward.1} parent=11 // pred_fallthru
          _
        // Predicated region
        $region45: #{dqn_forward.1} parent=11 // pred_check
          %p343 = pneg %p236
        $region46: #{dqn_forward.1} parent=11 // pred_check_branch
          %345 = sbr.rel (%p343) target = $region48
        $region47: #{dqn_forward.1} parent=11 // pred_region
          _
        $region48: #{dqn_forward.1} parent=11 // pred_fallthru
          _
        // Predicated region
        $region49: #{dqn_forward.1} parent=11 // pred_check
          %p346 = pneg %p257
        $region50: #{dqn_forward.1} parent=11 // pred_check_branch
          %348 = sbr.rel (%p346) target = $region52
        $region51: #{dqn_forward.1} parent=11 // pred_region
          _
        $region52: #{dqn_forward.1} parent=11 // pred_fallthru
          _
        // Predicated region
        $region53: #{dqn_forward.1} parent=11 // pred_check
          %p349 = pneg %p278
        $region54: #{dqn_forward.1} parent=11 // pred_check_branch
          %351 = sbr.rel (%p349) target = $region56
        $region55: #{dqn_forward.1} parent=11 // pred_region
          _
        $region56: #{dqn_forward.1} parent=11 // pred_fallthru
          _
      $region12: #{dqn_forward.1} parent=5 // pred_fallthru
        _
      %p352 = scmp.lt.s32.totalorder %s21, 2
      // Predicated region
      $region57: #{dqn_forward.1} parent=5 // pred_check
        %p353 = pneg %p352
      $region58: #{dqn_forward.1} parent=5 // pred_check_branch
        %355 = sbr.rel (%p353) target = $region60
      $region59: #{dqn_forward.1} parent=5 // pred_region
        // Predicated region
        $region61: #{dqn_forward.1} parent=59 // pred_check
          %p356 = pneg %p41
        $region62: #{dqn_forward.1} parent=59 // pred_check_branch
          %358 = sbr.rel (%p356) target = $region64
        $region63: #{dqn_forward.1} parent=59 // pred_region
          %p359 = scmp.lt.s32.totalorder %s21, 1
          %s360 = scalar_select %p359, %s21, 1
          %s361 = smul.addr %s360, 6
          %s362 = smul.addr %s361, 8
          %s363 = scalar_lea.vmem %s0, %s362
        $region64: #{dqn_forward.1} parent=59 // pred_fallthru
          _
      $region60: #{dqn_forward.1} parent=5 // pred_fallthru
        _
      %p364 = scmp.le.s32.totalorder 1, %s21
      %p365 = scmp.lt.s32.totalorder %s21, 3
      %p366 = pnand %p364, %p365
      %p367 = pneg %p366
      // Predicated region
      $region65: #{dqn_forward.1} parent=5 // pred_check
        _
      $region66: #{dqn_forward.1} parent=5 // pred_check_branch
        %369 = sbr.rel (%p366) target = $region68
      $region67: #{dqn_forward.1} parent=5 // pred_region
        %s370 = ssub.s32 %s21, 1
        %p371 = scmp.lt.s32.totalorder %s26, 1
        %s372 = scalar_select %p371, %s26, 1
        %s373 = smul.addr %s372, 6
        %s374 = smul.addr %s373, 8
        %s375 = scalar_lea.vmem %s0, %s374
        %p376 = pneg %p47
        %p377 = pneg %p44
        %p378 = pneg %p68
        %p379 = pneg %p65
        %p380 = pneg %p89
        %p381 = pneg %p86
        %p382 = pneg %p110
        %p383 = pneg %p107
        %p384 = pneg %p131
        %p385 = pneg %p128
        %p386 = pneg %p152
        %p387 = pneg %p149
        %p388 = pneg %p173
        %p389 = pneg %p170
        %p390 = pneg %p194
        %p391 = pneg %p191
        %p392 = pneg %p215
        %p393 = pneg %p212
        %p394 = pneg %p236
        %p395 = pneg %p233
        %p396 = pneg %p257
        %p397 = pneg %p254
        %p398 = pneg %p278
        %p399 = pneg %p275
        %p400 = pneg %p304
        %p401 = pneg %p301
        %s402 = sand.u32 %s291, 1
        %s403 = scalar_lea.sflag [#allocation3], %s402
        %s404 = sand.u32 %s291, 1
        %s405 = scalar_lea.vmem [#allocation2], %s404
        %p406 = scmp.lt.s32.totalorder %s26, 1
        %s407 = scalar_select %p406, %s26, 1
        %s408 = smul.addr %s407, 6
        %s409 = smul.addr %s408, 8
        %s410 = scalar_lea.vmem %s0, %s409
        %v411 = vld [vmem:[%s410] sm:$0xff]
        %v412 = vld [vmem:[%s410 + $0x8] sm:$0xff]
        %v413 = vld [vmem:[%s410 + $0x10] sm:$0xf]
        %s414 = scalar_lea.vmem %s410, 24
        %v415 = vld [vmem:[%s414] sm:$0xff]
        %v416 = vld [vmem:[%s414 + $0x8] sm:$0xff]
        %v417 = vld [vmem:[%s414 + $0x10] sm:$0xf]
        %v418 = vld [vmem:[%s1] sm:$0xff]
        %v419 = vld [vmem:[%s1 + $0x8] sm:$0xff]
        %v420 = vld [vmem:[%s1 + $0x10] sm:$0xff]
        %v421 = vld [vmem:[%s1 + $0x18] sm:$0xff]
        %v422 = vld [vmem:[%s1 + $0x20] sm:$0xff]
        %v423 = vld [vmem:[%s1 + $0x28] sm:$0xff]
        %v424 = vld [vmem:[%s1 + $0x30] sm:$0xff]
        %v425 = vld [vmem:[%s1 + $0x38] sm:$0xff]
        %v426 = vld [vmem:[%s1 + $0x40] sm:$0xff]
        %v427 = vld [vmem:[%s1 + $0x48] sm:$0xff]
        %v428 = vld [vmem:[%s1 + $0x50] sm:$0xff]
        %v429 = vld [vmem:[%s1 + $0x58] sm:$0xff]
        %v430 = vld [vmem:[%s1 + $0x60] sm:$0xff]
        %v431 = vld [vmem:[%s1 + $0x68] sm:$0xff]
        %v432 = vld [vmem:[%s1 + $0x70] sm:$0xff]
        %v433 = vld [vmem:[%s1 + $0x78] sm:$0xff]
        %v434 = vld [vmem:[%s1 + $0x80] sm:$0xff]
        %v435 = vld [vmem:[%s1 + $0x88] sm:$0xff]
        %v436 = vld [vmem:[%s1 + $0x90] sm:$0xff]
        %v437 = vld [vmem:[%s1 + $0x98] sm:$0xff]
        %v438 = vld [vmem:[%s1 + $0xa0] sm:$0xff]
        %v439 = vld [vmem:[%s1 + $0xa8] sm:$0xff]
        %v440 = vld [vmem:[%s1 + $0xb0] sm:$0xff]
        %v441 = vld [vmem:[%s1 + $0xb8] sm:$0xff]
        %v442 = vld [vmem:[%s1 + $0xc0] sm:$0xff]
        %v443 = vld [vmem:[%s1 + $0xc8] sm:$0xff]
        %v444 = vld [vmem:[%s1 + $0xd0] sm:$0xff]
        %v445 = vld [vmem:[%s1 + $0xd8] sm:$0xff]
        %v446 = vld [vmem:[%s1 + $0xe0] sm:$0xff]
        %v447 = vld [vmem:[%s1 + $0xe8] sm:$0xff]
        %v448 = vld [vmem:[%s1 + $0xf0] sm:$0xff]
        %v449 = vld [vmem:[%s1 + $0xf8] sm:$0xff]
        %v450 = vld [vmem:[%s1 + $0x100] sm:$0xff]
        %v451 = vld [vmem:[%s1 + $0x108] sm:$0xff]
        %v452 = vld [vmem:[%s1 + $0x110] sm:$0xff]
        %v453 = vld [vmem:[%s1 + $0x118] sm:$0xff]
        %v454 = vld [vmem:[%s1 + $0x120] sm:$0xff]
        %v455 = vld [vmem:[%s1 + $0x128] sm:$0xff]
        %v456 = vld [vmem:[%s1 + $0x130] sm:$0xff]
        %v457 = vld [vmem:[%s1 + $0x138] sm:$0xff]
        %v458 = vld [vmem:[%s1 + $0x140] sm:$0xff]
        %v459 = vld [vmem:[%s1 + $0x148] sm:$0xff]
        %v460 = vld [vmem:[%s1 + $0x150] sm:$0xff]
        %v461 = vld [vmem:[%s1 + $0x158] sm:$0xff]
        %v462 = vld [vmem:[%s1 + $0x160] sm:$0xff]
        %s463 = scalar_lea.vmem %s1, 360
        %v464 = vld [vmem:[%s463] sm:$0xff]
        %v465 = vld [vmem:[%s463 + $0x8] sm:$0xff]
        %v466 = vld [vmem:[%s463 + $0x10] sm:$0xff]
        %v467 = vld [vmem:[%s463 + $0x18] sm:$0xff]
        %v468 = vld [vmem:[%s463 + $0x20] sm:$0xff]
        %v469 = vld [vmem:[%s463 + $0x28] sm:$0xff]
        %v470 = vld [vmem:[%s463 + $0x30] sm:$0xff]
        %v471 = vld [vmem:[%s463 + $0x38] sm:$0xff]
        %v472 = vld [vmem:[%s463 + $0x40] sm:$0xff]
        %v473 = vld [vmem:[%s463 + $0x48] sm:$0xff]
        %v474 = vld [vmem:[%s463 + $0x50] sm:$0xff]
        %v475 = vld [vmem:[%s463 + $0x58] sm:$0xff]
        %v476 = vld [vmem:[%s463 + $0x60] sm:$0xff]
        %v477 = vld [vmem:[%s463 + $0x68] sm:$0xff]
        %v478 = vld [vmem:[%s463 + $0x70] sm:$0xff]
        %v479 = vld [vmem:[%s463 + $0x78] sm:$0xff]
        %v480 = vld [vmem:[%s463 + $0x80] sm:$0xff]
        %v481 = vld [vmem:[%s463 + $0x88] sm:$0xff]
        %v482 = vld [vmem:[%s463 + $0x90] sm:$0xff]
        %v483 = vld [vmem:[%s463 + $0x98] sm:$0xff]
        %v484 = vld [vmem:[%s463 + $0xa0] sm:$0xff]
        %v485 = vld [vmem:[%s463 + $0xa8] sm:$0xff]
        %v486 = vld [vmem:[%s463 + $0xb0] sm:$0xff]
        %v487 = vld [vmem:[%s463 + $0xb8] sm:$0xff]
        %v488 = vld [vmem:[%s463 + $0xc0] sm:$0xff]
        %v489 = vld [vmem:[%s463 + $0xc8] sm:$0xff]
        %v490 = vld [vmem:[%s463 + $0xd0] sm:$0xff]
        %v491 = vld [vmem:[%s463 + $0xd8] sm:$0xff]
        %v492 = vld [vmem:[%s463 + $0xe0] sm:$0xff]
        %v493 = vld [vmem:[%s463 + $0xe8] sm:$0xff]
        %v494 = vld [vmem:[%s463 + $0xf0] sm:$0xff]
        %v495 = vld [vmem:[%s463 + $0xf8] sm:$0xff]
        %v496 = vld [vmem:[%s463 + $0x100] sm:$0xff]
        %v497 = vld [vmem:[%s463 + $0x108] sm:$0xff]
        %v498 = vld [vmem:[%s463 + $0x110] sm:$0xff]
        %v499 = vld [vmem:[%s463 + $0x118] sm:$0xff]
        %v500 = vld [vmem:[%s463 + $0x120] sm:$0xff]
        %v501 = vld [vmem:[%s463 + $0x128] sm:$0xff]
        %v502 = vld [vmem:[%s463 + $0x130] sm:$0xff]
        %v503 = vld [vmem:[%s463 + $0x138] sm:$0xff]
        %v504 = vld [vmem:[%s463 + $0x140] sm:$0xff]
        %v505 = vld [vmem:[%s463 + $0x148] sm:$0xff]
        %v506 = vld [vmem:[%s463 + $0x150] sm:$0xff]
        %v507 = vld [vmem:[%s463 + $0x158] sm:$0xff]
        %v508 = vld [vmem:[%s463 + $0x160] sm:$0xff]
        %vm509 = vcmask 982016
        %v511 = vsel %vm509, %v415, 0
        %v514 = vsel %vm509, %v416, 0
        %v517 = vsel %vm509, %v417, 0
        %519 = vmatpush.msra.mxu0 0.0
        %520 = vmatpush.msra.mxu0 %v506
        %521 = vmatpush.msra.mxu0 %v503
        %522 = vmatpush.msra.mxu0 %v500
        %523 = vmatpush.msra.mxu0 %v497
        %524 = vmatpush.msra.mxu0 %v494
        %525 = vmatpush.msra.mxu0 %v491
        %526 = vmatpush.msra.mxu0 %v488
        %527 = vmatpush.msra.mxu0 %v485
        %528 = vmatpush.msra.mxu0 %v482
        %529 = vmatpush.msra.mxu0 %v479
        %530 = vmatpush.msra.mxu0 %v476
        %531 = vmatpush.msra.mxu0 %v473
        %532 = vmatpush.msra.mxu0 %v470
        %533 = vmatpush.msra.mxu0 %v467
        %534 = vmatpush.msra.mxu0 %v464
        %535 = vmatmul.f32.gmra.mxu0 %v511
        %v536 = vpop.f32.mrf.mxu0
        %v537 = vadd.f32 0.0, %v536
        %538 = vmatmul.f32.gmra.mxu0 %v514
        %v539 = vpop.f32.mrf.mxu0
        %v540 = vadd.f32 0.0, %v539
        %541 = vmatmul.f32.gmra.mxu0 %v517
        %v542 = vpop.f32.mrf.mxu0
        %v543 = vadd.f32 0.0, %v542
        %544 = vdwg.mxu0
        %545 = vmatpush.msra.mxu0 0.0
        %546 = vmatpush.msra.mxu0 %v507
        %547 = vmatpush.msra.mxu0 %v504
        %548 = vmatpush.msra.mxu0 %v501
        %549 = vmatpush.msra.mxu0 %v498
        %550 = vmatpush.msra.mxu0 %v495
        %551 = vmatpush.msra.mxu0 %v492
        %552 = vmatpush.msra.mxu0 %v489
        %553 = vmatpush.msra.mxu0 %v486
        %554 = vmatpush.msra.mxu0 %v483
        %555 = vmatpush.msra.mxu0 %v480
        %556 = vmatpush.msra.mxu0 %v477
        %557 = vmatpush.msra.mxu0 %v474
        %558 = vmatpush.msra.mxu0 %v471
        %559 = vmatpush.msra.mxu0 %v468
        %560 = vmatpush.msra.mxu0 %v465
        %561 = vmatmul.f32.gmra.mxu0 %v511
        %v562 = vpop.f32.mrf.mxu0
        %v563 = vadd.f32 0.0, %v562
        %564 = vmatmul.f32.gmra.mxu0 %v514
        %v565 = vpop.f32.mrf.mxu0
        %v566 = vadd.f32 0.0, %v565
        %567 = vmatmul.f32.gmra.mxu0 %v517
        %v568 = vpop.f32.mrf.mxu0
        %v569 = vadd.f32 0.0, %v568
        %570 = vdwg.mxu0
        %571 = vmatpush.msra.mxu0 0.0
        %572 = vmatpush.msra.mxu0 %v508
        %573 = vmatpush.msra.mxu0 %v505
        %574 = vmatpush.msra.mxu0 %v502
        %575 = vmatpush.msra.mxu0 %v499
        %576 = vmatpush.msra.mxu0 %v496
        %577 = vmatpush.msra.mxu0 %v493
        %578 = vmatpush.msra.mxu0 %v490
        %579 = vmatpush.msra.mxu0 %v487
        %580 = vmatpush.msra.mxu0 %v484
        %581 = vmatpush.msra.mxu0 %v481
        %582 = vmatpush.msra.mxu0 %v478
        %583 = vmatpush.msra.mxu0 %v475
        %584 = vmatpush.msra.mxu0 %v472
        %585 = vmatpush.msra.mxu0 %v469
        %586 = vmatpush.msra.mxu0 %v466
        %587 = vmatmul.f32.gmra.mxu0 %v511
        %v588 = vpop.f32.mrf.mxu0
        %v589 = vadd.f32 0.0, %v588
        %590 = vmatmul.f32.gmra.mxu0 %v514
        %v591 = vpop.f32.mrf.mxu0
        %v592 = vadd.f32 0.0, %v591
        %593 = vmatmul.f32.gmra.mxu0 %v517
        %v594 = vpop.f32.mrf.mxu0
        %v595 = vadd.f32 0.0, %v594
        %596 = vdwg.mxu0
        %v598 = vsel %vm509, %v411, 0
        %v601 = vsel %vm509, %v412, 0
        %v604 = vsel %vm509, %v413, 0
        %606 = vmatpush.msra.mxu0 0.0
        %607 = vmatpush.msra.mxu0 %v460
        %608 = vmatpush.msra.mxu0 %v457
        %609 = vmatpush.msra.mxu0 %v454
        %610 = vmatpush.msra.mxu0 %v451
        %611 = vmatpush.msra.mxu0 %v448
        %612 = vmatpush.msra.mxu0 %v445
        %613 = vmatpush.msra.mxu0 %v442
        %614 = vmatpush.msra.mxu0 %v439
        %615 = vmatpush.msra.mxu0 %v436
        %616 = vmatpush.msra.mxu0 %v433
        %617 = vmatpush.msra.mxu0 %v430
        %618 = vmatpush.msra.mxu0 %v427
        %619 = vmatpush.msra.mxu0 %v424
        %620 = vmatpush.msra.mxu0 %v421
        %621 = vmatpush.msra.mxu0 %v418
        %622 = vmatmul.f32.gmra.mxu0 %v598
        %v623 = vpop.f32.mrf.mxu0
        %v624 = vadd.f32 %v537, %v623
        %625 = vmatmul.f32.gmra.mxu0 %v601
        %v626 = vpop.f32.mrf.mxu0
        %v627 = vadd.f32 %v540, %v626
        %628 = vmatmul.f32.gmra.mxu0 %v604
        %v629 = vpop.f32.mrf.mxu0
        %v630 = vadd.f32 %v543, %v629
        %631 = vdwg.mxu0
        %632 = vmatpush.msra.mxu0 0.0
        %633 = vmatpush.msra.mxu0 %v461
        %634 = vmatpush.msra.mxu0 %v458
        %635 = vmatpush.msra.mxu0 %v455
        %636 = vmatpush.msra.mxu0 %v452
        %637 = vmatpush.msra.mxu0 %v449
        %638 = vmatpush.msra.mxu0 %v446
        %639 = vmatpush.msra.mxu0 %v443
        %640 = vmatpush.msra.mxu0 %v440
        %641 = vmatpush.msra.mxu0 %v437
        %642 = vmatpush.msra.mxu0 %v434
        %643 = vmatpush.msra.mxu0 %v431
        %644 = vmatpush.msra.mxu0 %v428
        %645 = vmatpush.msra.mxu0 %v425
        %646 = vmatpush.msra.mxu0 %v422
        %647 = vmatpush.msra.mxu0 %v419
        %648 = vmatmul.f32.gmra.mxu0 %v598
        %v649 = vpop.f32.mrf.mxu0
        %v650 = vadd.f32 %v563, %v649
        %651 = vmatmul.f32.gmra.mxu0 %v601
        %v652 = vpop.f32.mrf.mxu0
        %v653 = vadd.f32 %v566, %v652
        %654 = vmatmul.f32.gmra.mxu0 %v604
        %v655 = vpop.f32.mrf.mxu0
        %v656 = vadd.f32 %v569, %v655
        %657 = vdwg.mxu0
        %658 = vmatpush.msra.mxu0 0.0
        %659 = vmatpush.msra.mxu0 %v462
        %660 = vmatpush.msra.mxu0 %v459
        %661 = vmatpush.msra.mxu0 %v456
        %662 = vmatpush.msra.mxu0 %v453
        %663 = vmatpush.msra.mxu0 %v450
        %664 = vmatpush.msra.mxu0 %v447
        %665 = vmatpush.msra.mxu0 %v444
        %666 = vmatpush.msra.mxu0 %v441
        %667 = vmatpush.msra.mxu0 %v438
        %668 = vmatpush.msra.mxu0 %v435
        %669 = vmatpush.msra.mxu0 %v432
        %670 = vmatpush.msra.mxu0 %v429
        %671 = vmatpush.msra.mxu0 %v426
        %672 = vmatpush.msra.mxu0 %v423
        %673 = vmatpush.msra.mxu0 %v420
        %674 = vmatmul.f32.gmra.mxu0 %v598
        %v675 = vpop.f32.mrf.mxu0
        %v676 = vadd.f32 %v589, %v675
        %677 = vmatmul.f32.gmra.mxu0 %v601
        %v678 = vpop.f32.mrf.mxu0
        %v679 = vadd.f32 %v592, %v678
        %680 = vmatmul.f32.gmra.mxu0 %v604
        %v681 = vpop.f32.mrf.mxu0
        %v682 = vadd.f32 %v595, %v681
        %683 = vdwg.mxu0
        %s684 = scalar_lea.vmem %s1, 720
        %v685 = vld [vmem:[%s684] sm:$0xff]
        %v686 = vld [vmem:[%s684 + $0x8] sm:$0xff]
        %v687 = vld [vmem:[%s684 + $0x10] sm:$0xff]
        %v688 = vld [vmem:[%s684 + $0x18] sm:$0xff]
        %v689 = vld [vmem:[%s684 + $0x20] sm:$0xff]
        %v690 = vld [vmem:[%s684 + $0x28] sm:$0xff]
        %v691 = vld [vmem:[%s684 + $0x30] sm:$0xff]
        %v692 = vld [vmem:[%s684 + $0x38] sm:$0xff]
        %v693 = vld [vmem:[%s684 + $0x40] sm:$0xff]
        %v694 = vld [vmem:[%s684 + $0x48] sm:$0xff]
        %v695 = vld [vmem:[%s684 + $0x50] sm:$0xff]
        %v696 = vld [vmem:[%s684 + $0x58] sm:$0xff]
        %v697 = vld [vmem:[%s684 + $0x60] sm:$0xff]
        %v698 = vld [vmem:[%s684 + $0x68] sm:$0xff]
        %v699 = vld [vmem:[%s684 + $0x70] sm:$0xff]
        %v700 = vld [vmem:[%s684 + $0x78] sm:$0xff]
        %v701 = vld [vmem:[%s684 + $0x80] sm:$0xff]
        %v702 = vld [vmem:[%s684 + $0x88] sm:$0xff]
        %v703 = vld [vmem:[%s684 + $0x90] sm:$0xff]
        %v704 = vld [vmem:[%s684 + $0x98] sm:$0xff]
        %v705 = vld [vmem:[%s684 + $0xa0] sm:$0xff]
        %v706 = vld [vmem:[%s684 + $0xa8] sm:$0xff]
        %v707 = vld [vmem:[%s684 + $0xb0] sm:$0xff]
        %v708 = vld [vmem:[%s684 + $0xb8] sm:$0xff]
        %v709 = vld [vmem:[%s684 + $0xc0] sm:$0xff]
        %v710 = vld [vmem:[%s684 + $0xc8] sm:$0xff]
        %v711 = vld [vmem:[%s684 + $0xd0] sm:$0xff]
        %v712 = vld [vmem:[%s684 + $0xd8] sm:$0xff]
        %v713 = vld [vmem:[%s684 + $0xe0] sm:$0xff]
        %v714 = vld [vmem:[%s684 + $0xe8] sm:$0xff]
        %v715 = vld [vmem:[%s684 + $0xf0] sm:$0xff]
        %v716 = vld [vmem:[%s684 + $0xf8] sm:$0xff]
        %v717 = vld [vmem:[%s684 + $0x100] sm:$0xff]
        %v718 = vld [vmem:[%s684 + $0x108] sm:$0xff]
        %v719 = vld [vmem:[%s684 + $0x110] sm:$0xff]
        %v720 = vld [vmem:[%s684 + $0x118] sm:$0xff]
        %v721 = vld [vmem:[%s684 + $0x120] sm:$0xff]
        %v722 = vld [vmem:[%s684 + $0x128] sm:$0xff]
        %v723 = vld [vmem:[%s684 + $0x130] sm:$0xff]
        %v724 = vld [vmem:[%s684 + $0x138] sm:$0xff]
        %v725 = vld [vmem:[%s684 + $0x140] sm:$0xff]
        %v726 = vld [vmem:[%s684 + $0x148] sm:$0xff]
        %v727 = vld [vmem:[%s684 + $0x150] sm:$0xff]
        %v728 = vld [vmem:[%s684 + $0x158] sm:$0xff]
        %v729 = vld [vmem:[%s684 + $0x160] sm:$0xff]
        %vm730 = vcmask 1046528
        %v731 = vrot.slane %v411, 1
        %v732 = vrot.slane %v412, 1
        %v733 = vsel %vm730, %v731, %v732
        %v734 = vrot.slane %v413, 1
        %v735 = vsel %vm730, %v732, %v734
        %v736 = vsel %vm509, %v733, 0
        %v738 = vsel %vm509, %v735, 0
        %v740 = vsel %vm509, %v734, 0
        %742 = vmatpush.msra.mxu0 0.0
        %743 = vmatpush.msra.mxu0 %v727
        %744 = vmatpush.msra.mxu0 %v724
        %745 = vmatpush.msra.mxu0 %v721
        %746 = vmatpush.msra.mxu0 %v718
        %747 = vmatpush.msra.mxu0 %v715
        %748 = vmatpush.msra.mxu0 %v712
        %749 = vmatpush.msra.mxu0 %v709
        %750 = vmatpush.msra.mxu0 %v706
        %751 = vmatpush.msra.mxu0 %v703
        %752 = vmatpush.msra.mxu0 %v700
        %753 = vmatpush.msra.mxu0 %v697
        %754 = vmatpush.msra.mxu0 %v694
        %755 = vmatpush.msra.mxu0 %v691
        %756 = vmatpush.msra.mxu0 %v688
        %757 = vmatpush.msra.mxu0 %v685
        %758 = vmatmul.f32.gmra.mxu0 %v736
        %v759 = vpop.f32.mrf.mxu0
        %v760 = vadd.f32 0.0, %v759
        %761 = vmatmul.f32.gmra.mxu0 %v738
        %v762 = vpop.f32.mrf.mxu0
        %v763 = vadd.f32 0.0, %v762
        %764 = vmatmul.f32.gmra.mxu0 %v740
        %v765 = vpop.f32.mrf.mxu0
        %v766 = vadd.f32 0.0, %v765
        %767 = vdwg.mxu0
        %768 = vmatpush.msra.mxu0 0.0
        %769 = vmatpush.msra.mxu0 %v728
        %770 = vmatpush.msra.mxu0 %v725
        %771 = vmatpush.msra.mxu0 %v722
        %772 = vmatpush.msra.mxu0 %v719
        %773 = vmatpush.msra.mxu0 %v716
        %774 = vmatpush.msra.mxu0 %v713
        %775 = vmatpush.msra.mxu0 %v710
        %776 = vmatpush.msra.mxu0 %v707
        %777 = vmatpush.msra.mxu0 %v704
        %778 = vmatpush.msra.mxu0 %v701
        %779 = vmatpush.msra.mxu0 %v698
        %780 = vmatpush.msra.mxu0 %v695
        %781 = vmatpush.msra.mxu0 %v692
        %782 = vmatpush.msra.mxu0 %v689
        %783 = vmatpush.msra.mxu0 %v686
        %784 = vmatmul.f32.gmra.mxu0 %v736
        %v785 = vpop.f32.mrf.mxu0
        %v786 = vadd.f32 0.0, %v785
        %787 = vmatmul.f32.gmra.mxu0 %v738
        %v788 = vpop.f32.mrf.mxu0
        %v789 = vadd.f32 0.0, %v788
        %790 = vmatmul.f32.gmra.mxu0 %v740
        %v791 = vpop.f32.mrf.mxu0
        %v792 = vadd.f32 0.0, %v791
        %793 = vdwg.mxu0
        %794 = vmatpush.msra.mxu0 0.0
        %795 = vmatpush.msra.mxu0 %v729
        %796 = vmatpush.msra.mxu0 %v726
        %797 = vmatpush.msra.mxu0 %v723
        %798 = vmatpush.msra.mxu0 %v720
        %799 = vmatpush.msra.mxu0 %v717
        %800 = vmatpush.msra.mxu0 %v714
        %801 = vmatpush.msra.mxu0 %v711
        %802 = vmatpush.msra.mxu0 %v708
        %803 = vmatpush.msra.mxu0 %v705
        %804 = vmatpush.msra.mxu0 %v702
        %805 = vmatpush.msra.mxu0 %v699
        %806 = vmatpush.msra.mxu0 %v696
        %807 = vmatpush.msra.mxu0 %v693
        %808 = vmatpush.msra.mxu0 %v690
        %809 = vmatpush.msra.mxu0 %v687
        %810 = vmatmul.f32.gmra.mxu0 %v736
        %v811 = vpop.f32.mrf.mxu0
        %v812 = vadd.f32 0.0, %v811
        %813 = vmatmul.f32.gmra.mxu0 %v738
        %v814 = vpop.f32.mrf.mxu0
        %v815 = vadd.f32 0.0, %v814
        %816 = vmatmul.f32.gmra.mxu0 %v740
        %v817 = vpop.f32.mrf.mxu0
        %v818 = vadd.f32 0.0, %v817
        %819 = vdwg.mxu0
        %v820 = vadd.f32 %v624, %v760
        %v821 = vadd.f32 %v650, %v786
        %v822 = vadd.f32 %v676, %v812
        %v823 = vadd.f32 %v627, %v763
        %v824 = vadd.f32 %v653, %v789
        %v825 = vadd.f32 %v679, %v815
        %v826 = vadd.f32 %v630, %v766
        %v827 = vadd.f32 %v656, %v792
        %v828 = vadd.f32 %v682, %v818
        %s829 = scalar_lea.vmem %s1, 1080
        %v830 = vld [vmem:[%s829] sm:$0xff]
        %v831 = vld [vmem:[%s829 + $0x8] sm:$0xff]
        %v832 = vld [vmem:[%s829 + $0x10] sm:$0xff]
        %v833 = vld [vmem:[%s829 + $0x18] sm:$0xff]
        %v834 = vld [vmem:[%s829 + $0x20] sm:$0xff]
        %v835 = vld [vmem:[%s829 + $0x28] sm:$0xff]
        %v836 = vld [vmem:[%s829 + $0x30] sm:$0xff]
        %v837 = vld [vmem:[%s829 + $0x38] sm:$0xff]
        %v838 = vld [vmem:[%s829 + $0x40] sm:$0xff]
        %v839 = vld [vmem:[%s829 + $0x48] sm:$0xff]
        %v840 = vld [vmem:[%s829 + $0x50] sm:$0xff]
        %v841 = vld [vmem:[%s829 + $0x58] sm:$0xff]
        %v842 = vld [vmem:[%s829 + $0x60] sm:$0xff]
        %v843 = vld [vmem:[%s829 + $0x68] sm:$0xff]
        %v844 = vld [vmem:[%s829 + $0x70] sm:$0xff]
        %v845 = vld [vmem:[%s829 + $0x78] sm:$0xff]
        %v846 = vld [vmem:[%s829 + $0x80] sm:$0xff]
        %v847 = vld [vmem:[%s829 + $0x88] sm:$0xff]
        %v848 = vld [vmem:[%s829 + $0x90] sm:$0xff]
        %v849 = vld [vmem:[%s829 + $0x98] sm:$0xff]
        %v850 = vld [vmem:[%s829 + $0xa0] sm:$0xff]
        %v851 = vld [vmem:[%s829 + $0xa8] sm:$0xff]
        %v852 = vld [vmem:[%s829 + $0xb0] sm:$0xff]
        %v853 = vld [vmem:[%s829 + $0xb8] sm:$0xff]
        %v854 = vld [vmem:[%s829 + $0xc0] sm:$0xff]
        %v855 = vld [vmem:[%s829 + $0xc8] sm:$0xff]
        %v856 = vld [vmem:[%s829 + $0xd0] sm:$0xff]
        %v857 = vld [vmem:[%s829 + $0xd8] sm:$0xff]
        %v858 = vld [vmem:[%s829 + $0xe0] sm:$0xff]
        %v859 = vld [vmem:[%s829 + $0xe8] sm:$0xff]
        %v860 = vld [vmem:[%s829 + $0xf0] sm:$0xff]
        %v861 = vld [vmem:[%s829 + $0xf8] sm:$0xff]
        %v862 = vld [vmem:[%s829 + $0x100] sm:$0xff]
        %v863 = vld [vmem:[%s829 + $0x108] sm:$0xff]
        %v864 = vld [vmem:[%s829 + $0x110] sm:$0xff]
        %v865 = vld [vmem:[%s829 + $0x118] sm:$0xff]
        %v866 = vld [vmem:[%s829 + $0x120] sm:$0xff]
        %v867 = vld [vmem:[%s829 + $0x128] sm:$0xff]
        %v868 = vld [vmem:[%s829 + $0x130] sm:$0xff]
        %v869 = vld [vmem:[%s829 + $0x138] sm:$0xff]
        %v870 = vld [vmem:[%s829 + $0x140] sm:$0xff]
        %v871 = vld [vmem:[%s829 + $0x148] sm:$0xff]
        %v872 = vld [vmem:[%s829 + $0x150] sm:$0xff]
        %v873 = vld [vmem:[%s829 + $0x158] sm:$0xff]
        %v874 = vld [vmem:[%s829 + $0x160] sm:$0xff]
        %v875 = vrot.slane %v415, 1
        %v876 = vrot.slane %v416, 1
        %v877 = vsel %vm730, %v875, %v876
        %v878 = vrot.slane %v417, 1
        %v879 = vsel %vm730, %v876, %v878
        %v880 = vsel %vm509, %v877, 0
        %v882 = vsel %vm509, %v879, 0
        %v884 = vsel %vm509, %v878, 0
        %886 = vmatpush.msra.mxu0 0.0
        %887 = vmatpush.msra.mxu0 %v872
        %888 = vmatpush.msra.mxu0 %v869
        %889 = vmatpush.msra.mxu0 %v866
        %890 = vmatpush.msra.mxu0 %v863
        %891 = vmatpush.msra.mxu0 %v860
        %892 = vmatpush.msra.mxu0 %v857
        %893 = vmatpush.msra.mxu0 %v854
        %894 = vmatpush.msra.mxu0 %v851
        %895 = vmatpush.msra.mxu0 %v848
        %896 = vmatpush.msra.mxu0 %v845
        %897 = vmatpush.msra.mxu0 %v842
        %898 = vmatpush.msra.mxu0 %v839
        %899 = vmatpush.msra.mxu0 %v836
        %900 = vmatpush.msra.mxu0 %v833
        %901 = vmatpush.msra.mxu0 %v830
        %902 = vmatmul.f32.gmra.mxu0 %v880
        %v903 = vpop.f32.mrf.mxu0
        %v904 = vadd.f32 0.0, %v903
        %905 = vmatmul.f32.gmra.mxu0 %v882
        %v906 = vpop.f32.mrf.mxu0
        %v907 = vadd.f32 0.0, %v906
        %908 = vmatmul.f32.gmra.mxu0 %v884
        %v909 = vpop.f32.mrf.mxu0
        %v910 = vadd.f32 0.0, %v909
        %911 = vdwg.mxu0
        %912 = vmatpush.msra.mxu0 0.0
        %913 = vmatpush.msra.mxu0 %v873
        %914 = vmatpush.msra.mxu0 %v870
        %915 = vmatpush.msra.mxu0 %v867
        %916 = vmatpush.msra.mxu0 %v864
        %917 = vmatpush.msra.mxu0 %v861
        %918 = vmatpush.msra.mxu0 %v858
        %919 = vmatpush.msra.mxu0 %v855
        %920 = vmatpush.msra.mxu0 %v852
        %921 = vmatpush.msra.mxu0 %v849
        %922 = vmatpush.msra.mxu0 %v846
        %923 = vmatpush.msra.mxu0 %v843
        %924 = vmatpush.msra.mxu0 %v840
        %925 = vmatpush.msra.mxu0 %v837
        %926 = vmatpush.msra.mxu0 %v834
        %927 = vmatpush.msra.mxu0 %v831
        %928 = vmatmul.f32.gmra.mxu0 %v880
        %v929 = vpop.f32.mrf.mxu0
        %v930 = vadd.f32 0.0, %v929
        %931 = vmatmul.f32.gmra.mxu0 %v882
        %v932 = vpop.f32.mrf.mxu0
        %v933 = vadd.f32 0.0, %v932
        %934 = vmatmul.f32.gmra.mxu0 %v884
        %v935 = vpop.f32.mrf.mxu0
        %v936 = vadd.f32 0.0, %v935
        %937 = vdwg.mxu0
        %938 = vmatpush.msra.mxu0 0.0
        %939 = vmatpush.msra.mxu0 %v874
        %940 = vmatpush.msra.mxu0 %v871
        %941 = vmatpush.msra.mxu0 %v868
        %942 = vmatpush.msra.mxu0 %v865
        %943 = vmatpush.msra.mxu0 %v862
        %944 = vmatpush.msra.mxu0 %v859
        %945 = vmatpush.msra.mxu0 %v856
        %946 = vmatpush.msra.mxu0 %v853
        %947 = vmatpush.msra.mxu0 %v850
        %948 = vmatpush.msra.mxu0 %v847
        %949 = vmatpush.msra.mxu0 %v844
        %950 = vmatpush.msra.mxu0 %v841
        %951 = vmatpush.msra.mxu0 %v838
        %952 = vmatpush.msra.mxu0 %v835
        %953 = vmatpush.msra.mxu0 %v832
        %954 = vmatmul.f32.gmra.mxu0 %v880
        %v955 = vpop.f32.mrf.mxu0
        %v956 = vadd.f32 0.0, %v955
        %957 = vmatmul.f32.gmra.mxu0 %v882
        %v958 = vpop.f32.mrf.mxu0
        %v959 = vadd.f32 0.0, %v958
        %960 = vmatmul.f32.gmra.mxu0 %v884
        %v961 = vpop.f32.mrf.mxu0
        %v962 = vadd.f32 0.0, %v961
        %963 = vdwg.mxu0
        %v964 = vadd.f32 %v820, %v904
        %v965 = vadd.f32 %v821, %v930
        %v966 = vadd.f32 %v822, %v956
        %v967 = vadd.f32 %v823, %v907
        %v968 = vadd.f32 %v824, %v933
        %v969 = vadd.f32 %v825, %v959
        %v970 = vadd.f32 %v826, %v910
        %v971 = vadd.f32 %v827, %v936
        %v972 = vadd.f32 %v828, %v962
        %s973 = scalar_lea.vmem %s1, 1440
        %v974 = vld [vmem:[%s973] sm:$0xff]
        %v975 = vld [vmem:[%s973 + $0x8] sm:$0xff]
        %v976 = vld [vmem:[%s973 + $0x10] sm:$0xff]
        %v977 = vld [vmem:[%s973 + $0x18] sm:$0xff]
        %v978 = vld [vmem:[%s973 + $0x20] sm:$0xff]
        %v979 = vld [vmem:[%s973 + $0x28] sm:$0xff]
        %v980 = vld [vmem:[%s973 + $0x30] sm:$0xff]
        %v981 = vld [vmem:[%s973 + $0x38] sm:$0xff]
        %v982 = vld [vmem:[%s973 + $0x40] sm:$0xff]
        %v983 = vld [vmem:[%s973 + $0x48] sm:$0xff]
        %v984 = vld [vmem:[%s973 + $0x50] sm:$0xff]
        %v985 = vld [vmem:[%s973 + $0x58] sm:$0xff]
        %v986 = vld [vmem:[%s973 + $0x60] sm:$0xff]
        %v987 = vld [vmem:[%s973 + $0x68] sm:$0xff]
        %v988 = vld [vmem:[%s973 + $0x70] sm:$0xff]
        %v989 = vld [vmem:[%s973 + $0x78] sm:$0xff]
        %v990 = vld [vmem:[%s973 + $0x80] sm:$0xff]
        %v991 = vld [vmem:[%s973 + $0x88] sm:$0xff]
        %v992 = vld [vmem:[%s973 + $0x90] sm:$0xff]
        %v993 = vld [vmem:[%s973 + $0x98] sm:$0xff]
        %v994 = vld [vmem:[%s973 + $0xa0] sm:$0xff]
        %v995 = vld [vmem:[%s973 + $0xa8] sm:$0xff]
        %v996 = vld [vmem:[%s973 + $0xb0] sm:$0xff]
        %v997 = vld [vmem:[%s973 + $0xb8] sm:$0xff]
        %v998 = vld [vmem:[%s973 + $0xc0] sm:$0xff]
        %v999 = vld [vmem:[%s973 + $0xc8] sm:$0xff]
        %v1000 = vld [vmem:[%s973 + $0xd0] sm:$0xff]
        %v1001 = vld [vmem:[%s973 + $0xd8] sm:$0xff]
        %v1002 = vld [vmem:[%s973 + $0xe0] sm:$0xff]
        %v1003 = vld [vmem:[%s973 + $0xe8] sm:$0xff]
        %v1004 = vld [vmem:[%s973 + $0xf0] sm:$0xff]
        %v1005 = vld [vmem:[%s973 + $0xf8] sm:$0xff]
        %v1006 = vld [vmem:[%s973 + $0x100] sm:$0xff]
        %v1007 = vld [vmem:[%s973 + $0x108] sm:$0xff]
        %v1008 = vld [vmem:[%s973 + $0x110] sm:$0xff]
        %v1009 = vld [vmem:[%s973 + $0x118] sm:$0xff]
        %v1010 = vld [vmem:[%s973 + $0x120] sm:$0xff]
        %v1011 = vld [vmem:[%s973 + $0x128] sm:$0xff]
        %v1012 = vld [vmem:[%s973 + $0x130] sm:$0xff]
        %v1013 = vld [vmem:[%s973 + $0x138] sm:$0xff]
        %v1014 = vld [vmem:[%s973 + $0x140] sm:$0xff]
        %v1015 = vld [vmem:[%s973 + $0x148] sm:$0xff]
        %v1016 = vld [vmem:[%s973 + $0x150] sm:$0xff]
        %v1017 = vld [vmem:[%s973 + $0x158] sm:$0xff]
        %v1018 = vld [vmem:[%s973 + $0x160] sm:$0xff]
        %vm1019 = vcmask 1045504
        %v1020 = vrot.slane %v411, 2
        %v1021 = vrot.slane %v412, 2
        %v1022 = vsel %vm1019, %v1020, %v1021
        %v1023 = vrot.slane %v413, 2
        %v1024 = vsel %vm1019, %v1021, %v1023
        %v1025 = vsel %vm509, %v1022, 0
        %v1027 = vsel %vm509, %v1024, 0
        %v1029 = vsel %vm509, %v1023, 0
        %1031 = vmatpush.msra.mxu0 0.0
        %1032 = vmatpush.msra.mxu0 %v1016
        %1033 = vmatpush.msra.mxu0 %v1013
        %1034 = vmatpush.msra.mxu0 %v1010
        %1035 = vmatpush.msra.mxu0 %v1007
        %1036 = vmatpush.msra.mxu0 %v1004
        %1037 = vmatpush.msra.mxu0 %v1001
        %1038 = vmatpush.msra.mxu0 %v998
        %1039 = vmatpush.msra.mxu0 %v995
        %1040 = vmatpush.msra.mxu0 %v992
        %1041 = vmatpush.msra.mxu0 %v989
        %1042 = vmatpush.msra.mxu0 %v986
        %1043 = vmatpush.msra.mxu0 %v983
        %1044 = vmatpush.msra.mxu0 %v980
        %1045 = vmatpush.msra.mxu0 %v977
        %1046 = vmatpush.msra.mxu0 %v974
        %1047 = vmatmul.f32.gmra.mxu0 %v1025
        %v1048 = vpop.f32.mrf.mxu0
        %v1049 = vadd.f32 0.0, %v1048
        %1050 = vmatmul.f32.gmra.mxu0 %v1027
        %v1051 = vpop.f32.mrf.mxu0
        %v1052 = vadd.f32 0.0, %v1051
        %1053 = vmatmul.f32.gmra.mxu0 %v1029
        %v1054 = vpop.f32.mrf.mxu0
        %v1055 = vadd.f32 0.0, %v1054
        %1056 = vdwg.mxu0
        %1057 = vmatpush.msra.mxu0 0.0
        %1058 = vmatpush.msra.mxu0 %v1017
        %1059 = vmatpush.msra.mxu0 %v1014
        %1060 = vmatpush.msra.mxu0 %v1011
        %1061 = vmatpush.msra.mxu0 %v1008
        %1062 = vmatpush.msra.mxu0 %v1005
        %1063 = vmatpush.msra.mxu0 %v1002
        %1064 = vmatpush.msra.mxu0 %v999
        %1065 = vmatpush.msra.mxu0 %v996
        %1066 = vmatpush.msra.mxu0 %v993
        %1067 = vmatpush.msra.mxu0 %v990
        %1068 = vmatpush.msra.mxu0 %v987
        %1069 = vmatpush.msra.mxu0 %v984
        %1070 = vmatpush.msra.mxu0 %v981
        %1071 = vmatpush.msra.mxu0 %v978
        %1072 = vmatpush.msra.mxu0 %v975
        %1073 = vmatmul.f32.gmra.mxu0 %v1025
        %v1074 = vpop.f32.mrf.mxu0
        %v1075 = vadd.f32 0.0, %v1074
        %1076 = vmatmul.f32.gmra.mxu0 %v1027
        %v1077 = vpop.f32.mrf.mxu0
        %v1078 = vadd.f32 0.0, %v1077
        %1079 = vmatmul.f32.gmra.mxu0 %v1029
        %v1080 = vpop.f32.mrf.mxu0
        %v1081 = vadd.f32 0.0, %v1080
        %1082 = vdwg.mxu0
        %1083 = vmatpush.msra.mxu0 0.0
        %1084 = vmatpush.msra.mxu0 %v1018
        %1085 = vmatpush.msra.mxu0 %v1015
        %1086 = vmatpush.msra.mxu0 %v1012
        %1087 = vmatpush.msra.mxu0 %v1009
        %1088 = vmatpush.msra.mxu0 %v1006
        %1089 = vmatpush.msra.mxu0 %v1003
        %1090 = vmatpush.msra.mxu0 %v1000
        %1091 = vmatpush.msra.mxu0 %v997
        %1092 = vmatpush.msra.mxu0 %v994
        %1093 = vmatpush.msra.mxu0 %v991
        %1094 = vmatpush.msra.mxu0 %v988
        %1095 = vmatpush.msra.mxu0 %v985
        %1096 = vmatpush.msra.mxu0 %v982
        %1097 = vmatpush.msra.mxu0 %v979
        %1098 = vmatpush.msra.mxu0 %v976
        %1099 = vmatmul.f32.gmra.mxu0 %v1025
        %v1100 = vpop.f32.mrf.mxu0
        %v1101 = vadd.f32 0.0, %v1100
        %1102 = vmatmul.f32.gmra.mxu0 %v1027
        %v1103 = vpop.f32.mrf.mxu0
        %v1104 = vadd.f32 0.0, %v1103
        %1105 = vmatmul.f32.gmra.mxu0 %v1029
        %v1106 = vpop.f32.mrf.mxu0
        %v1107 = vadd.f32 0.0, %v1106
        %1108 = vdwg.mxu0
        %v1109 = vadd.f32 %v964, %v1049
        %v1110 = vadd.f32 %v965, %v1075
        %v1111 = vadd.f32 %v966, %v1101
        %v1112 = vadd.f32 %v967, %v1052
        %v1113 = vadd.f32 %v968, %v1078
        %v1114 = vadd.f32 %v969, %v1104
        %v1115 = vadd.f32 %v970, %v1055
        %v1116 = vadd.f32 %v971, %v1081
        %v1117 = vadd.f32 %v972, %v1107
        %v1118 = vld [vmem:[%s2] sm:$0x7]
        %v1120 = vperm.slane %v1118, 0
        %v1121 = vperm.slane %v1118, 1
        %v1122 = vperm.slane %v1118, 2
        %v1126 = vmul.f32 %v1109, %v1120
        %v1127 = vmul.f32 %v1110, %v1121
        %v1128 = vmul.f32 %v1111, %v1122
        %v1129 = vmul.f32 %v1112, %v1120
        %v1130 = vmul.f32 %v1113, %v1121
        %v1131 = vmul.f32 %v1114, %v1122
        %v1132 = vmul.f32 %v1115, %v1120
        %v1133 = vmul.f32 %v1116, %v1121
        %v1134 = vmul.f32 %v1117, %v1122
        %v1135 = vld [vmem:[%s3] sm:$0x7]
        %v1137 = vperm.slane %v1135, 0
        %v1138 = vperm.slane %v1135, 1
        %v1139 = vperm.slane %v1135, 2
        %v1143 = vadd.f32 %v1126, %v1137
        %v1144 = vadd.f32 %v1127, %v1138
        %v1145 = vadd.f32 %v1128, %v1139
        %v1146 = vadd.f32 %v1129, %v1137
        %v1147 = vadd.f32 %v1130, %v1138
        %v1148 = vadd.f32 %v1131, %v1139
        %v1149 = vadd.f32 %v1132, %v1137
        %v1150 = vadd.f32 %v1133, %v1138
        %v1151 = vadd.f32 %v1134, %v1139
        %v1152 = vmax.f32 %v1143, 0.0
        %v1153 = vmax.f32 %v1144, 0.0
        %v1154 = vmax.f32 %v1145, 0.0
        %v1155 = vmax.f32 %v1146, 0.0
        %v1156 = vmax.f32 %v1147, 0.0
        %v1157 = vmax.f32 %v1148, 0.0
        %v1158 = vmax.f32 %v1149, 0.0
        %v1159 = vmax.f32 %v1150, 0.0
        %v1160 = vmax.f32 %v1151, 0.0
        %v1164 = vrot.slane %v1152, 1
        %v1165 = vrot.slane %v1153, 1
        %v1166 = vrot.slane %v1154, 1
        %v1170 = vrot.slane %v1152, 2
        %v1171 = vrot.slane %v1153, 2
        %v1172 = vrot.slane %v1154, 2
        %v1176 = vrot.slane %v1152, 3
        %v1177 = vrot.slane %v1153, 3
        %v1178 = vrot.slane %v1154, 3
        %v1185 = vrot.slane %v1155, 4
        %v1186 = vrot.slane %v1156, 4
        %v1187 = vrot.slane %v1157, 4
        %v1191 = vrot.slane %v1155, 5
        %v1192 = vrot.slane %v1156, 5
        %v1193 = vrot.slane %v1157, 5
        %v1197 = vrot.slane %v1155, 6
        %v1198 = vrot.slane %v1156, 6
        %v1199 = vrot.slane %v1157, 6
        %v1203 = vrot.slane %v1155, 7
        %v1204 = vrot.slane %v1156, 7
        %v1205 = vrot.slane %v1157, 7
        %vm1209 = vcmask 1040384
        %v1210 = vsel %vm1209, %v1152, %v1164
        %v1211 = vsel %vm1209, %v1153, %v1165
        %v1212 = vsel %vm1209, %v1154, %v1166
        %vm1213 = vcmask 1041408
        %v1214 = vsel %vm1213, %v1210, %v1170
        %v1215 = vsel %vm1213, %v1211, %v1171
        %v1216 = vsel %vm1213, %v1212, %v1172
        %vm1217 = vcmask 1042432
        %v1218 = vsel %vm1217, %v1214, %v1176
        %v1219 = vsel %vm1217, %v1215, %v1177
        %v1220 = vsel %vm1217, %v1216, %v1178
        %vm1221 = vcmask 1043456
        %v1222 = vsel %vm1221, %v1218, %v1185
        %v1223 = vsel %vm1221, %v1219, %v1186
        %v1224 = vsel %vm1221, %v1220, %v1187
        %vm1225 = vcmask 1044480
        %v1226 = vsel %vm1225, %v1222, %v1191
        %v1227 = vsel %vm1225, %v1223, %v1192
        %v1228 = vsel %vm1225, %v1224, %v1193
        %v1229 = vsel %vm1019, %v1226, %v1197
        %v1230 = vsel %vm1019, %v1227, %v1198
        %v1231 = vsel %vm1019, %v1228, %v1199
        %v1232 = vsel %vm730, %v1229, %v1203
        %v1233 = vsel %vm730, %v1230, %v1204
        %v1234 = vsel %vm730, %v1231, %v1205
        %v1235 = vrot.slane %v1152, 4
        %v1236 = vrot.slane %v1153, 4
        %v1237 = vrot.slane %v1154, 4
        %v1241 = vsel %vm1209, %v1164, %v1170
        %v1242 = vsel %vm1209, %v1165, %v1171
        %v1243 = vsel %vm1209, %v1166, %v1172
        %v1244 = vsel %vm1213, %v1241, %v1176
        %v1245 = vsel %vm1213, %v1242, %v1177
        %v1246 = vsel %vm1213, %v1243, %v1178
        %v1247 = vsel %vm1217, %v1244, %v1235
        %v1248 = vsel %vm1217, %v1245, %v1236
        %v1249 = vsel %vm1217, %v1246, %v1237
        %v1250 = vsel %vm1221, %v1247, %v1191
        %v1251 = vsel %vm1221, %v1248, %v1192
        %v1252 = vsel %vm1221, %v1249, %v1193
        %v1253 = vsel %vm1225, %v1250, %v1197
        %v1254 = vsel %vm1225, %v1251, %v1198
        %v1255 = vsel %vm1225, %v1252, %v1199
        %v1256 = vsel %vm1019, %v1253, %v1203
        %v1257 = vsel %vm1019, %v1254, %v1204
        %v1258 = vsel %vm1019, %v1255, %v1205
        %v1259 = vsel %vm730, %v1256, %v1155
        %v1260 = vsel %vm730, %v1257, %v1156
        %v1261 = vsel %vm730, %v1258, %v1157
        %v1262 = vld [vmem:[%s4] sm:$0xff]
        %v1263 = vld [vmem:[%s4 + $0x8] sm:$0xff]
        %v1264 = vld [vmem:[%s4 + $0x10] sm:$0xff]
        %v1265 = vld [vmem:[%s4 + $0x18] sm:$0xff]
        %v1266 = vld [vmem:[%s4 + $0x20] sm:$0xff]
        %v1267 = vld [vmem:[%s4 + $0x28] sm:$0xff]
        %v1268 = vld [vmem:[%s4 + $0x30] sm:$0xff]
        %v1269 = vld [vmem:[%s4 + $0x38] sm:$0xff]
        %v1270 = vld [vmem:[%s4 + $0x40] sm:$0xff]
        %v1271 = vld [vmem:[%s4 + $0x48] sm:$0xff]
        %v1272 = vld [vmem:[%s4 + $0x50] sm:$0xff]
        %v1273 = vld [vmem:[%s4 + $0x58] sm:$0xff]
        %v1274 = vld [vmem:[%s4 + $0x60] sm:$0xff]
        %v1275 = vld [vmem:[%s4 + $0x68] sm:$0xff]
        %v1276 = vld [vmem:[%s4 + $0x70] sm:$0xff]
        %v1277 = vld [vmem:[%s4 + $0x78] sm:$0xff]
        %v1278 = vld [vmem:[%s4 + $0x80] sm:$0xff]
        %v1279 = vld [vmem:[%s4 + $0x88] sm:$0xff]
        %v1280 = vld [vmem:[%s4 + $0x90] sm:$0xff]
        %v1281 = vld [vmem:[%s4 + $0x98] sm:$0xff]
        %v1282 = vld [vmem:[%s4 + $0xa0] sm:$0xff]
        %v1283 = vld [vmem:[%s4 + $0xa8] sm:$0xff]
        %v1284 = vld [vmem:[%s4 + $0xb0] sm:$0xff]
        %v1285 = vld [vmem:[%s4 + $0xb8] sm:$0xff]
        %v1286 = vld [vmem:[%s4 + $0xc0] sm:$0xff]
        %v1287 = vld [vmem:[%s4 + $0xc8] sm:$0xff]
        %v1288 = vld [vmem:[%s4 + $0xd0] sm:$0xff]
        %v1289 = vld [vmem:[%s4 + $0xd8] sm:$0xff]
        %v1290 = vld [vmem:[%s4 + $0xe0] sm:$0xff]
        %v1291 = vld [vmem:[%s4 + $0xe8] sm:$0xff]
        %v1292 = vld [vmem:[%s4 + $0xf0] sm:$0xff]
        %v1293 = vld [vmem:[%s4 + $0xf8] sm:$0xff]
        %v1294 = vld [vmem:[%s4 + $0x100] sm:$0xff]
        %v1295 = vld [vmem:[%s4 + $0x108] sm:$0xff]
        %v1296 = vld [vmem:[%s4 + $0x110] sm:$0xff]
        %v1297 = vld [vmem:[%s4 + $0x118] sm:$0xff]
        %v1298 = vld [vmem:[%s4 + $0x120] sm:$0xff]
        %v1299 = vld [vmem:[%s4 + $0x128] sm:$0xff]
        %v1300 = vld [vmem:[%s4 + $0x130] sm:$0xff]
        %v1301 = vld [vmem:[%s4 + $0x138] sm:$0xff]
        %v1302 = vld [vmem:[%s4 + $0x140] sm:$0xff]
        %v1303 = vld [vmem:[%s4 + $0x148] sm:$0xff]
        %v1304 = vld [vmem:[%s4 + $0x150] sm:$0xff]
        %v1305 = vld [vmem:[%s4 + $0x158] sm:$0xff]
        %v1306 = vld [vmem:[%s4 + $0x160] sm:$0xff]
        %v1307 = vld [vmem:[%s4 + $0x168] sm:$0xff]
        %v1308 = vld [vmem:[%s4 + $0x170] sm:$0xff]
        %v1309 = vld [vmem:[%s4 + $0x178] sm:$0xff]
        %v1310 = vld [vmem:[%s4 + $0x180] sm:$0xff]
        %v1311 = vld [vmem:[%s4 + $0x188] sm:$0xff]
        %v1312 = vld [vmem:[%s4 + $0x190] sm:$0xff]
        %v1313 = vld [vmem:[%s4 + $0x198] sm:$0xff]
        %v1314 = vld [vmem:[%s4 + $0x1a0] sm:$0xff]
        %v1315 = vld [vmem:[%s4 + $0x1a8] sm:$0xff]
        %v1316 = vld [vmem:[%s4 + $0x1b0] sm:$0xff]
        %v1317 = vld [vmem:[%s4 + $0x1b8] sm:$0xff]
        %v1318 = vld [vmem:[%s4 + $0x1c0] sm:$0xff]
        %v1319 = vld [vmem:[%s4 + $0x1c8] sm:$0xff]
        %v1320 = vld [vmem:[%s4 + $0x1d0] sm:$0xff]
        %v1321 = vld [vmem:[%s4 + $0x1d8] sm:$0xff]
        %v1322 = vld [vmem:[%s4 + $0x1e0] sm:$0xff]
        %v1323 = vld [vmem:[%s4 + $0x1e8] sm:$0xff]
        %v1324 = vld [vmem:[%s4 + $0x1f0] sm:$0xff]
        %v1325 = vld [vmem:[%s4 + $0x1f8] sm:$0xff]
        %v1326 = vld [vmem:[%s4 + $0x200] sm:$0xff]
        %v1327 = vld [vmem:[%s4 + $0x208] sm:$0xff]
        %v1328 = vld [vmem:[%s4 + $0x210] sm:$0xff]
        %v1329 = vld [vmem:[%s4 + $0x218] sm:$0xff]
        %v1330 = vld [vmem:[%s4 + $0x220] sm:$0xff]
        %v1331 = vld [vmem:[%s4 + $0x228] sm:$0xff]
        %v1332 = vld [vmem:[%s4 + $0x230] sm:$0xff]
        %v1333 = vld [vmem:[%s4 + $0x238] sm:$0xff]
        %s1334 = scalar_lea.vmem %s4, 576
        %v1335 = vld [vmem:[%s1334] sm:$0xff]
        %v1336 = vld [vmem:[%s1334 + $0x8] sm:$0xff]
        %v1337 = vld [vmem:[%s1334 + $0x10] sm:$0xff]
        %v1338 = vld [vmem:[%s1334 + $0x18] sm:$0xff]
        %v1339 = vld [vmem:[%s1334 + $0x20] sm:$0xff]
        %v1340 = vld [vmem:[%s1334 + $0x28] sm:$0xff]
        %v1341 = vld [vmem:[%s1334 + $0x30] sm:$0xff]
        %v1342 = vld [vmem:[%s1334 + $0x38] sm:$0xff]
        %v1343 = vld [vmem:[%s1334 + $0x40] sm:$0xff]
        %v1344 = vld [vmem:[%s1334 + $0x48] sm:$0xff]
        %v1345 = vld [vmem:[%s1334 + $0x50] sm:$0xff]
        %v1346 = vld [vmem:[%s1334 + $0x58] sm:$0xff]
        %v1347 = vld [vmem:[%s1334 + $0x60] sm:$0xff]
        %v1348 = vld [vmem:[%s1334 + $0x68] sm:$0xff]
        %v1349 = vld [vmem:[%s1334 + $0x70] sm:$0xff]
        %v1350 = vld [vmem:[%s1334 + $0x78] sm:$0xff]
        %v1351 = vld [vmem:[%s1334 + $0x80] sm:$0xff]
        %v1352 = vld [vmem:[%s1334 + $0x88] sm:$0xff]
        %v1353 = vld [vmem:[%s1334 + $0x90] sm:$0xff]
        %v1354 = vld [vmem:[%s1334 + $0x98] sm:$0xff]
        %v1355 = vld [vmem:[%s1334 + $0xa0] sm:$0xff]
        %v1356 = vld [vmem:[%s1334 + $0xa8] sm:$0xff]
        %v1357 = vld [vmem:[%s1334 + $0xb0] sm:$0xff]
        %v1358 = vld [vmem:[%s1334 + $0xb8] sm:$0xff]
        %v1359 = vld [vmem:[%s1334 + $0xc0] sm:$0xff]
        %v1360 = vld [vmem:[%s1334 + $0xc8] sm:$0xff]
        %v1361 = vld [vmem:[%s1334 + $0xd0] sm:$0xff]
        %v1362 = vld [vmem:[%s1334 + $0xd8] sm:$0xff]
        %v1363 = vld [vmem:[%s1334 + $0xe0] sm:$0xff]
        %v1364 = vld [vmem:[%s1334 + $0xe8] sm:$0xff]
        %v1365 = vld [vmem:[%s1334 + $0xf0] sm:$0xff]
        %v1366 = vld [vmem:[%s1334 + $0xf8] sm:$0xff]
        %v1367 = vld [vmem:[%s1334 + $0x100] sm:$0xff]
        %v1368 = vld [vmem:[%s1334 + $0x108] sm:$0xff]
        %v1369 = vld [vmem:[%s1334 + $0x110] sm:$0xff]
        %v1370 = vld [vmem:[%s1334 + $0x118] sm:$0xff]
        %v1371 = vld [vmem:[%s1334 + $0x120] sm:$0xff]
        %v1372 = vld [vmem:[%s1334 + $0x128] sm:$0xff]
        %v1373 = vld [vmem:[%s1334 + $0x130] sm:$0xff]
        %v1374 = vld [vmem:[%s1334 + $0x138] sm:$0xff]
        %v1375 = vld [vmem:[%s1334 + $0x140] sm:$0xff]
        %v1376 = vld [vmem:[%s1334 + $0x148] sm:$0xff]
        %v1377 = vld [vmem:[%s1334 + $0x150] sm:$0xff]
        %v1378 = vld [vmem:[%s1334 + $0x158] sm:$0xff]
        %v1379 = vld [vmem:[%s1334 + $0x160] sm:$0xff]
        %v1380 = vld [vmem:[%s1334 + $0x168] sm:$0xff]
        %v1381 = vld [vmem:[%s1334 + $0x170] sm:$0xff]
        %v1382 = vld [vmem:[%s1334 + $0x178] sm:$0xff]
        %v1383 = vld [vmem:[%s1334 + $0x180] sm:$0xff]
        %v1384 = vld [vmem:[%s1334 + $0x188] sm:$0xff]
        %v1385 = vld [vmem:[%s1334 + $0x190] sm:$0xff]
        %v1386 = vld [vmem:[%s1334 + $0x198] sm:$0xff]
        %v1387 = vld [vmem:[%s1334 + $0x1a0] sm:$0xff]
        %v1388 = vld [vmem:[%s1334 + $0x1a8] sm:$0xff]
        %v1389 = vld [vmem:[%s1334 + $0x1b0] sm:$0xff]
        %v1390 = vld [vmem:[%s1334 + $0x1b8] sm:$0xff]
        %v1391 = vld [vmem:[%s1334 + $0x1c0] sm:$0xff]
        %v1392 = vld [vmem:[%s1334 + $0x1c8] sm:$0xff]
        %v1393 = vld [vmem:[%s1334 + $0x1d0] sm:$0xff]
        %v1394 = vld [vmem:[%s1334 + $0x1d8] sm:$0xff]
        %v1395 = vld [vmem:[%s1334 + $0x1e0] sm:$0xff]
        %v1396 = vld [vmem:[%s1334 + $0x1e8] sm:$0xff]
        %v1397 = vld [vmem:[%s1334 + $0x1f0] sm:$0xff]
        %v1398 = vld [vmem:[%s1334 + $0x1f8] sm:$0xff]
        %v1399 = vld [vmem:[%s1334 + $0x200] sm:$0xff]
        %v1400 = vld [vmem:[%s1334 + $0x208] sm:$0xff]
        %v1401 = vld [vmem:[%s1334 + $0x210] sm:$0xff]
        %v1402 = vld [vmem:[%s1334 + $0x218] sm:$0xff]
        %v1403 = vld [vmem:[%s1334 + $0x220] sm:$0xff]
        %v1404 = vld [vmem:[%s1334 + $0x228] sm:$0xff]
        %v1405 = vld [vmem:[%s1334 + $0x230] sm:$0xff]
        %v1406 = vld [vmem:[%s1334 + $0x238] sm:$0xff]
        %vm1407 = vcmask 261120
        %v1409 = vsel %vm1407, %v1261, 0
        %1411 = vmatpush.msra.mxu0 %v1365
        %1412 = vmatpush.msra.mxu0 %v1363
        %1413 = vmatpush.msra.mxu0 %v1361
        %1414 = vmatpush.msra.mxu0 %v1359
        %1415 = vmatpush.msra.mxu0 %v1357
        %1416 = vmatpush.msra.mxu0 %v1355
        %1417 = vmatpush.msra.mxu0 %v1353
        %1418 = vmatpush.msra.mxu0 %v1351
        %1419 = vmatpush.msra.mxu0 %v1349
        %1420 = vmatpush.msra.mxu0 %v1347
        %1421 = vmatpush.msra.mxu0 %v1345
        %1422 = vmatpush.msra.mxu0 %v1343
        %1423 = vmatpush.msra.mxu0 %v1341
        %1424 = vmatpush.msra.mxu0 %v1339
        %1425 = vmatpush.msra.mxu0 %v1337
        %1426 = vmatpush.msra.mxu0 %v1335
        %1427 = vmatmul.f32.gmra.mxu0 %v1259
        %v1428 = vpop.f32.mrf.mxu0
        %v1429 = vadd.f32 0.0, %v1428
        %1430 = vdwg.mxu0
        %1431 = vmatpush.msra.mxu0 %v1397
        %1432 = vmatpush.msra.mxu0 %v1395
        %1433 = vmatpush.msra.mxu0 %v1393
        %1434 = vmatpush.msra.mxu0 %v1391
        %1435 = vmatpush.msra.mxu0 %v1389
        %1436 = vmatpush.msra.mxu0 %v1387
        %1437 = vmatpush.msra.mxu0 %v1385
        %1438 = vmatpush.msra.mxu0 %v1383
        %1439 = vmatpush.msra.mxu0 %v1381
        %1440 = vmatpush.msra.mxu0 %v1379
        %1441 = vmatpush.msra.mxu0 %v1377
        %1442 = vmatpush.msra.mxu0 %v1375
        %1443 = vmatpush.msra.mxu0 %v1373
        %1444 = vmatpush.msra.mxu0 %v1371
        %1445 = vmatpush.msra.mxu0 %v1369
        %1446 = vmatpush.msra.mxu0 %v1367
        %1447 = vmatmul.f32.gmra.mxu0 %v1260
        %v1448 = vpop.f32.mrf.mxu0
        %v1449 = vadd.f32 %v1429, %v1448
        %1450 = vdwg.mxu0
        %1451 = vmatpush.msra.mxu0 0.0
        %1452 = vmatpush.msra.mxu0 0.0
        %1453 = vmatpush.msra.mxu0 0.0
        %1454 = vmatpush.msra.mxu0 0.0
        %1455 = vmatpush.msra.mxu0 0.0
        %1456 = vmatpush.msra.mxu0 0.0
        %1457 = vmatpush.msra.mxu0 0.0
        %1458 = vmatpush.msra.mxu0 0.0
        %1459 = vmatpush.msra.mxu0 0.0
        %1460 = vmatpush.msra.mxu0 0.0
        %1461 = vmatpush.msra.mxu0 0.0
        %1462 = vmatpush.msra.mxu0 0.0
        %1463 = vmatpush.msra.mxu0 %v1405
        %1464 = vmatpush.msra.mxu0 %v1403
        %1465 = vmatpush.msra.mxu0 %v1401
        %1466 = vmatpush.msra.mxu0 %v1399
        %1467 = vmatmul.f32.gmra.mxu0 %v1409
        %v1468 = vpop.f32.mrf.mxu0
        %v1469 = vadd.f32 %v1449, %v1468
        %1470 = vdwg.mxu0
        %1471 = vmatpush.msra.mxu0 %v1366
        %1472 = vmatpush.msra.mxu0 %v1364
        %1473 = vmatpush.msra.mxu0 %v1362
        %1474 = vmatpush.msra.mxu0 %v1360
        %1475 = vmatpush.msra.mxu0 %v1358
        %1476 = vmatpush.msra.mxu0 %v1356
        %1477 = vmatpush.msra.mxu0 %v1354
        %1478 = vmatpush.msra.mxu0 %v1352
        %1479 = vmatpush.msra.mxu0 %v1350
        %1480 = vmatpush.msra.mxu0 %v1348
        %1481 = vmatpush.msra.mxu0 %v1346
        %1482 = vmatpush.msra.mxu0 %v1344
        %1483 = vmatpush.msra.mxu0 %v1342
        %1484 = vmatpush.msra.mxu0 %v1340
        %1485 = vmatpush.msra.mxu0 %v1338
        %1486 = vmatpush.msra.mxu0 %v1336
        %1487 = vmatmul.f32.gmra.mxu0 %v1259
        %v1488 = vpop.f32.mrf.mxu0
        %v1489 = vadd.f32 0.0, %v1488
        %1490 = vdwg.mxu0
        %1491 = vmatpush.msra.mxu0 %v1398
        %1492 = vmatpush.msra.mxu0 %v1396
        %1493 = vmatpush.msra.mxu0 %v1394
        %1494 = vmatpush.msra.mxu0 %v1392
        %1495 = vmatpush.msra.mxu0 %v1390
        %1496 = vmatpush.msra.mxu0 %v1388
        %1497 = vmatpush.msra.mxu0 %v1386
        %1498 = vmatpush.msra.mxu0 %v1384
        %1499 = vmatpush.msra.mxu0 %v1382
        %1500 = vmatpush.msra.mxu0 %v1380
        %1501 = vmatpush.msra.mxu0 %v1378
        %1502 = vmatpush.msra.mxu0 %v1376
        %1503 = vmatpush.msra.mxu0 %v1374
        %1504 = vmatpush.msra.mxu0 %v1372
        %1505 = vmatpush.msra.mxu0 %v1370
        %1506 = vmatpush.msra.mxu0 %v1368
        %1507 = vmatmul.f32.gmra.mxu0 %v1260
        %v1508 = vpop.f32.mrf.mxu0
        %v1509 = vadd.f32 %v1489, %v1508
        %1510 = vdwg.mxu0
        %1511 = vmatpush.msra.mxu0 0.0
        %1512 = vmatpush.msra.mxu0 0.0
        %1513 = vmatpush.msra.mxu0 0.0
        %1514 = vmatpush.msra.mxu0 0.0
        %1515 = vmatpush.msra.mxu0 0.0
        %1516 = vmatpush.msra.mxu0 0.0
        %1517 = vmatpush.msra.mxu0 0.0
        %1518 = vmatpush.msra.mxu0 0.0
        %1519 = vmatpush.msra.mxu0 0.0
        %1520 = vmatpush.msra.mxu0 0.0
        %1521 = vmatpush.msra.mxu0 0.0
        %1522 = vmatpush.msra.mxu0 0.0
        %1523 = vmatpush.msra.mxu0 %v1406
        %1524 = vmatpush.msra.mxu0 %v1404
        %1525 = vmatpush.msra.mxu0 %v1402
        %1526 = vmatpush.msra.mxu0 %v1400
        %1527 = vmatmul.f32.gmra.mxu0 %v1409
        %v1528 = vpop.f32.mrf.mxu0
        %v1529 = vadd.f32 %v1509, %v1528
        %1530 = vdwg.mxu0
        %v1532 = vsel %vm1407, %v1234, 0
        %1534 = vmatpush.msra.mxu0 %v1292
        %1535 = vmatpush.msra.mxu0 %v1290
        %1536 = vmatpush.msra.mxu0 %v1288
        %1537 = vmatpush.msra.mxu0 %v1286
        %1538 = vmatpush.msra.mxu0 %v1284
        %1539 = vmatpush.msra.mxu0 %v1282
        %1540 = vmatpush.msra.mxu0 %v1280
        %1541 = vmatpush.msra.mxu0 %v1278
        %1542 = vmatpush.msra.mxu0 %v1276
        %1543 = vmatpush.msra.mxu0 %v1274
        %1544 = vmatpush.msra.mxu0 %v1272
        %1545 = vmatpush.msra.mxu0 %v1270
        %1546 = vmatpush.msra.mxu0 %v1268
        %1547 = vmatpush.msra.mxu0 %v1266
        %1548 = vmatpush.msra.mxu0 %v1264
        %1549 = vmatpush.msra.mxu0 %v1262
        %1550 = vmatmul.f32.gmra.mxu0 %v1232
        %v1551 = vpop.f32.mrf.mxu0
        %v1552 = vadd.f32 %v1469, %v1551
        %1553 = vdwg.mxu0
        %1554 = vmatpush.msra.mxu0 %v1324
        %1555 = vmatpush.msra.mxu0 %v1322
        %1556 = vmatpush.msra.mxu0 %v1320
        %1557 = vmatpush.msra.mxu0 %v1318
        %1558 = vmatpush.msra.mxu0 %v1316
        %1559 = vmatpush.msra.mxu0 %v1314
        %1560 = vmatpush.msra.mxu0 %v1312
        %1561 = vmatpush.msra.mxu0 %v1310
        %1562 = vmatpush.msra.mxu0 %v1308
        %1563 = vmatpush.msra.mxu0 %v1306
        %1564 = vmatpush.msra.mxu0 %v1304
        %1565 = vmatpush.msra.mxu0 %v1302
        %1566 = vmatpush.msra.mxu0 %v1300
        %1567 = vmatpush.msra.mxu0 %v1298
        %1568 = vmatpush.msra.mxu0 %v1296
        %1569 = vmatpush.msra.mxu0 %v1294
        %1570 = vmatmul.f32.gmra.mxu0 %v1233
        %v1571 = vpop.f32.mrf.mxu0
        %v1572 = vadd.f32 %v1552, %v1571
        %1573 = vdwg.mxu0
        %1574 = vmatpush.msra.mxu0 0.0
        %1575 = vmatpush.msra.mxu0 0.0
        %1576 = vmatpush.msra.mxu0 0.0
        %1577 = vmatpush.msra.mxu0 0.0
        %1578 = vmatpush.msra.mxu0 0.0
        %1579 = vmatpush.msra.mxu0 0.0
        %1580 = vmatpush.msra.mxu0 0.0
        %1581 = vmatpush.msra.mxu0 0.0
        %1582 = vmatpush.msra.mxu0 0.0
        %1583 = vmatpush.msra.mxu0 0.0
        %1584 = vmatpush.msra.mxu0 0.0
        %1585 = vmatpush.msra.mxu0 0.0
        %1586 = vmatpush.msra.mxu0 %v1332
        %1587 = vmatpush.msra.mxu0 %v1330
        %1588 = vmatpush.msra.mxu0 %v1328
        %1589 = vmatpush.msra.mxu0 %v1326
        %1590 = vmatmul.f32.gmra.mxu0 %v1532
        %v1591 = vpop.f32.mrf.mxu0
        %v1592 = vadd.f32 %v1572, %v1591
        %1593 = vdwg.mxu0
        %1594 = vmatpush.msra.mxu0 %v1293
        %1595 = vmatpush.msra.mxu0 %v1291
        %1596 = vmatpush.msra.mxu0 %v1289
        %1597 = vmatpush.msra.mxu0 %v1287
        %1598 = vmatpush.msra.mxu0 %v1285
        %1599 = vmatpush.msra.mxu0 %v1283
        %1600 = vmatpush.msra.mxu0 %v1281
        %1601 = vmatpush.msra.mxu0 %v1279
        %1602 = vmatpush.msra.mxu0 %v1277
        %1603 = vmatpush.msra.mxu0 %v1275
        %1604 = vmatpush.msra.mxu0 %v1273
        %1605 = vmatpush.msra.mxu0 %v1271
        %1606 = vmatpush.msra.mxu0 %v1269
        %1607 = vmatpush.msra.mxu0 %v1267
        %1608 = vmatpush.msra.mxu0 %v1265
        %1609 = vmatpush.msra.mxu0 %v1263
        %1610 = vmatmul.f32.gmra.mxu0 %v1232
        %v1611 = vpop.f32.mrf.mxu0
        %v1612 = vadd.f32 %v1529, %v1611
        %1613 = vdwg.mxu0
        %1614 = vmatpush.msra.mxu0 %v1325
        %1615 = vmatpush.msra.mxu0 %v1323
        %1616 = vmatpush.msra.mxu0 %v1321
        %1617 = vmatpush.msra.mxu0 %v1319
        %1618 = vmatpush.msra.mxu0 %v1317
        %1619 = vmatpush.msra.mxu0 %v1315
        %1620 = vmatpush.msra.mxu0 %v1313
        %1621 = vmatpush.msra.mxu0 %v1311
        %1622 = vmatpush.msra.mxu0 %v1309
        %1623 = vmatpush.msra.mxu0 %v1307
        %1624 = vmatpush.msra.mxu0 %v1305
        %1625 = vmatpush.msra.mxu0 %v1303
        %1626 = vmatpush.msra.mxu0 %v1301
        %1627 = vmatpush.msra.mxu0 %v1299
        %1628 = vmatpush.msra.mxu0 %v1297
        %1629 = vmatpush.msra.mxu0 %v1295
        %1630 = vmatmul.f32.gmra.mxu0 %v1233
        %v1631 = vpop.f32.mrf.mxu0
        %v1632 = vadd.f32 %v1612, %v1631
        %1633 = vdwg.mxu0
        %1634 = vmatpush.msra.mxu0 0.0
        %1635 = vmatpush.msra.mxu0 0.0
        %1636 = vmatpush.msra.mxu0 0.0
        %1637 = vmatpush.msra.mxu0 0.0
        %1638 = vmatpush.msra.mxu0 0.0
        %1639 = vmatpush.msra.mxu0 0.0
        %1640 = vmatpush.msra.mxu0 0.0
        %1641 = vmatpush.msra.mxu0 0.0
        %1642 = vmatpush.msra.mxu0 0.0
        %1643 = vmatpush.msra.mxu0 0.0
        %1644 = vmatpush.msra.mxu0 0.0
        %1645 = vmatpush.msra.mxu0 0.0
        %1646 = vmatpush.msra.mxu0 %v1333
        %1647 = vmatpush.msra.mxu0 %v1331
        %1648 = vmatpush.msra.mxu0 %v1329
        %1649 = vmatpush.msra.mxu0 %v1327
        %1650 = vmatmul.f32.gmra.mxu0 %v1532
        %v1651 = vpop.f32.mrf.mxu0
        %v1652 = vadd.f32 %v1632, %v1651
        %1653 = vdwg.mxu0
        %s1654 = scalar_lea.vmem %s4, 1152
        %v1655 = vld [vmem:[%s1654] sm:$0xff]
        %v1656 = vld [vmem:[%s1654 + $0x8] sm:$0xff]
        %v1657 = vld [vmem:[%s1654 + $0x10] sm:$0xff]
        %v1658 = vld [vmem:[%s1654 + $0x18] sm:$0xff]
        %v1659 = vld [vmem:[%s1654 + $0x20] sm:$0xff]
        %v1660 = vld [vmem:[%s1654 + $0x28] sm:$0xff]
        %v1661 = vld [vmem:[%s1654 + $0x30] sm:$0xff]
        %v1662 = vld [vmem:[%s1654 + $0x38] sm:$0xff]
        %v1663 = vld [vmem:[%s1654 + $0x40] sm:$0xff]
        %v1664 = vld [vmem:[%s1654 + $0x48] sm:$0xff]
        %v1665 = vld [vmem:[%s1654 + $0x50] sm:$0xff]
        %v1666 = vld [vmem:[%s1654 + $0x58] sm:$0xff]
        %v1667 = vld [vmem:[%s1654 + $0x60] sm:$0xff]
        %v1668 = vld [vmem:[%s1654 + $0x68] sm:$0xff]
        %v1669 = vld [vmem:[%s1654 + $0x70] sm:$0xff]
        %v1670 = vld [vmem:[%s1654 + $0x78] sm:$0xff]
        %v1671 = vld [vmem:[%s1654 + $0x80] sm:$0xff]
        %v1672 = vld [vmem:[%s1654 + $0x88] sm:$0xff]
        %v1673 = vld [vmem:[%s1654 + $0x90] sm:$0xff]
        %v1674 = vld [vmem:[%s1654 + $0x98] sm:$0xff]
        %v1675 = vld [vmem:[%s1654 + $0xa0] sm:$0xff]
        %v1676 = vld [vmem:[%s1654 + $0xa8] sm:$0xff]
        %v1677 = vld [vmem:[%s1654 + $0xb0] sm:$0xff]
        %v1678 = vld [vmem:[%s1654 + $0xb8] sm:$0xff]
        %v1679 = vld [vmem:[%s1654 + $0xc0] sm:$0xff]
        %v1680 = vld [vmem:[%s1654 + $0xc8] sm:$0xff]
        %v1681 = vld [vmem:[%s1654 + $0xd0] sm:$0xff]
        %v1682 = vld [vmem:[%s1654 + $0xd8] sm:$0xff]
        %v1683 = vld [vmem:[%s1654 + $0xe0] sm:$0xff]
        %v1684 = vld [vmem:[%s1654 + $0xe8] sm:$0xff]
        %v1685 = vld [vmem:[%s1654 + $0xf0] sm:$0xff]
        %v1686 = vld [vmem:[%s1654 + $0xf8] sm:$0xff]
        %v1687 = vld [vmem:[%s1654 + $0x100] sm:$0xff]
        %v1688 = vld [vmem:[%s1654 + $0x108] sm:$0xff]
        %v1689 = vld [vmem:[%s1654 + $0x110] sm:$0xff]
        %v1690 = vld [vmem:[%s1654 + $0x118] sm:$0xff]
        %v1691 = vld [vmem:[%s1654 + $0x120] sm:$0xff]
        %v1692 = vld [vmem:[%s1654 + $0x128] sm:$0xff]
        %v1693 = vld [vmem:[%s1654 + $0x130] sm:$0xff]
        %v1694 = vld [vmem:[%s1654 + $0x138] sm:$0xff]
        %v1695 = vld [vmem:[%s1654 + $0x140] sm:$0xff]
        %v1696 = vld [vmem:[%s1654 + $0x148] sm:$0xff]
        %v1697 = vld [vmem:[%s1654 + $0x150] sm:$0xff]
        %v1698 = vld [vmem:[%s1654 + $0x158] sm:$0xff]
        %v1699 = vld [vmem:[%s1654 + $0x160] sm:$0xff]
        %v1700 = vld [vmem:[%s1654 + $0x168] sm:$0xff]
        %v1701 = vld [vmem:[%s1654 + $0x170] sm:$0xff]
        %v1702 = vld [vmem:[%s1654 + $0x178] sm:$0xff]
        %v1703 = vld [vmem:[%s1654 + $0x180] sm:$0xff]
        %v1704 = vld [vmem:[%s1654 + $0x188] sm:$0xff]
        %v1705 = vld [vmem:[%s1654 + $0x190] sm:$0xff]
        %v1706 = vld [vmem:[%s1654 + $0x198] sm:$0xff]
        %v1707 = vld [vmem:[%s1654 + $0x1a0] sm:$0xff]
        %v1708 = vld [vmem:[%s1654 + $0x1a8] sm:$0xff]
        %v1709 = vld [vmem:[%s1654 + $0x1b0] sm:$0xff]
        %v1710 = vld [vmem:[%s1654 + $0x1b8] sm:$0xff]
        %v1711 = vld [vmem:[%s1654 + $0x1c0] sm:$0xff]
        %v1712 = vld [vmem:[%s1654 + $0x1c8] sm:$0xff]
        %v1713 = vld [vmem:[%s1654 + $0x1d0] sm:$0xff]
        %v1714 = vld [vmem:[%s1654 + $0x1d8] sm:$0xff]
        %v1715 = vld [vmem:[%s1654 + $0x1e0] sm:$0xff]
        %v1716 = vld [vmem:[%s1654 + $0x1e8] sm:$0xff]
        %v1717 = vld [vmem:[%s1654 + $0x1f0] sm:$0xff]
        %v1718 = vld [vmem:[%s1654 + $0x1f8] sm:$0xff]
        %v1719 = vld [vmem:[%s1654 + $0x200] sm:$0xff]
        %v1720 = vld [vmem:[%s1654 + $0x208] sm:$0xff]
        %v1721 = vld [vmem:[%s1654 + $0x210] sm:$0xff]
        %v1722 = vld [vmem:[%s1654 + $0x218] sm:$0xff]
        %v1723 = vld [vmem:[%s1654 + $0x220] sm:$0xff]
        %v1724 = vld [vmem:[%s1654 + $0x228] sm:$0xff]
        %v1725 = vld [vmem:[%s1654 + $0x230] sm:$0xff]
        %v1726 = vld [vmem:[%s1654 + $0x238] sm:$0xff]
        %v1729 = vrot.slane %v1232, 1
        %v1730 = vrot.slane %v1233, 1
        %v1731 = vrot.slane %v1234, 1
        %v1734 = vsel %vm1407, %v1731, 0
        %1736 = vmatpush.msra.mxu0 %v1685
        %1737 = vmatpush.msra.mxu0 %v1683
        %1738 = vmatpush.msra.mxu0 %v1681
        %1739 = vmatpush.msra.mxu0 %v1679
        %1740 = vmatpush.msra.mxu0 %v1677
        %1741 = vmatpush.msra.mxu0 %v1675
        %1742 = vmatpush.msra.mxu0 %v1673
        %1743 = vmatpush.msra.mxu0 %v1671
        %1744 = vmatpush.msra.mxu0 %v1669
        %1745 = vmatpush.msra.mxu0 %v1667
        %1746 = vmatpush.msra.mxu0 %v1665
        %1747 = vmatpush.msra.mxu0 %v1663
        %1748 = vmatpush.msra.mxu0 %v1661
        %1749 = vmatpush.msra.mxu0 %v1659
        %1750 = vmatpush.msra.mxu0 %v1657
        %1751 = vmatpush.msra.mxu0 %v1655
        %1752 = vmatmul.f32.gmra.mxu0 %v1729
        %v1753 = vpop.f32.mrf.mxu0
        %v1754 = vadd.f32 0.0, %v1753
        %1755 = vdwg.mxu0
        %1756 = vmatpush.msra.mxu0 %v1717
        %1757 = vmatpush.msra.mxu0 %v1715
        %1758 = vmatpush.msra.mxu0 %v1713
        %1759 = vmatpush.msra.mxu0 %v1711
        %1760 = vmatpush.msra.mxu0 %v1709
        %1761 = vmatpush.msra.mxu0 %v1707
        %1762 = vmatpush.msra.mxu0 %v1705
        %1763 = vmatpush.msra.mxu0 %v1703
        %1764 = vmatpush.msra.mxu0 %v1701
        %1765 = vmatpush.msra.mxu0 %v1699
        %1766 = vmatpush.msra.mxu0 %v1697
        %1767 = vmatpush.msra.mxu0 %v1695
        %1768 = vmatpush.msra.mxu0 %v1693
        %1769 = vmatpush.msra.mxu0 %v1691
        %1770 = vmatpush.msra.mxu0 %v1689
        %1771 = vmatpush.msra.mxu0 %v1687
        %1772 = vmatmul.f32.gmra.mxu0 %v1730
        %v1773 = vpop.f32.mrf.mxu0
        %v1774 = vadd.f32 %v1754, %v1773
        %1775 = vdwg.mxu0
        %1776 = vmatpush.msra.mxu0 0.0
        %1777 = vmatpush.msra.mxu0 0.0
        %1778 = vmatpush.msra.mxu0 0.0
        %1779 = vmatpush.msra.mxu0 0.0
        %1780 = vmatpush.msra.mxu0 0.0
        %1781 = vmatpush.msra.mxu0 0.0
        %1782 = vmatpush.msra.mxu0 0.0
        %1783 = vmatpush.msra.mxu0 0.0
        %1784 = vmatpush.msra.mxu0 0.0
        %1785 = vmatpush.msra.mxu0 0.0
        %1786 = vmatpush.msra.mxu0 0.0
        %1787 = vmatpush.msra.mxu0 0.0
        %1788 = vmatpush.msra.mxu0 %v1725
        %1789 = vmatpush.msra.mxu0 %v1723
        %1790 = vmatpush.msra.mxu0 %v1721
        %1791 = vmatpush.msra.mxu0 %v1719
        %1792 = vmatmul.f32.gmra.mxu0 %v1734
        %v1793 = vpop.f32.mrf.mxu0
        %v1794 = vadd.f32 %v1774, %v1793
        %1795 = vdwg.mxu0
        %1796 = vmatpush.msra.mxu0 %v1686
        %1797 = vmatpush.msra.mxu0 %v1684
        %1798 = vmatpush.msra.mxu0 %v1682
        %1799 = vmatpush.msra.mxu0 %v1680
        %1800 = vmatpush.msra.mxu0 %v1678
        %1801 = vmatpush.msra.mxu0 %v1676
        %1802 = vmatpush.msra.mxu0 %v1674
        %1803 = vmatpush.msra.mxu0 %v1672
        %1804 = vmatpush.msra.mxu0 %v1670
        %1805 = vmatpush.msra.mxu0 %v1668
        %1806 = vmatpush.msra.mxu0 %v1666
        %1807 = vmatpush.msra.mxu0 %v1664
        %1808 = vmatpush.msra.mxu0 %v1662
        %1809 = vmatpush.msra.mxu0 %v1660
        %1810 = vmatpush.msra.mxu0 %v1658
        %1811 = vmatpush.msra.mxu0 %v1656
        %1812 = vmatmul.f32.gmra.mxu0 %v1729
        %v1813 = vpop.f32.mrf.mxu0
        %v1814 = vadd.f32 0.0, %v1813
        %1815 = vdwg.mxu0
        %1816 = vmatpush.msra.mxu0 %v1718
        %1817 = vmatpush.msra.mxu0 %v1716
        %1818 = vmatpush.msra.mxu0 %v1714
        %1819 = vmatpush.msra.mxu0 %v1712
        %1820 = vmatpush.msra.mxu0 %v1710
        %1821 = vmatpush.msra.mxu0 %v1708
        %1822 = vmatpush.msra.mxu0 %v1706
        %1823 = vmatpush.msra.mxu0 %v1704
        %1824 = vmatpush.msra.mxu0 %v1702
        %1825 = vmatpush.msra.mxu0 %v1700
        %1826 = vmatpush.msra.mxu0 %v1698
        %1827 = vmatpush.msra.mxu0 %v1696
        %1828 = vmatpush.msra.mxu0 %v1694
        %1829 = vmatpush.msra.mxu0 %v1692
        %1830 = vmatpush.msra.mxu0 %v1690
        %1831 = vmatpush.msra.mxu0 %v1688
        %1832 = vmatmul.f32.gmra.mxu0 %v1730
        %v1833 = vpop.f32.mrf.mxu0
        %v1834 = vadd.f32 %v1814, %v1833
        %1835 = vdwg.mxu0
        %1836 = vmatpush.msra.mxu0 0.0
        %1837 = vmatpush.msra.mxu0 0.0
        %1838 = vmatpush.msra.mxu0 0.0
        %1839 = vmatpush.msra.mxu0 0.0
        %1840 = vmatpush.msra.mxu0 0.0
        %1841 = vmatpush.msra.mxu0 0.0
        %1842 = vmatpush.msra.mxu0 0.0
        %1843 = vmatpush.msra.mxu0 0.0
        %1844 = vmatpush.msra.mxu0 0.0
        %1845 = vmatpush.msra.mxu0 0.0
        %1846 = vmatpush.msra.mxu0 0.0
        %1847 = vmatpush.msra.mxu0 0.0
        %1848 = vmatpush.msra.mxu0 %v1726
        %1849 = vmatpush.msra.mxu0 %v1724
        %1850 = vmatpush.msra.mxu0 %v1722
        %1851 = vmatpush.msra.mxu0 %v1720
        %1852 = vmatmul.f32.gmra.mxu0 %v1734
        %v1853 = vpop.f32.mrf.mxu0
        %v1854 = vadd.f32 %v1834, %v1853
        %1855 = vdwg.mxu0
        %v1856 = vadd.f32 %v1592, %v1794
        %v1857 = vadd.f32 %v1652, %v1854
        %s1858 = scalar_lea.vmem %s4, 1728
        %v1859 = vld [vmem:[%s1858] sm:$0xff]
        %v1860 = vld [vmem:[%s1858 + $0x8] sm:$0xff]
        %v1861 = vld [vmem:[%s1858 + $0x10] sm:$0xff]
        %v1862 = vld [vmem:[%s1858 + $0x18] sm:$0xff]
        %v1863 = vld [vmem:[%s1858 + $0x20] sm:$0xff]
        %v1864 = vld [vmem:[%s1858 + $0x28] sm:$0xff]
        %v1865 = vld [vmem:[%s1858 + $0x30] sm:$0xff]
        %v1866 = vld [vmem:[%s1858 + $0x38] sm:$0xff]
        %v1867 = vld [vmem:[%s1858 + $0x40] sm:$0xff]
        %v1868 = vld [vmem:[%s1858 + $0x48] sm:$0xff]
        %v1869 = vld [vmem:[%s1858 + $0x50] sm:$0xff]
        %v1870 = vld [vmem:[%s1858 + $0x58] sm:$0xff]
        %v1871 = vld [vmem:[%s1858 + $0x60] sm:$0xff]
        %v1872 = vld [vmem:[%s1858 + $0x68] sm:$0xff]
        %v1873 = vld [vmem:[%s1858 + $0x70] sm:$0xff]
        %v1874 = vld [vmem:[%s1858 + $0x78] sm:$0xff]
        %v1875 = vld [vmem:[%s1858 + $0x80] sm:$0xff]
        %v1876 = vld [vmem:[%s1858 + $0x88] sm:$0xff]
        %v1877 = vld [vmem:[%s1858 + $0x90] sm:$0xff]
        %v1878 = vld [vmem:[%s1858 + $0x98] sm:$0xff]
        %v1879 = vld [vmem:[%s1858 + $0xa0] sm:$0xff]
        %v1880 = vld [vmem:[%s1858 + $0xa8] sm:$0xff]
        %v1881 = vld [vmem:[%s1858 + $0xb0] sm:$0xff]
        %v1882 = vld [vmem:[%s1858 + $0xb8] sm:$0xff]
        %v1883 = vld [vmem:[%s1858 + $0xc0] sm:$0xff]
        %v1884 = vld [vmem:[%s1858 + $0xc8] sm:$0xff]
        %v1885 = vld [vmem:[%s1858 + $0xd0] sm:$0xff]
        %v1886 = vld [vmem:[%s1858 + $0xd8] sm:$0xff]
        %v1887 = vld [vmem:[%s1858 + $0xe0] sm:$0xff]
        %v1888 = vld [vmem:[%s1858 + $0xe8] sm:$0xff]
        %v1889 = vld [vmem:[%s1858 + $0xf0] sm:$0xff]
        %v1890 = vld [vmem:[%s1858 + $0xf8] sm:$0xff]
        %v1891 = vld [vmem:[%s1858 + $0x100] sm:$0xff]
        %v1892 = vld [vmem:[%s1858 + $0x108] sm:$0xff]
        %v1893 = vld [vmem:[%s1858 + $0x110] sm:$0xff]
        %v1894 = vld [vmem:[%s1858 + $0x118] sm:$0xff]
        %v1895 = vld [vmem:[%s1858 + $0x120] sm:$0xff]
        %v1896 = vld [vmem:[%s1858 + $0x128] sm:$0xff]
        %v1897 = vld [vmem:[%s1858 + $0x130] sm:$0xff]
        %v1898 = vld [vmem:[%s1858 + $0x138] sm:$0xff]
        %v1899 = vld [vmem:[%s1858 + $0x140] sm:$0xff]
        %v1900 = vld [vmem:[%s1858 + $0x148] sm:$0xff]
        %v1901 = vld [vmem:[%s1858 + $0x150] sm:$0xff]
        %v1902 = vld [vmem:[%s1858 + $0x158] sm:$0xff]
        %v1903 = vld [vmem:[%s1858 + $0x160] sm:$0xff]
        %v1904 = vld [vmem:[%s1858 + $0x168] sm:$0xff]
        %v1905 = vld [vmem:[%s1858 + $0x170] sm:$0xff]
        %v1906 = vld [vmem:[%s1858 + $0x178] sm:$0xff]
        %v1907 = vld [vmem:[%s1858 + $0x180] sm:$0xff]
        %v1908 = vld [vmem:[%s1858 + $0x188] sm:$0xff]
        %v1909 = vld [vmem:[%s1858 + $0x190] sm:$0xff]
        %v1910 = vld [vmem:[%s1858 + $0x198] sm:$0xff]
        %v1911 = vld [vmem:[%s1858 + $0x1a0] sm:$0xff]
        %v1912 = vld [vmem:[%s1858 + $0x1a8] sm:$0xff]
        %v1913 = vld [vmem:[%s1858 + $0x1b0] sm:$0xff]
        %v1914 = vld [vmem:[%s1858 + $0x1b8] sm:$0xff]
        %v1915 = vld [vmem:[%s1858 + $0x1c0] sm:$0xff]
        %v1916 = vld [vmem:[%s1858 + $0x1c8] sm:$0xff]
        %v1917 = vld [vmem:[%s1858 + $0x1d0] sm:$0xff]
        %v1918 = vld [vmem:[%s1858 + $0x1d8] sm:$0xff]
        %v1919 = vld [vmem:[%s1858 + $0x1e0] sm:$0xff]
        %v1920 = vld [vmem:[%s1858 + $0x1e8] sm:$0xff]
        %v1921 = vld [vmem:[%s1858 + $0x1f0] sm:$0xff]
        %v1922 = vld [vmem:[%s1858 + $0x1f8] sm:$0xff]
        %v1923 = vld [vmem:[%s1858 + $0x200] sm:$0xff]
        %v1924 = vld [vmem:[%s1858 + $0x208] sm:$0xff]
        %v1925 = vld [vmem:[%s1858 + $0x210] sm:$0xff]
        %v1926 = vld [vmem:[%s1858 + $0x218] sm:$0xff]
        %v1927 = vld [vmem:[%s1858 + $0x220] sm:$0xff]
        %v1928 = vld [vmem:[%s1858 + $0x228] sm:$0xff]
        %v1929 = vld [vmem:[%s1858 + $0x230] sm:$0xff]
        %v1930 = vld [vmem:[%s1858 + $0x238] sm:$0xff]
        %v1933 = vrot.slane %v1259, 1
        %v1934 = vrot.slane %v1260, 1
        %v1935 = vrot.slane %v1261, 1
        %v1938 = vsel %vm1407, %v1935, 0
        %1940 = vmatpush.msra.mxu0 %v1889
        %1941 = vmatpush.msra.mxu0 %v1887
        %1942 = vmatpush.msra.mxu0 %v1885
        %1943 = vmatpush.msra.mxu0 %v1883
        %1944 = vmatpush.msra.mxu0 %v1881
        %1945 = vmatpush.msra.mxu0 %v1879
        %1946 = vmatpush.msra.mxu0 %v1877
        %1947 = vmatpush.msra.mxu0 %v1875
        %1948 = vmatpush.msra.mxu0 %v1873
        %1949 = vmatpush.msra.mxu0 %v1871
        %1950 = vmatpush.msra.mxu0 %v1869
        %1951 = vmatpush.msra.mxu0 %v1867
        %1952 = vmatpush.msra.mxu0 %v1865
        %1953 = vmatpush.msra.mxu0 %v1863
        %1954 = vmatpush.msra.mxu0 %v1861
        %1955 = vmatpush.msra.mxu0 %v1859
        %1956 = vmatmul.f32.gmra.mxu0 %v1933
        %v1957 = vpop.f32.mrf.mxu0
        %v1958 = vadd.f32 0.0, %v1957
        %1959 = vdwg.mxu0
        %1960 = vmatpush.msra.mxu0 %v1921
        %1961 = vmatpush.msra.mxu0 %v1919
        %1962 = vmatpush.msra.mxu0 %v1917
        %1963 = vmatpush.msra.mxu0 %v1915
        %1964 = vmatpush.msra.mxu0 %v1913
        %1965 = vmatpush.msra.mxu0 %v1911
        %1966 = vmatpush.msra.mxu0 %v1909
        %1967 = vmatpush.msra.mxu0 %v1907
        %1968 = vmatpush.msra.mxu0 %v1905
        %1969 = vmatpush.msra.mxu0 %v1903
        %1970 = vmatpush.msra.mxu0 %v1901
        %1971 = vmatpush.msra.mxu0 %v1899
        %1972 = vmatpush.msra.mxu0 %v1897
        %1973 = vmatpush.msra.mxu0 %v1895
        %1974 = vmatpush.msra.mxu0 %v1893
        %1975 = vmatpush.msra.mxu0 %v1891
        %1976 = vmatmul.f32.gmra.mxu0 %v1934
        %v1977 = vpop.f32.mrf.mxu0
        %v1978 = vadd.f32 %v1958, %v1977
        %1979 = vdwg.mxu0
        %1980 = vmatpush.msra.mxu0 0.0
        %1981 = vmatpush.msra.mxu0 0.0
        %1982 = vmatpush.msra.mxu0 0.0
        %1983 = vmatpush.msra.mxu0 0.0
        %1984 = vmatpush.msra.mxu0 0.0
        %1985 = vmatpush.msra.mxu0 0.0
        %1986 = vmatpush.msra.mxu0 0.0
        %1987 = vmatpush.msra.mxu0 0.0
        %1988 = vmatpush.msra.mxu0 0.0
        %1989 = vmatpush.msra.mxu0 0.0
        %1990 = vmatpush.msra.mxu0 0.0
        %1991 = vmatpush.msra.mxu0 0.0
        %1992 = vmatpush.msra.mxu0 %v1929
        %1993 = vmatpush.msra.mxu0 %v1927
        %1994 = vmatpush.msra.mxu0 %v1925
        %1995 = vmatpush.msra.mxu0 %v1923
        %1996 = vmatmul.f32.gmra.mxu0 %v1938
        %v1997 = vpop.f32.mrf.mxu0
        %v1998 = vadd.f32 %v1978, %v1997
        %1999 = vdwg.mxu0
        %2000 = vmatpush.msra.mxu0 %v1890
        %2001 = vmatpush.msra.mxu0 %v1888
        %2002 = vmatpush.msra.mxu0 %v1886
        %2003 = vmatpush.msra.mxu0 %v1884
        %2004 = vmatpush.msra.mxu0 %v1882
        %2005 = vmatpush.msra.mxu0 %v1880
        %2006 = vmatpush.msra.mxu0 %v1878
        %2007 = vmatpush.msra.mxu0 %v1876
        %2008 = vmatpush.msra.mxu0 %v1874
        %2009 = vmatpush.msra.mxu0 %v1872
        %2010 = vmatpush.msra.mxu0 %v1870
        %2011 = vmatpush.msra.mxu0 %v1868
        %2012 = vmatpush.msra.mxu0 %v1866
        %2013 = vmatpush.msra.mxu0 %v1864
        %2014 = vmatpush.msra.mxu0 %v1862
        %2015 = vmatpush.msra.mxu0 %v1860
        %2016 = vmatmul.f32.gmra.mxu0 %v1933
        %v2017 = vpop.f32.mrf.mxu0
        %v2018 = vadd.f32 0.0, %v2017
        %2019 = vdwg.mxu0
        %2020 = vmatpush.msra.mxu0 %v1922
        %2021 = vmatpush.msra.mxu0 %v1920
        %2022 = vmatpush.msra.mxu0 %v1918
        %2023 = vmatpush.msra.mxu0 %v1916
        %2024 = vmatpush.msra.mxu0 %v1914
        %2025 = vmatpush.msra.mxu0 %v1912
        %2026 = vmatpush.msra.mxu0 %v1910
        %2027 = vmatpush.msra.mxu0 %v1908
        %2028 = vmatpush.msra.mxu0 %v1906
        %2029 = vmatpush.msra.mxu0 %v1904
        %2030 = vmatpush.msra.mxu0 %v1902
        %2031 = vmatpush.msra.mxu0 %v1900
        %2032 = vmatpush.msra.mxu0 %v1898
        %2033 = vmatpush.msra.mxu0 %v1896
        %2034 = vmatpush.msra.mxu0 %v1894
        %2035 = vmatpush.msra.mxu0 %v1892
        %2036 = vmatmul.f32.gmra.mxu0 %v1934
        %v2037 = vpop.f32.mrf.mxu0
        %v2038 = vadd.f32 %v2018, %v2037
        %2039 = vdwg.mxu0
        %2040 = vmatpush.msra.mxu0 0.0
        %2041 = vmatpush.msra.mxu0 0.0
        %2042 = vmatpush.msra.mxu0 0.0
        %2043 = vmatpush.msra.mxu0 0.0
        %2044 = vmatpush.msra.mxu0 0.0
        %2045 = vmatpush.msra.mxu0 0.0
        %2046 = vmatpush.msra.mxu0 0.0
        %2047 = vmatpush.msra.mxu0 0.0
        %2048 = vmatpush.msra.mxu0 0.0
        %2049 = vmatpush.msra.mxu0 0.0
        %2050 = vmatpush.msra.mxu0 0.0
        %2051 = vmatpush.msra.mxu0 0.0
        %2052 = vmatpush.msra.mxu0 %v1930
        %2053 = vmatpush.msra.mxu0 %v1928
        %2054 = vmatpush.msra.mxu0 %v1926
        %2055 = vmatpush.msra.mxu0 %v1924
        %2056 = vmatmul.f32.gmra.mxu0 %v1938
        %v2057 = vpop.f32.mrf.mxu0
        %v2058 = vadd.f32 %v2038, %v2057
        %2059 = vdwg.mxu0
        %v2060 = vadd.f32 %v1856, %v1998
        %v2061 = vadd.f32 %v1857, %v2058
        %s2062 = scalar_lea.vmem %s4, 2304
        %v2063 = vld [vmem:[%s2062] sm:$0xff]
        %v2064 = vld [vmem:[%s2062 + $0x8] sm:$0xff]
        %v2065 = vld [vmem:[%s2062 + $0x10] sm:$0xff]
        %v2066 = vld [vmem:[%s2062 + $0x18] sm:$0xff]
        %v2067 = vld [vmem:[%s2062 + $0x20] sm:$0xff]
        %v2068 = vld [vmem:[%s2062 + $0x28] sm:$0xff]
        %v2069 = vld [vmem:[%s2062 + $0x30] sm:$0xff]
        %v2070 = vld [vmem:[%s2062 + $0x38] sm:$0xff]
        %v2071 = vld [vmem:[%s2062 + $0x40] sm:$0xff]
        %v2072 = vld [vmem:[%s2062 + $0x48] sm:$0xff]
        %v2073 = vld [vmem:[%s2062 + $0x50] sm:$0xff]
        %v2074 = vld [vmem:[%s2062 + $0x58] sm:$0xff]
        %v2075 = vld [vmem:[%s2062 + $0x60] sm:$0xff]
        %v2076 = vld [vmem:[%s2062 + $0x68] sm:$0xff]
        %v2077 = vld [vmem:[%s2062 + $0x70] sm:$0xff]
        %v2078 = vld [vmem:[%s2062 + $0x78] sm:$0xff]
        %v2079 = vld [vmem:[%s2062 + $0x80] sm:$0xff]
        %v2080 = vld [vmem:[%s2062 + $0x88] sm:$0xff]
        %v2081 = vld [vmem:[%s2062 + $0x90] sm:$0xff]
        %v2082 = vld [vmem:[%s2062 + $0x98] sm:$0xff]
        %v2083 = vld [vmem:[%s2062 + $0xa0] sm:$0xff]
        %v2084 = vld [vmem:[%s2062 + $0xa8] sm:$0xff]
        %v2085 = vld [vmem:[%s2062 + $0xb0] sm:$0xff]
        %v2086 = vld [vmem:[%s2062 + $0xb8] sm:$0xff]
        %v2087 = vld [vmem:[%s2062 + $0xc0] sm:$0xff]
        %v2088 = vld [vmem:[%s2062 + $0xc8] sm:$0xff]
        %v2089 = vld [vmem:[%s2062 + $0xd0] sm:$0xff]
        %v2090 = vld [vmem:[%s2062 + $0xd8] sm:$0xff]
        %v2091 = vld [vmem:[%s2062 + $0xe0] sm:$0xff]
        %v2092 = vld [vmem:[%s2062 + $0xe8] sm:$0xff]
        %v2093 = vld [vmem:[%s2062 + $0xf0] sm:$0xff]
        %v2094 = vld [vmem:[%s2062 + $0xf8] sm:$0xff]
        %v2095 = vld [vmem:[%s2062 + $0x100] sm:$0xff]
        %v2096 = vld [vmem:[%s2062 + $0x108] sm:$0xff]
        %v2097 = vld [vmem:[%s2062 + $0x110] sm:$0xff]
        %v2098 = vld [vmem:[%s2062 + $0x118] sm:$0xff]
        %v2099 = vld [vmem:[%s2062 + $0x120] sm:$0xff]
        %v2100 = vld [vmem:[%s2062 + $0x128] sm:$0xff]
        %v2101 = vld [vmem:[%s2062 + $0x130] sm:$0xff]
        %v2102 = vld [vmem:[%s2062 + $0x138] sm:$0xff]
        %v2103 = vld [vmem:[%s2062 + $0x140] sm:$0xff]
        %v2104 = vld [vmem:[%s2062 + $0x148] sm:$0xff]
        %v2105 = vld [vmem:[%s2062 + $0x150] sm:$0xff]
        %v2106 = vld [vmem:[%s2062 + $0x158] sm:$0xff]
        %v2107 = vld [vmem:[%s2062 + $0x160] sm:$0xff]
        %v2108 = vld [vmem:[%s2062 + $0x168] sm:$0xff]
        %v2109 = vld [vmem:[%s2062 + $0x170] sm:$0xff]
        %v2110 = vld [vmem:[%s2062 + $0x178] sm:$0xff]
        %v2111 = vld [vmem:[%s2062 + $0x180] sm:$0xff]
        %v2112 = vld [vmem:[%s2062 + $0x188] sm:$0xff]
        %v2113 = vld [vmem:[%s2062 + $0x190] sm:$0xff]
        %v2114 = vld [vmem:[%s2062 + $0x198] sm:$0xff]
        %v2115 = vld [vmem:[%s2062 + $0x1a0] sm:$0xff]
        %v2116 = vld [vmem:[%s2062 + $0x1a8] sm:$0xff]
        %v2117 = vld [vmem:[%s2062 + $0x1b0] sm:$0xff]
        %v2118 = vld [vmem:[%s2062 + $0x1b8] sm:$0xff]
        %v2119 = vld [vmem:[%s2062 + $0x1c0] sm:$0xff]
        %v2120 = vld [vmem:[%s2062 + $0x1c8] sm:$0xff]
        %v2121 = vld [vmem:[%s2062 + $0x1d0] sm:$0xff]
        %v2122 = vld [vmem:[%s2062 + $0x1d8] sm:$0xff]
        %v2123 = vld [vmem:[%s2062 + $0x1e0] sm:$0xff]
        %v2124 = vld [vmem:[%s2062 + $0x1e8] sm:$0xff]
        %v2125 = vld [vmem:[%s2062 + $0x1f0] sm:$0xff]
        %v2126 = vld [vmem:[%s2062 + $0x1f8] sm:$0xff]
        %v2127 = vld [vmem:[%s2062 + $0x200] sm:$0xff]
        %v2128 = vld [vmem:[%s2062 + $0x208] sm:$0xff]
        %v2129 = vld [vmem:[%s2062 + $0x210] sm:$0xff]
        %v2130 = vld [vmem:[%s2062 + $0x218] sm:$0xff]
        %v2131 = vld [vmem:[%s2062 + $0x220] sm:$0xff]
        %v2132 = vld [vmem:[%s2062 + $0x228] sm:$0xff]
        %v2133 = vld [vmem:[%s2062 + $0x230] sm:$0xff]
        %v2134 = vld [vmem:[%s2062 + $0x238] sm:$0xff]
        %v2138 = vrot.slane %v1232, 2
        %v2139 = vrot.slane %v1158, 2
        %v2140 = vsel %vm1019, %v2138, %v2139
        %v2141 = vrot.slane %v1233, 2
        %v2142 = vrot.slane %v1159, 2
        %v2143 = vsel %vm1019, %v2141, %v2142
        %v2144 = vrot.slane %v1234, 2
        %v2145 = vrot.slane %v1160, 2
        %v2146 = vsel %vm1019, %v2144, %v2145
        %v2149 = vsel %vm1407, %v2146, 0
        %2151 = vmatpush.msra.mxu0 %v2093
        %2152 = vmatpush.msra.mxu0 %v2091
        %2153 = vmatpush.msra.mxu0 %v2089
        %2154 = vmatpush.msra.mxu0 %v2087
        %2155 = vmatpush.msra.mxu0 %v2085
        %2156 = vmatpush.msra.mxu0 %v2083
        %2157 = vmatpush.msra.mxu0 %v2081
        %2158 = vmatpush.msra.mxu0 %v2079
        %2159 = vmatpush.msra.mxu0 %v2077
        %2160 = vmatpush.msra.mxu0 %v2075
        %2161 = vmatpush.msra.mxu0 %v2073
        %2162 = vmatpush.msra.mxu0 %v2071
        %2163 = vmatpush.msra.mxu0 %v2069
        %2164 = vmatpush.msra.mxu0 %v2067
        %2165 = vmatpush.msra.mxu0 %v2065
        %2166 = vmatpush.msra.mxu0 %v2063
        %2167 = vmatmul.f32.gmra.mxu0 %v2140
        %v2168 = vpop.f32.mrf.mxu0
        %v2169 = vadd.f32 0.0, %v2168
        %2170 = vdwg.mxu0
        %2171 = vmatpush.msra.mxu0 %v2125
        %2172 = vmatpush.msra.mxu0 %v2123
        %2173 = vmatpush.msra.mxu0 %v2121
        %2174 = vmatpush.msra.mxu0 %v2119
        %2175 = vmatpush.msra.mxu0 %v2117
        %2176 = vmatpush.msra.mxu0 %v2115
        %2177 = vmatpush.msra.mxu0 %v2113
        %2178 = vmatpush.msra.mxu0 %v2111
        %2179 = vmatpush.msra.mxu0 %v2109
        %2180 = vmatpush.msra.mxu0 %v2107
        %2181 = vmatpush.msra.mxu0 %v2105
        %2182 = vmatpush.msra.mxu0 %v2103
        %2183 = vmatpush.msra.mxu0 %v2101
        %2184 = vmatpush.msra.mxu0 %v2099
        %2185 = vmatpush.msra.mxu0 %v2097
        %2186 = vmatpush.msra.mxu0 %v2095
        %2187 = vmatmul.f32.gmra.mxu0 %v2143
        %v2188 = vpop.f32.mrf.mxu0
        %v2189 = vadd.f32 %v2169, %v2188
        %2190 = vdwg.mxu0
        %2191 = vmatpush.msra.mxu0 0.0
        %2192 = vmatpush.msra.mxu0 0.0
        %2193 = vmatpush.msra.mxu0 0.0
        %2194 = vmatpush.msra.mxu0 0.0
        %2195 = vmatpush.msra.mxu0 0.0
        %2196 = vmatpush.msra.mxu0 0.0
        %2197 = vmatpush.msra.mxu0 0.0
        %2198 = vmatpush.msra.mxu0 0.0
        %2199 = vmatpush.msra.mxu0 0.0
        %2200 = vmatpush.msra.mxu0 0.0
        %2201 = vmatpush.msra.mxu0 0.0
        %2202 = vmatpush.msra.mxu0 0.0
        %2203 = vmatpush.msra.mxu0 %v2133
        %2204 = vmatpush.msra.mxu0 %v2131
        %2205 = vmatpush.msra.mxu0 %v2129
        %2206 = vmatpush.msra.mxu0 %v2127
        %2207 = vmatmul.f32.gmra.mxu0 %v2149
        %v2208 = vpop.f32.mrf.mxu0
        %v2209 = vadd.f32 %v2189, %v2208
        %2210 = vdwg.mxu0
        %2211 = vmatpush.msra.mxu0 %v2094
        %2212 = vmatpush.msra.mxu0 %v2092
        %2213 = vmatpush.msra.mxu0 %v2090
        %2214 = vmatpush.msra.mxu0 %v2088
        %2215 = vmatpush.msra.mxu0 %v2086
        %2216 = vmatpush.msra.mxu0 %v2084
        %2217 = vmatpush.msra.mxu0 %v2082
        %2218 = vmatpush.msra.mxu0 %v2080
        %2219 = vmatpush.msra.mxu0 %v2078
        %2220 = vmatpush.msra.mxu0 %v2076
        %2221 = vmatpush.msra.mxu0 %v2074
        %2222 = vmatpush.msra.mxu0 %v2072
        %2223 = vmatpush.msra.mxu0 %v2070
        %2224 = vmatpush.msra.mxu0 %v2068
        %2225 = vmatpush.msra.mxu0 %v2066
        %2226 = vmatpush.msra.mxu0 %v2064
        %2227 = vmatmul.f32.gmra.mxu0 %v2140
        %v2228 = vpop.f32.mrf.mxu0
        %v2229 = vadd.f32 0.0, %v2228
        %2230 = vdwg.mxu0
        %2231 = vmatpush.msra.mxu0 %v2126
        %2232 = vmatpush.msra.mxu0 %v2124
        %2233 = vmatpush.msra.mxu0 %v2122
        %2234 = vmatpush.msra.mxu0 %v2120
        %2235 = vmatpush.msra.mxu0 %v2118
        %2236 = vmatpush.msra.mxu0 %v2116
        %2237 = vmatpush.msra.mxu0 %v2114
        %2238 = vmatpush.msra.mxu0 %v2112
        %2239 = vmatpush.msra.mxu0 %v2110
        %2240 = vmatpush.msra.mxu0 %v2108
        %2241 = vmatpush.msra.mxu0 %v2106
        %2242 = vmatpush.msra.mxu0 %v2104
        %2243 = vmatpush.msra.mxu0 %v2102
        %2244 = vmatpush.msra.mxu0 %v2100
        %2245 = vmatpush.msra.mxu0 %v2098
        %2246 = vmatpush.msra.mxu0 %v2096
        %2247 = vmatmul.f32.gmra.mxu0 %v2143
        %v2248 = vpop.f32.mrf.mxu0
        %v2249 = vadd.f32 %v2229, %v2248
        %2250 = vdwg.mxu0
        %2251 = vmatpush.msra.mxu0 0.0
        %2252 = vmatpush.msra.mxu0 0.0
        %2253 = vmatpush.msra.mxu0 0.0
        %2254 = vmatpush.msra.mxu0 0.0
        %2255 = vmatpush.msra.mxu0 0.0
        %2256 = vmatpush.msra.mxu0 0.0
        %2257 = vmatpush.msra.mxu0 0.0
        %2258 = vmatpush.msra.mxu0 0.0
        %2259 = vmatpush.msra.mxu0 0.0
        %2260 = vmatpush.msra.mxu0 0.0
        %2261 = vmatpush.msra.mxu0 0.0
        %2262 = vmatpush.msra.mxu0 0.0
        %2263 = vmatpush.msra.mxu0 %v2134
        %2264 = vmatpush.msra.mxu0 %v2132
        %2265 = vmatpush.msra.mxu0 %v2130
        %2266 = vmatpush.msra.mxu0 %v2128
        %2267 = vmatmul.f32.gmra.mxu0 %v2149
        %v2268 = vpop.f32.mrf.mxu0
        %v2269 = vadd.f32 %v2249, %v2268
        %2270 = vdwg.mxu0
        %v2271 = vadd.f32 %v2060, %v2209
        %v2272 = vadd.f32 %v2061, %v2269
        %v2273 = vld [vmem:[%s5] sm:$0x3]
        %v2275 = vperm.slane %v2273, 0
        %v2276 = vperm.slane %v2273, 1
        %v2279 = vmul.f32 %v2271, %v2275
        %v2280 = vmul.f32 %v2272, %v2276
        %v2281 = vld [vmem:[%s6] sm:$0x3]
        %v2283 = vperm.slane %v2281, 0
        %v2284 = vperm.slane %v2281, 1
        %v2287 = vadd.f32 %v2279, %v2283
        %v2288 = vadd.f32 %v2280, %v2284
        %v2289 = vmax.f32 %v2287, 0.0
        %v2290 = vmax.f32 %v2288, 0.0
        %v2293 = vrot.slane %v2289, 1
        %v2294 = vrot.slane %v2290, 1
        %v2297 = vrot.slane %v2289, 2
        %v2298 = vrot.slane %v2290, 2
        %v2301 = vrot.slane %v2289, 3
        %v2302 = vrot.slane %v2290, 3
        %v2305 = vsel %vm1209, %v2289, %v2293
        %v2306 = vsel %vm1209, %v2290, %v2294
        %v2307 = vsel %vm1213, %v2305, %v2297
        %v2308 = vsel %vm1213, %v2306, %v2298
        %v2309 = vsel %vm1217, %v2307, %v2301
        %v2310 = vsel %vm1217, %v2308, %v2302
        %v2311 = vsel %vm1209, %v2293, %v2297
        %v2312 = vsel %vm1209, %v2294, %v2298
        %v2313 = vsel %vm1213, %v2311, %v2301
        %v2314 = vsel %vm1213, %v2312, %v2302
        %v2315 = vld [vmem:[%s7] sm:$0xff]
        %v2316 = vld [vmem:[%s7 + $0x8] sm:$0xff]
        %v2317 = vld [vmem:[%s7 + $0x10] sm:$0xff]
        %v2318 = vld [vmem:[%s7 + $0x18] sm:$0xff]
        %v2319 = vld [vmem:[%s7 + $0x20] sm:$0xff]
        %v2320 = vld [vmem:[%s7 + $0x28] sm:$0xff]
        %v2321 = vld [vmem:[%s7 + $0x30] sm:$0xff]
        %v2322 = vld [vmem:[%s7 + $0x38] sm:$0xff]
        %v2323 = vld [vmem:[%s7 + $0x40] sm:$0xff]
        %v2324 = vld [vmem:[%s7 + $0x48] sm:$0xff]
        %v2325 = vld [vmem:[%s7 + $0x50] sm:$0xff]
        %v2326 = vld [vmem:[%s7 + $0x58] sm:$0xff]
        %v2327 = vld [vmem:[%s7 + $0x60] sm:$0xff]
        %v2328 = vld [vmem:[%s7 + $0x68] sm:$0xff]
        %v2329 = vld [vmem:[%s7 + $0x70] sm:$0xff]
        %v2330 = vld [vmem:[%s7 + $0x78] sm:$0xff]
        %v2331 = vld [vmem:[%s7 + $0x80] sm:$0xff]
        %v2332 = vld [vmem:[%s7 + $0x88] sm:$0xff]
        %v2333 = vld [vmem:[%s7 + $0x90] sm:$0xff]
        %v2334 = vld [vmem:[%s7 + $0x98] sm:$0xff]
        %v2335 = vld [vmem:[%s7 + $0xa0] sm:$0xff]
        %v2336 = vld [vmem:[%s7 + $0xa8] sm:$0xff]
        %v2337 = vld [vmem:[%s7 + $0xb0] sm:$0xff]
        %v2338 = vld [vmem:[%s7 + $0xb8] sm:$0xff]
        %v2339 = vld [vmem:[%s7 + $0xc0] sm:$0xff]
        %v2340 = vld [vmem:[%s7 + $0xc8] sm:$0xff]
        %v2341 = vld [vmem:[%s7 + $0xd0] sm:$0xff]
        %v2342 = vld [vmem:[%s7 + $0xd8] sm:$0xff]
        %s2343 = scalar_lea.vmem %s7, 224
        %v2344 = vld [vmem:[%s2343] sm:$0xff]
        %v2345 = vld [vmem:[%s2343 + $0x8] sm:$0xff]
        %v2346 = vld [vmem:[%s2343 + $0x10] sm:$0xff]
        %v2347 = vld [vmem:[%s2343 + $0x18] sm:$0xff]
        %v2348 = vld [vmem:[%s2343 + $0x20] sm:$0xff]
        %v2349 = vld [vmem:[%s2343 + $0x28] sm:$0xff]
        %v2350 = vld [vmem:[%s2343 + $0x30] sm:$0xff]
        %v2351 = vld [vmem:[%s2343 + $0x38] sm:$0xff]
        %v2352 = vld [vmem:[%s2343 + $0x40] sm:$0xff]
        %v2353 = vld [vmem:[%s2343 + $0x48] sm:$0xff]
        %v2354 = vld [vmem:[%s2343 + $0x50] sm:$0xff]
        %v2355 = vld [vmem:[%s2343 + $0x58] sm:$0xff]
        %v2356 = vld [vmem:[%s2343 + $0x60] sm:$0xff]
        %v2357 = vld [vmem:[%s2343 + $0x68] sm:$0xff]
        %v2358 = vld [vmem:[%s2343 + $0x70] sm:$0xff]
        %v2359 = vld [vmem:[%s2343 + $0x78] sm:$0xff]
        %v2360 = vld [vmem:[%s2343 + $0x80] sm:$0xff]
        %v2361 = vld [vmem:[%s2343 + $0x88] sm:$0xff]
        %v2362 = vld [vmem:[%s2343 + $0x90] sm:$0xff]
        %v2363 = vld [vmem:[%s2343 + $0x98] sm:$0xff]
        %v2364 = vld [vmem:[%s2343 + $0xa0] sm:$0xff]
        %v2365 = vld [vmem:[%s2343 + $0xa8] sm:$0xff]
        %v2366 = vld [vmem:[%s2343 + $0xb0] sm:$0xff]
        %v2367 = vld [vmem:[%s2343 + $0xb8] sm:$0xff]
        %v2368 = vld [vmem:[%s2343 + $0xc0] sm:$0xff]
        %v2369 = vld [vmem:[%s2343 + $0xc8] sm:$0xff]
        %v2370 = vld [vmem:[%s2343 + $0xd0] sm:$0xff]
        %v2371 = vld [vmem:[%s2343 + $0xd8] sm:$0xff]
        %vm2372 = vcmask 785408
        %v2374 = vsel %vm2372, %v2314, 0
        %2376 = vmatpush.msra.mxu0 %v2359
        %2377 = vmatpush.msra.mxu0 %v2358
        %2378 = vmatpush.msra.mxu0 %v2357
        %2379 = vmatpush.msra.mxu0 %v2356
        %2380 = vmatpush.msra.mxu0 %v2355
        %2381 = vmatpush.msra.mxu0 %v2354
        %2382 = vmatpush.msra.mxu0 %v2353
        %2383 = vmatpush.msra.mxu0 %v2352
        %2384 = vmatpush.msra.mxu0 %v2351
        %2385 = vmatpush.msra.mxu0 %v2350
        %2386 = vmatpush.msra.mxu0 %v2349
        %2387 = vmatpush.msra.mxu0 %v2348
        %2388 = vmatpush.msra.mxu0 %v2347
        %2389 = vmatpush.msra.mxu0 %v2346
        %2390 = vmatpush.msra.mxu0 %v2345
        %2391 = vmatpush.msra.mxu0 %v2344
        %2392 = vmatmul.f32.gmra.mxu0 %v2313
        %v2393 = vpop.f32.mrf.mxu0
        %v2394 = vadd.f32 0.0, %v2393
        %2395 = vdwg.mxu0
        %2396 = vmatpush.msra.mxu0 0.0
        %2397 = vmatpush.msra.mxu0 0.0
        %2398 = vmatpush.msra.mxu0 0.0
        %2399 = vmatpush.msra.mxu0 0.0
        %2400 = vmatpush.msra.mxu0 %v2371
        %2401 = vmatpush.msra.mxu0 %v2370
        %2402 = vmatpush.msra.mxu0 %v2369
        %2403 = vmatpush.msra.mxu0 %v2368
        %2404 = vmatpush.msra.mxu0 %v2367
        %2405 = vmatpush.msra.mxu0 %v2366
        %2406 = vmatpush.msra.mxu0 %v2365
        %2407 = vmatpush.msra.mxu0 %v2364
        %2408 = vmatpush.msra.mxu0 %v2363
        %2409 = vmatpush.msra.mxu0 %v2362
        %2410 = vmatpush.msra.mxu0 %v2361
        %2411 = vmatpush.msra.mxu0 %v2360
        %2412 = vmatmul.f32.gmra.mxu0 %v2374
        %v2413 = vpop.f32.mrf.mxu0
        %v2414 = vadd.f32 %v2394, %v2413
        %2415 = vdwg.mxu0
        %v2417 = vsel %vm2372, %v2310, 0
        %2419 = vmatpush.msra.mxu0 %v2330
        %2420 = vmatpush.msra.mxu0 %v2329
        %2421 = vmatpush.msra.mxu0 %v2328
        %2422 = vmatpush.msra.mxu0 %v2327
        %2423 = vmatpush.msra.mxu0 %v2326
        %2424 = vmatpush.msra.mxu0 %v2325
        %2425 = vmatpush.msra.mxu0 %v2324
        %2426 = vmatpush.msra.mxu0 %v2323
        %2427 = vmatpush.msra.mxu0 %v2322
        %2428 = vmatpush.msra.mxu0 %v2321
        %2429 = vmatpush.msra.mxu0 %v2320
        %2430 = vmatpush.msra.mxu0 %v2319
        %2431 = vmatpush.msra.mxu0 %v2318
        %2432 = vmatpush.msra.mxu0 %v2317
        %2433 = vmatpush.msra.mxu0 %v2316
        %2434 = vmatpush.msra.mxu0 %v2315
        %2435 = vmatmul.f32.gmra.mxu0 %v2309
        %v2436 = vpop.f32.mrf.mxu0
        %v2437 = vadd.f32 %v2414, %v2436
        %2438 = vdwg.mxu0
        %2439 = vmatpush.msra.mxu0 0.0
        %2440 = vmatpush.msra.mxu0 0.0
        %2441 = vmatpush.msra.mxu0 0.0
        %2442 = vmatpush.msra.mxu0 0.0
        %2443 = vmatpush.msra.mxu0 %v2342
        %2444 = vmatpush.msra.mxu0 %v2341
        %2445 = vmatpush.msra.mxu0 %v2340
        %2446 = vmatpush.msra.mxu0 %v2339
        %2447 = vmatpush.msra.mxu0 %v2338
        %2448 = vmatpush.msra.mxu0 %v2337
        %2449 = vmatpush.msra.mxu0 %v2336
        %2450 = vmatpush.msra.mxu0 %v2335
        %2451 = vmatpush.msra.mxu0 %v2334
        %2452 = vmatpush.msra.mxu0 %v2333
        %2453 = vmatpush.msra.mxu0 %v2332
        %2454 = vmatpush.msra.mxu0 %v2331
        %2455 = vmatmul.f32.gmra.mxu0 %v2417
        %v2456 = vpop.f32.mrf.mxu0
        %v2457 = vadd.f32 %v2437, %v2456
        %2458 = vdwg.mxu0
        %s2459 = scalar_lea.vmem %s7, 448
        %v2460 = vld [vmem:[%s2459] sm:$0xff]
        %v2461 = vld [vmem:[%s2459 + $0x8] sm:$0xff]
        %v2462 = vld [vmem:[%s2459 + $0x10] sm:$0xff]
        %v2463 = vld [vmem:[%s2459 + $0x18] sm:$0xff]
        %v2464 = vld [vmem:[%s2459 + $0x20] sm:$0xff]
        %v2465 = vld [vmem:[%s2459 + $0x28] sm:$0xff]
        %v2466 = vld [vmem:[%s2459 + $0x30] sm:$0xff]
        %v2467 = vld [vmem:[%s2459 + $0x38] sm:$0xff]
        %v2468 = vld [vmem:[%s2459 + $0x40] sm:$0xff]
        %v2469 = vld [vmem:[%s2459 + $0x48] sm:$0xff]
        %v2470 = vld [vmem:[%s2459 + $0x50] sm:$0xff]
        %v2471 = vld [vmem:[%s2459 + $0x58] sm:$0xff]
        %v2472 = vld [vmem:[%s2459 + $0x60] sm:$0xff]
        %v2473 = vld [vmem:[%s2459 + $0x68] sm:$0xff]
        %v2474 = vld [vmem:[%s2459 + $0x70] sm:$0xff]
        %v2475 = vld [vmem:[%s2459 + $0x78] sm:$0xff]
        %v2476 = vld [vmem:[%s2459 + $0x80] sm:$0xff]
        %v2477 = vld [vmem:[%s2459 + $0x88] sm:$0xff]
        %v2478 = vld [vmem:[%s2459 + $0x90] sm:$0xff]
        %v2479 = vld [vmem:[%s2459 + $0x98] sm:$0xff]
        %v2480 = vld [vmem:[%s2459 + $0xa0] sm:$0xff]
        %v2481 = vld [vmem:[%s2459 + $0xa8] sm:$0xff]
        %v2482 = vld [vmem:[%s2459 + $0xb0] sm:$0xff]
        %v2483 = vld [vmem:[%s2459 + $0xb8] sm:$0xff]
        %v2484 = vld [vmem:[%s2459 + $0xc0] sm:$0xff]
        %v2485 = vld [vmem:[%s2459 + $0xc8] sm:$0xff]
        %v2486 = vld [vmem:[%s2459 + $0xd0] sm:$0xff]
        %v2487 = vld [vmem:[%s2459 + $0xd8] sm:$0xff]
        %v2489 = vrot.slane %v2309, 1
        %v2490 = vrot.slane %v2310, 1
        %v2492 = vsel %vm2372, %v2490, 0
        %2494 = vmatpush.msra.mxu0 %v2475
        %2495 = vmatpush.msra.mxu0 %v2474
        %2496 = vmatpush.msra.mxu0 %v2473
        %2497 = vmatpush.msra.mxu0 %v2472
        %2498 = vmatpush.msra.mxu0 %v2471
        %2499 = vmatpush.msra.mxu0 %v2470
        %2500 = vmatpush.msra.mxu0 %v2469
        %2501 = vmatpush.msra.mxu0 %v2468
        %2502 = vmatpush.msra.mxu0 %v2467
        %2503 = vmatpush.msra.mxu0 %v2466
        %2504 = vmatpush.msra.mxu0 %v2465
        %2505 = vmatpush.msra.mxu0 %v2464
        %2506 = vmatpush.msra.mxu0 %v2463
        %2507 = vmatpush.msra.mxu0 %v2462
        %2508 = vmatpush.msra.mxu0 %v2461
        %2509 = vmatpush.msra.mxu0 %v2460
        %2510 = vmatmul.f32.gmra.mxu0 %v2489
        %v2511 = vpop.f32.mrf.mxu0
        %v2512 = vadd.f32 0.0, %v2511
        %2513 = vdwg.mxu0
        %2514 = vmatpush.msra.mxu0 0.0
        %2515 = vmatpush.msra.mxu0 0.0
        %2516 = vmatpush.msra.mxu0 0.0
        %2517 = vmatpush.msra.mxu0 0.0
        %2518 = vmatpush.msra.mxu0 %v2487
        %2519 = vmatpush.msra.mxu0 %v2486
        %2520 = vmatpush.msra.mxu0 %v2485
        %2521 = vmatpush.msra.mxu0 %v2484
        %2522 = vmatpush.msra.mxu0 %v2483
        %2523 = vmatpush.msra.mxu0 %v2482
        %2524 = vmatpush.msra.mxu0 %v2481
        %2525 = vmatpush.msra.mxu0 %v2480
        %2526 = vmatpush.msra.mxu0 %v2479
        %2527 = vmatpush.msra.mxu0 %v2478
        %2528 = vmatpush.msra.mxu0 %v2477
        %2529 = vmatpush.msra.mxu0 %v2476
        %2530 = vmatmul.f32.gmra.mxu0 %v2492
        %v2531 = vpop.f32.mrf.mxu0
        %v2532 = vadd.f32 %v2512, %v2531
        %2533 = vdwg.mxu0
        %v2534 = vadd.f32 %v2457, %v2532
        %s2535 = scalar_lea.vmem %s7, 672
        %v2536 = vld [vmem:[%s2535] sm:$0xff]
        %v2537 = vld [vmem:[%s2535 + $0x8] sm:$0xff]
        %v2538 = vld [vmem:[%s2535 + $0x10] sm:$0xff]
        %v2539 = vld [vmem:[%s2535 + $0x18] sm:$0xff]
        %v2540 = vld [vmem:[%s2535 + $0x20] sm:$0xff]
        %v2541 = vld [vmem:[%s2535 + $0x28] sm:$0xff]
        %v2542 = vld [vmem:[%s2535 + $0x30] sm:$0xff]
        %v2543 = vld [vmem:[%s2535 + $0x38] sm:$0xff]
        %v2544 = vld [vmem:[%s2535 + $0x40] sm:$0xff]
        %v2545 = vld [vmem:[%s2535 + $0x48] sm:$0xff]
        %v2546 = vld [vmem:[%s2535 + $0x50] sm:$0xff]
        %v2547 = vld [vmem:[%s2535 + $0x58] sm:$0xff]
        %v2548 = vld [vmem:[%s2535 + $0x60] sm:$0xff]
        %v2549 = vld [vmem:[%s2535 + $0x68] sm:$0xff]
        %v2550 = vld [vmem:[%s2535 + $0x70] sm:$0xff]
        %v2551 = vld [vmem:[%s2535 + $0x78] sm:$0xff]
        %v2552 = vld [vmem:[%s2535 + $0x80] sm:$0xff]
        %v2553 = vld [vmem:[%s2535 + $0x88] sm:$0xff]
        %v2554 = vld [vmem:[%s2535 + $0x90] sm:$0xff]
        %v2555 = vld [vmem:[%s2535 + $0x98] sm:$0xff]
        %v2556 = vld [vmem:[%s2535 + $0xa0] sm:$0xff]
        %v2557 = vld [vmem:[%s2535 + $0xa8] sm:$0xff]
        %v2558 = vld [vmem:[%s2535 + $0xb0] sm:$0xff]
        %v2559 = vld [vmem:[%s2535 + $0xb8] sm:$0xff]
        %v2560 = vld [vmem:[%s2535 + $0xc0] sm:$0xff]
        %v2561 = vld [vmem:[%s2535 + $0xc8] sm:$0xff]
        %v2562 = vld [vmem:[%s2535 + $0xd0] sm:$0xff]
        %v2563 = vld [vmem:[%s2535 + $0xd8] sm:$0xff]
        %v2565 = vrot.slane %v2313, 1
        %v2566 = vrot.slane %v2314, 1
        %v2568 = vsel %vm2372, %v2566, 0
        %2570 = vmatpush.msra.mxu0 %v2551
        %2571 = vmatpush.msra.mxu0 %v2550
        %2572 = vmatpush.msra.mxu0 %v2549
        %2573 = vmatpush.msra.mxu0 %v2548
        %2574 = vmatpush.msra.mxu0 %v2547
        %2575 = vmatpush.msra.mxu0 %v2546
        %2576 = vmatpush.msra.mxu0 %v2545
        %2577 = vmatpush.msra.mxu0 %v2544
        %2578 = vmatpush.msra.mxu0 %v2543
        %2579 = vmatpush.msra.mxu0 %v2542
        %2580 = vmatpush.msra.mxu0 %v2541
        %2581 = vmatpush.msra.mxu0 %v2540
        %2582 = vmatpush.msra.mxu0 %v2539
        %2583 = vmatpush.msra.mxu0 %v2538
        %2584 = vmatpush.msra.mxu0 %v2537
        %2585 = vmatpush.msra.mxu0 %v2536
        %2586 = vmatmul.f32.gmra.mxu0 %v2565
        %v2587 = vpop.f32.mrf.mxu0
        %v2588 = vadd.f32 0.0, %v2587
        %2589 = vdwg.mxu0
        %2590 = vmatpush.msra.mxu0 0.0
        %2591 = vmatpush.msra.mxu0 0.0
        %2592 = vmatpush.msra.mxu0 0.0
        %2593 = vmatpush.msra.mxu0 0.0
        %2594 = vmatpush.msra.mxu0 %v2563
        %2595 = vmatpush.msra.mxu0 %v2562
        %2596 = vmatpush.msra.mxu0 %v2561
        %2597 = vmatpush.msra.mxu0 %v2560
        %2598 = vmatpush.msra.mxu0 %v2559
        %2599 = vmatpush.msra.mxu0 %v2558
        %2600 = vmatpush.msra.mxu0 %v2557
        %2601 = vmatpush.msra.mxu0 %v2556
        %2602 = vmatpush.msra.mxu0 %v2555
        %2603 = vmatpush.msra.mxu0 %v2554
        %2604 = vmatpush.msra.mxu0 %v2553
        %2605 = vmatpush.msra.mxu0 %v2552
        %2606 = vmatmul.f32.gmra.mxu0 %v2568
        %v2607 = vpop.f32.mrf.mxu0
        %v2608 = vadd.f32 %v2588, %v2607
        %2609 = vdwg.mxu0
        %v2610 = vadd.f32 %v2534, %v2608
        %s2611 = scalar_lea.vmem %s7, 896
        %v2612 = vld [vmem:[%s2611] sm:$0xff]
        %v2613 = vld [vmem:[%s2611 + $0x8] sm:$0xff]
        %v2614 = vld [vmem:[%s2611 + $0x10] sm:$0xff]
        %v2615 = vld [vmem:[%s2611 + $0x18] sm:$0xff]
        %v2616 = vld [vmem:[%s2611 + $0x20] sm:$0xff]
        %v2617 = vld [vmem:[%s2611 + $0x28] sm:$0xff]
        %v2618 = vld [vmem:[%s2611 + $0x30] sm:$0xff]
        %v2619 = vld [vmem:[%s2611 + $0x38] sm:$0xff]
        %v2620 = vld [vmem:[%s2611 + $0x40] sm:$0xff]
        %v2621 = vld [vmem:[%s2611 + $0x48] sm:$0xff]
        %v2622 = vld [vmem:[%s2611 + $0x50] sm:$0xff]
        %v2623 = vld [vmem:[%s2611 + $0x58] sm:$0xff]
        %v2624 = vld [vmem:[%s2611 + $0x60] sm:$0xff]
        %v2625 = vld [vmem:[%s2611 + $0x68] sm:$0xff]
        %v2626 = vld [vmem:[%s2611 + $0x70] sm:$0xff]
        %v2627 = vld [vmem:[%s2611 + $0x78] sm:$0xff]
        %v2628 = vld [vmem:[%s2611 + $0x80] sm:$0xff]
        %v2629 = vld [vmem:[%s2611 + $0x88] sm:$0xff]
        %v2630 = vld [vmem:[%s2611 + $0x90] sm:$0xff]
        %v2631 = vld [vmem:[%s2611 + $0x98] sm:$0xff]
        %v2632 = vld [vmem:[%s2611 + $0xa0] sm:$0xff]
        %v2633 = vld [vmem:[%s2611 + $0xa8] sm:$0xff]
        %v2634 = vld [vmem:[%s2611 + $0xb0] sm:$0xff]
        %v2635 = vld [vmem:[%s2611 + $0xb8] sm:$0xff]
        %v2636 = vld [vmem:[%s2611 + $0xc0] sm:$0xff]
        %v2637 = vld [vmem:[%s2611 + $0xc8] sm:$0xff]
        %v2638 = vld [vmem:[%s2611 + $0xd0] sm:$0xff]
        %v2639 = vld [vmem:[%s2611 + $0xd8] sm:$0xff]
        %v2640 = vrot.slane %v2309, 2
        %v2641 = vrot.slane %v2310, 2
        %v2643 = vsel %vm2372, %v2641, 0
        %2645 = vmatpush.msra.mxu0 %v2627
        %2646 = vmatpush.msra.mxu0 %v2626
        %2647 = vmatpush.msra.mxu0 %v2625
        %2648 = vmatpush.msra.mxu0 %v2624
        %2649 = vmatpush.msra.mxu0 %v2623
        %2650 = vmatpush.msra.mxu0 %v2622
        %2651 = vmatpush.msra.mxu0 %v2621
        %2652 = vmatpush.msra.mxu0 %v2620
        %2653 = vmatpush.msra.mxu0 %v2619
        %2654 = vmatpush.msra.mxu0 %v2618
        %2655 = vmatpush.msra.mxu0 %v2617
        %2656 = vmatpush.msra.mxu0 %v2616
        %2657 = vmatpush.msra.mxu0 %v2615
        %2658 = vmatpush.msra.mxu0 %v2614
        %2659 = vmatpush.msra.mxu0 %v2613
        %2660 = vmatpush.msra.mxu0 %v2612
        %2661 = vmatmul.f32.gmra.mxu0 %v2640
        %v2662 = vpop.f32.mrf.mxu0
        %v2663 = vadd.f32 0.0, %v2662
        %2664 = vdwg.mxu0
        %2665 = vmatpush.msra.mxu0 0.0
        %2666 = vmatpush.msra.mxu0 0.0
        %2667 = vmatpush.msra.mxu0 0.0
        %2668 = vmatpush.msra.mxu0 0.0
        %2669 = vmatpush.msra.mxu0 %v2639
        %2670 = vmatpush.msra.mxu0 %v2638
        %2671 = vmatpush.msra.mxu0 %v2637
        %2672 = vmatpush.msra.mxu0 %v2636
        %2673 = vmatpush.msra.mxu0 %v2635
        %2674 = vmatpush.msra.mxu0 %v2634
        %2675 = vmatpush.msra.mxu0 %v2633
        %2676 = vmatpush.msra.mxu0 %v2632
        %2677 = vmatpush.msra.mxu0 %v2631
        %2678 = vmatpush.msra.mxu0 %v2630
        %2679 = vmatpush.msra.mxu0 %v2629
        %2680 = vmatpush.msra.mxu0 %v2628
        %2681 = vmatmul.f32.gmra.mxu0 %v2643
        %v2682 = vpop.f32.mrf.mxu0
        %v2683 = vadd.f32 %v2663, %v2682
        %2684 = vdwg.mxu0
        %v2685 = vadd.f32 %v2610, %v2683
        %v2686 = vld [vmem:[%s8] sm:$0x1]
        %v2688 = vperm.slane %v2686, 0
        %v2690 = vmul.f32 %v2685, %v2688
        %v2691 = vld [vmem:[%s9] sm:$0x1]
        %v2693 = vperm.slane %v2691, 0
        %v2695 = vadd.f32 %v2690, %v2693
        %v2696 = vmax.f32 %v2695, 0.0
        %v2697 = vld [vmem:[%s11] sm:$0x1]
        %v2698 = vld [vmem:[%s10] sm:$0xff]
        %v2699 = vld [vmem:[%s10 + $0x8] sm:$0xff]
        %v2700 = vld [vmem:[%s10 + $0x10] sm:$0xff]
        %v2701 = vld [vmem:[%s10 + $0x18] sm:$0xff]
        %v2702 = vld [vmem:[%s10 + $0x20] sm:$0xff]
        %v2703 = vld [vmem:[%s10 + $0x28] sm:$0xff]
        %v2704 = vld [vmem:[%s10 + $0x30] sm:$0xff]
        %v2705 = vld [vmem:[%s10 + $0x38] sm:$0xff]
        %vm2706 = vcmask 523264
        %v2708 = vsel %vm2706, %v2696, 0
        %2710 = vmatpush.msra.mxu0 0.0
        %2711 = vmatpush.msra.mxu0 0.0
        %2712 = vmatpush.msra.mxu0 0.0
        %2713 = vmatpush.msra.mxu0 0.0
        %2714 = vmatpush.msra.mxu0 0.0
        %2715 = vmatpush.msra.mxu0 0.0
        %2716 = vmatpush.msra.mxu0 0.0
        %2717 = vmatpush.msra.mxu0 0.0
        %2718 = vmatpush.msra.mxu0 %v2705
        %2719 = vmatpush.msra.mxu0 %v2704
        %2720 = vmatpush.msra.mxu0 %v2703
        %2721 = vmatpush.msra.mxu0 %v2702
        %2722 = vmatpush.msra.mxu0 %v2701
        %2723 = vmatpush.msra.mxu0 %v2700
        %2724 = vmatpush.msra.mxu0 %v2699
        %2725 = vmatpush.msra.mxu0 %v2698
        %2726 = vmatmul.f32.gmra.mxu0 %v2708
        %v2727 = vpop.f32.mrf.mxu0
        %v2728 = vadd.f32 0.0, %v2727
        %2729 = vdwg.mxu0
        %v2730 = vadd.f32 %v2697, %v2728
        %s2731 = scalar_lea.vmem %s10, 64
        %v2732 = vld [vmem:[%s2731] sm:$0xff]
        %v2733 = vld [vmem:[%s2731 + $0x8] sm:$0xff]
        %v2734 = vld [vmem:[%s2731 + $0x10] sm:$0xff]
        %v2735 = vld [vmem:[%s2731 + $0x18] sm:$0xff]
        %v2736 = vld [vmem:[%s2731 + $0x20] sm:$0xff]
        %v2737 = vld [vmem:[%s2731 + $0x28] sm:$0xff]
        %v2738 = vld [vmem:[%s2731 + $0x30] sm:$0xff]
        %v2739 = vld [vmem:[%s2731 + $0x38] sm:$0xff]
        %v2740 = vrot.slane %v2696, 1
        %v2741 = vsel %vm2706, %v2740, 0
        %2743 = vmatpush.msra.mxu0 0.0
        %2744 = vmatpush.msra.mxu0 0.0
        %2745 = vmatpush.msra.mxu0 0.0
        %2746 = vmatpush.msra.mxu0 0.0
        %2747 = vmatpush.msra.mxu0 0.0
        %2748 = vmatpush.msra.mxu0 0.0
        %2749 = vmatpush.msra.mxu0 0.0
        %2750 = vmatpush.msra.mxu0 0.0
        %2751 = vmatpush.msra.mxu0 %v2739
        %2752 = vmatpush.msra.mxu0 %v2738
        %2753 = vmatpush.msra.mxu0 %v2737
        %2754 = vmatpush.msra.mxu0 %v2736
        %2755 = vmatpush.msra.mxu0 %v2735
        %2756 = vmatpush.msra.mxu0 %v2734
        %2757 = vmatpush.msra.mxu0 %v2733
        %2758 = vmatpush.msra.mxu0 %v2732
        %2759 = vmatmul.f32.gmra.mxu0 %v2741
        %v2760 = vpop.f32.mrf.mxu0
        %v2761 = vadd.f32 0.0, %v2760
        %2762 = vdwg.mxu0
        %v2763 = vadd.f32 %v2730, %v2761
        %2764 = vst [vmem:[%s405] sm:$0x1] %v2763
        %s2765 = sand.u32 %s291, 1
        %s2766 = scalar_lea.sflag [#allocation3], %s2765
        %s2767 = sand.u32 %s291, 1
        %s2768 = scalar_lea.vmem [#allocation2], %s2767
        // Predicated region
        $region69: #{dqn_forward.1} parent=67 // pred_check
          %p2769 = pneg %p301
        $region70: #{dqn_forward.1} parent=67 // pred_check_branch
          %2771 = sbr.rel (%p2769) target = $region72
        $region71: #{dqn_forward.1} parent=67 // pred_region
          %2773 = vsyncadd %s2766, 0
          %s2774 = scalar_lea.hbm %s12, %s26
          %s2776 = sshll.u32 %s2768, 4
          %s2777 = int_to_ptr.vmem [resolvable:$true] %s2776
          %s2778 = sshll.u32 %s2774, 4
          %s2779 = int_to_ptr.hbm [resolvable:$true] %s2778
          %2781 = dma.vmem_to_hbm [thread:$0]  %s2777, 16, %s2779, %s2766
        $region72: #{dqn_forward.1} parent=67 // pred_fallthru
          _
      $region68: #{dqn_forward.1} parent=5 // pred_fallthru
        _
      %p2782 = scmp.le.s32.totalorder 2, %s21
      // Predicated region
      $region73: #{dqn_forward.1} parent=5 // pred_check
        %p2783 = pneg %p2782
      $region74: #{dqn_forward.1} parent=5 // pred_check_branch
        %2785 = sbr.rel (%p2783) target = $region76
      $region75: #{dqn_forward.1} parent=5 // pred_region
        %s2786 = ssub.s32 %s21, 2
        // Predicated region
        $region77: #{dqn_forward.1} parent=75 // pred_check
          %p2787 = pneg %p307
        $region78: #{dqn_forward.1} parent=75 // pred_check_branch
          %2789 = sbr.rel (%p2787) target = $region80
        $region79: #{dqn_forward.1} parent=75 // pred_region
          %s2790 = sand.u32 %s292, 1
          %s2791 = scalar_lea.sflag [#allocation3], %s2790
          %s2792 = sand.u32 %s292, 1
          %s2793 = scalar_lea.vmem [#allocation2], %s2792
          %2795 = dma.done %s2791, 16
        $region80: #{dqn_forward.1} parent=75 // pred_fallthru
          _
      $region76: #{dqn_forward.1} parent=5 // pred_fallthru
        _
    $region6: #{dqn_forward.1} parent=1 // loop_footer
      %s25 = sadd.s32 1, %s21
    $region7: #{dqn_forward.1} parent=1 // loop_footer_branch
      %20 = sbr.rel target = $region3
    $region8: #{dqn_forward.1} parent=1 // loop_exit
      _
    %2796 = vsyncpa [#allocation3], 1
    %s2797 = scalar_lea.sflag [#allocation3], 1
    %2798 = vsyncpa %s2797, 1

</llo_original>
